<compile_context>
chip_gen: v6e
topology: v6e:2x2x1
jax: 0.10.0
libtpu: 0.0.40
codegen_flags: <defaults>
</compile_context>

<pallas_src>
import functools
import math

import jax
import jax.numpy as jnp
from jax.experimental import pallas as pl
from jax.experimental.pallas import tpu as pltpu


def _local_attn_kernel(x_ref, w3_ref, b3_ref, wp_ref, bp_ref, o_ref, *, shift):
    Bblk, T, C = o_ref.shape

    # Flatten (Bblk, T) -> rows so both projection matmuls see Bblk*T MXU rows.
    # (T is a multiple of 8, so this collapse is layout-preserving.)
    x2 = x_ref[...].reshape(Bblk * T, C).astype(jnp.bfloat16)

    # Fused QKV projection: bf16 operands, f32 MXU accumulation, f32 bias.
    # Score scale 1/sqrt(C) is pre-folded into the q columns / q bias.
    qkv = jnp.dot(x2, w3_ref[...], preferred_element_type=jnp.float32) + b3_ref[...]
    q3 = qkv[:, :C].reshape(Bblk, T, C)                                # scaled q
    kv3 = qkv[:, C:].reshape(Bblk, T, 2 * C)                           # [K | V], f32

    # Window-start gather kvg[b, t] = kv[b, max(t - shift, 0)] as an in-vreg
    # XLU roll along the sequence (sublane) axis + a sublane-broadcast select.
    # No VMEM scratch, no explicit store/load round trip.
    if shift == 0:
        kvg = kv3
    elif shift >= T:
        kvg = jnp.broadcast_to(kv3[:, :1, :], (Bblk, T, 2 * C))
    else:
        rolled = pltpu.roll(kv3, shift=shift, axis=1)                  # wraps; fixed below
        t_idx = jax.lax.broadcasted_iota(jnp.int32, (Bblk, T, 2 * C), 1)
        kvg = jnp.where(t_idx < shift, kv3[:, :1, :], rolled)
    kg = kvg[..., :C].astype(jnp.bfloat16)                             # (Bblk, T, C)
    vg = kvg[..., C:].astype(jnp.bfloat16)                             # (Bblk, T, C)

    # Attention scores per batch element: bf16 operands / f32 accumulation.
    s = jnp.einsum("bqc,bkc->bqk", q3.astype(jnp.bfloat16), kg,
                   preferred_element_type=jnp.float32)                 # (Bblk, T, T)

    # Softmax in f32; divide replaced by EUP approx reciprocal + VPU multiply.
    m = jnp.max(s, axis=-1, keepdims=True)
    e = jnp.exp(s - m)
    p = e * pl.reciprocal(jnp.sum(e, axis=-1, keepdims=True), approx=True)

    # PV matmul + final projection, both bf16 operands / f32 accumulation.
    ctx = jnp.einsum("bqk,bkc->bqc", p.astype(jnp.bfloat16), vg,
                     preferred_element_type=jnp.float32)               # (Bblk, T, C)
    y = jnp.dot(ctx.reshape(Bblk * T, C).astype(jnp.bfloat16), wp_ref[...],
                preferred_element_type=jnp.float32) + bp_ref[...]
    o_ref[...] = y.reshape(Bblk, T, C).astype(o_ref.dtype)


def _pick_block_batch(B, T, target_rows=256):
    """Largest divisor of B with Bblk*T <= target_rows (v6e/v7x MXU row dim),
    keeping >= 2 grid steps when B > 1 so both v7x TensorCores get work."""
    best = 1
    for bb in range(1, B + 1):
        if B % bb != 0 or bb * T > target_rows:
            continue
        if B > 1 and B // bb < 2:
            continue
        best = bb
    return best


def local_attention(x, params, window_size, *, block_batch=None):
    """x: (B, T, C) float32. params: dict of PyTorch-layout weights."""
    B, T, C = x.shape
    assert T % 8 == 0, "T must be a multiple of 8 (sublane) for free reshapes"
    # C should be a multiple of 128 for lane-dense blocks / aligned QKV slices.

    # PyTorch Linear stores weight as (out, in); transpose to (in, out).
    w_qkv = params["qkv_w"]                     # (3C, C)
    b_qkv = params["qkv_b"]                     # (3C,)
    scale = 1.0 / math.sqrt(C)
    wq = w_qkv[0 * C:1 * C, :].T * scale        # fold score scale into q proj
    wk = w_qkv[1 * C:2 * C, :].T
    wv = w_qkv[2 * C:3 * C, :].T
    w3 = jnp.concatenate([wq, wk, wv], axis=1).astype(jnp.bfloat16)     # (C, 3C)
    b3 = jnp.concatenate(
        [b_qkv[0 * C:1 * C] * scale, b_qkv[1 * C:2 * C], b_qkv[2 * C:3 * C]]
    ).reshape(1, 3 * C).astype(jnp.float32)
    wp = params["proj_w"].T.astype(jnp.bfloat16)                        # (C, C)
    bp = params["proj_b"].reshape(1, C).astype(jnp.float32)

    # start index = clamp(t - (W-1), 0); only the lower clamp can bind.
    shift = min(window_size - 1, T)

    if block_batch is None:
        block_batch = _pick_block_batch(B, T)
    assert B % block_batch == 0, "block_batch must divide B"
    num_steps = B // block_batch

    kernel = functools.partial(_local_attn_kernel, shift=shift)

    full2d = lambda i: (0, 0)
    grid_spec = pltpu.PrefetchScalarGridSpec(
        num_scalar_prefetch=0,
        grid=(num_steps,),
        in_specs=[
            pl.BlockSpec((block_batch, T, C), lambda i: (i, 0, 0)),   # x
            pl.BlockSpec((C, 3 * C), full2d),                         # [Wq*s|Wk|Wv] bf16
            pl.BlockSpec((1, 3 * C), full2d),                         # fused bias f32
            pl.BlockSpec((C, C), full2d),                             # Wp bf16
            pl.BlockSpec((1, C), full2d),                             # bp f32
        ],
        out_specs=pl.BlockSpec((block_batch, T, C), lambda i: (i, 0, 0)),
    )

    return pl.pallas_call(
        kernel,
        out_shape=jax.ShapeDtypeStruct((B, T, C), x.dtype),
        grid_spec=grid_spec,
        compiler_params=pltpu.CompilerParams(
            dimension_semantics=("parallel",)),
    )(x, w3, b3, wp, bp)


def local_attention_ref(x, params, window_size):
    """Pure-JAX reference for correctness checking."""
    B, T, C = x.shape
    qkv = x @ params["qkv_w"].T + params["qkv_b"]          # (B, T, 3C)
    q, k, v = qkv[..., :C], qkv[..., C:2 * C], qkv[..., 2 * C:]
    start = jnp.clip(jnp.arange(T) - (window_size - 1), 0, T - 1)
    kg = k[:, start, :]
    vg = v[:, start, :]
    attn = jnp.einsum("btc,bsc->bts", q, kg) / math.sqrt(C)
    attn = jax.nn.softmax(attn, axis=-1)
    out = jnp.einsum("bts,bsc->btc", attn, vg)
    return out @ params["proj_w"].T + params["proj_b"]


if __name__ == "__main__":
    d_model = 128        # lane-dense (multiple of 128): unmasked stores, aligned QKV slices
    window_size = 4
    B, T, C = 32, 16, d_model   # Bblk=16 -> 256 MXU rows/step, 2 grid steps

    key = jax.random.PRNGKey(0)
    kx, k1, k2, k3, k4 = jax.random.split(key, 5)

    x = jax.random.normal(kx, (B, T, C), dtype=jnp.float32)
    params = {
        "qkv_w": 0.1 * jax.random.normal(k1, (3 * C, C), dtype=jnp.float32),
        "qkv_b": 0.1 * jax.random.normal(k2, (3 * C,), dtype=jnp.float32),
        "proj_w": 0.1 * jax.random.normal(k3, (C, C), dtype=jnp.float32),
        "proj_b": 0.1 * jax.random.normal(k4, (C,), dtype=jnp.float32),
    }

    out = jax.block_until_ready(local_attention(x, params, window_size))
    ref = local_attention_ref(x, params, window_size)

    assert out.shape == (B, T, C)
    max_err = jnp.max(jnp.abs(out - ref))
    # bf16 MXU operands + approx reciprocal => loose-ish tolerance (documented above).
    assert jnp.allclose(out, ref, atol=5e-2, rtol=5e-2), (
        f"mismatch vs JAX reference (max abs err {max_err})")

    print("KERNEL_OK")
</pallas_src>

<mosaic_0001>
module attributes {stable_mosaic.version = 11 : i64} {
  func.func @_local_attn_kernel(%arg0: i32, %arg1: memref<16x16x128xf32, #tpu.memory_space<vmem>>, %arg2: memref<128x384xbf16, #tpu.memory_space<vmem>>, %arg3: memref<1x384xf32, #tpu.memory_space<vmem>>, %arg4: memref<128x128xbf16, #tpu.memory_space<vmem>>, %arg5: memref<1x128xf32, #tpu.memory_space<vmem>>, %arg6: memref<16x16x128xf32, #tpu.memory_space<vmem>>) attributes {dimension_semantics = [#tpu.dimension_semantics<parallel>], iteration_bounds = array<i64: 2>, scalar_prefetch = 0 : i64, scratch_operands = 0 : i64, tpu.core_type = #tpu.core_type<tc>, window_params = [{transform_indices = @transform_0, window_bounds = array<i64: 16, 16, 128>}, {pipeline_mode = #tpu.pipeline_mode<synchronous>, transform_indices = @transform_1, window_bounds = array<i64: 128, 384>}, {pipeline_mode = #tpu.pipeline_mode<synchronous>, transform_indices = @transform_2, window_bounds = array<i64: 1, 384>}, {pipeline_mode = #tpu.pipeline_mode<synchronous>, transform_indices = @transform_3, window_bounds = array<i64: 128, 128>}, {pipeline_mode = #tpu.pipeline_mode<synchronous>, transform_indices = @transform_4, window_bounds = array<i64: 1, 128>}, {transform_indices = @transform_5, window_bounds = array<i64: 16, 16, 128>}]} {
    %c0 = arith.constant 0 : index
    %c0_0 = arith.constant 0 : index
    %c0_1 = arith.constant 0 : index
    %0 = vector.load %arg1[%c0, %c0_0, %c0_1] : memref<16x16x128xf32, #tpu.memory_space<vmem>>, vector<16x16x128xf32>
    %1 = vector.shape_cast %0 : vector<16x16x128xf32> to vector<256x128xf32>
    %2 = arith.truncf %1 : vector<256x128xf32> to vector<256x128xbf16>
    %c0_2 = arith.constant 0 : index
    %c0_3 = arith.constant 0 : index
    %3 = vector.load %arg2[%c0_2, %c0_3] : memref<128x384xbf16, #tpu.memory_space<vmem>>, vector<128x384xbf16>
    %cst = arith.constant dense<0.000000e+00> : vector<256x384xf32>
    %4 = tpu.matmul %2, %3, %cst {dimension_numbers = #tpu.dot_dimension_numbers<[1], [0], [0], [1], [0, 0, 1, 1], [], []>} : vector<256x128xbf16>, vector<128x384xbf16>, vector<256x384xf32> -> vector<256x384xf32>
    %c0_4 = arith.constant 0 : index
    %c0_5 = arith.constant 0 : index
    %5 = vector.load %arg3[%c0_4, %c0_5] : memref<1x384xf32, #tpu.memory_space<vmem>>, vector<1x384xf32>
    %6 = vector.broadcast %5 : vector<1x384xf32> to vector<256x384xf32>
    %7 = arith.addf %4, %6 : vector<256x384xf32>
    %8 = vector.extract_strided_slice %7 {offsets = [0, 0], sizes = [256, 128], strides = [1, 1]} : vector<256x384xf32> to vector<256x128xf32>
    %9 = vector.shape_cast %8 : vector<256x128xf32> to vector<16x16x128xf32>
    %10 = vector.extract_strided_slice %7 {offsets = [0, 128], sizes = [256, 256], strides = [1, 1]} : vector<256x384xf32> to vector<256x256xf32>
    %11 = vector.shape_cast %10 : vector<256x256xf32> to vector<16x16x256xf32>
    %c3_i32 = arith.constant 3 : i32
    %12 = tpu.dynamic_rotate %11 by %c3_i32 dim 1 : vector<16x16x256xf32>, i32 -> vector<16x16x256xf32>
    %13 = tpu.iota {dimensions = array<i32: 1>} : vector<16x16x256xi32>
    %c3_i32_6 = arith.constant 3 : i32
    %14 = vector.broadcast %c3_i32_6 : i32 to vector<16x16x256xi32>
    %15 = arith.cmpi slt, %13, %14 : vector<16x16x256xi32>
    %16 = vector.extract_strided_slice %11 {offsets = [0, 0, 0], sizes = [16, 1, 256], strides = [1, 1, 1]} : vector<16x16x256xf32> to vector<16x1x256xf32>
    %17 = vector.shape_cast %16 : vector<16x1x256xf32> to vector<16x1x256xf32>
    %18 = vector.broadcast %17 : vector<16x1x256xf32> to vector<16x16x256xf32>
    %19 = arith.select %15, %18, %12 : vector<16x16x256xi1>, vector<16x16x256xf32>
    %20 = vector.extract_strided_slice %19 {offsets = [0, 0, 0], sizes = [16, 16, 128], strides = [1, 1, 1]} : vector<16x16x256xf32> to vector<16x16x128xf32>
    %21 = arith.truncf %20 : vector<16x16x128xf32> to vector<16x16x128xbf16>
    %22 = vector.extract_strided_slice %19 {offsets = [0, 0, 128], sizes = [16, 16, 128], strides = [1, 1, 1]} : vector<16x16x256xf32> to vector<16x16x128xf32>
    %23 = arith.truncf %22 : vector<16x16x128xf32> to vector<16x16x128xbf16>
    %24 = arith.truncf %9 : vector<16x16x128xf32> to vector<16x16x128xbf16>
    "tpu.trace_start"() <{level = 10 : i32, message = "bqc,bkc->bqk"}> : () -> ()
    %cst_7 = arith.constant dense<0.000000e+00> : vector<16x16x16xf32>
    %25 = tpu.matmul %24, %21, %cst_7 {dimension_numbers = #tpu.dot_dimension_numbers<[2], [2], [1], [1], [0, 0, 0, 1, 1, 1], [0], [0]>} : vector<16x16x128xbf16>, vector<16x16x128xbf16>, vector<16x16x16xf32> -> vector<16x16x16xf32>
    "tpu.trace_stop"() : () -> ()
    %cst_8 = arith.constant dense<0xFF800000> : vector<16x16xf32>
    %26 = vector.multi_reduction <maximumf>, %25, %cst_8 [2] : vector<16x16x16xf32> to vector<16x16xf32>
    %27 = vector.shape_cast %26 : vector<16x16xf32> to vector<16x16x1xf32>
    %28 = vector.broadcast %27 : vector<16x16x1xf32> to vector<16x16x16xf32>
    %29 = arith.subf %25, %28 : vector<16x16x16xf32>
    %30 = math.exp %29 : vector<16x16x16xf32>
    %cst_9 = arith.constant dense<0.000000e+00> : vector<16x16xf32>
    %31 = vector.multi_reduction <add>, %30, %cst_9 [2] : vector<16x16x16xf32> to vector<16x16xf32>
    %32 = vector.shape_cast %31 : vector<16x16xf32> to vector<16x16x1xf32>
    %33 = tpu.reciprocal %32 {approx = true} : vector<16x16x1xf32> -> vector<16x16x1xf32>
    %34 = vector.broadcast %33 : vector<16x16x1xf32> to vector<16x16x16xf32>
    %35 = arith.mulf %30, %34 : vector<16x16x16xf32>
    %36 = arith.truncf %35 : vector<16x16x16xf32> to vector<16x16x16xbf16>
    "tpu.trace_start"() <{level = 10 : i32, message = "bqk,bkc->bqc"}> : () -> ()
    %cst_10 = arith.constant dense<0.000000e+00> : vector<16x16x128xf32>
    %37 = tpu.matmul %36, %23, %cst_10 {dimension_numbers = #tpu.dot_dimension_numbers<[2], [1], [1], [2], [0, 0, 0, 1, 1, 2], [0], [0]>} : vector<16x16x16xbf16>, vector<16x16x128xbf16>, vector<16x16x128xf32> -> vector<16x16x128xf32>
    "tpu.trace_stop"() : () -> ()
    %38 = vector.shape_cast %37 : vector<16x16x128xf32> to vector<256x128xf32>
    %39 = arith.truncf %38 : vector<256x128xf32> to vector<256x128xbf16>
    %c0_11 = arith.constant 0 : index
    %c0_12 = arith.constant 0 : index
    %40 = vector.load %arg4[%c0_11, %c0_12] : memref<128x128xbf16, #tpu.memory_space<vmem>>, vector<128x128xbf16>
    %cst_13 = arith.constant dense<0.000000e+00> : vector<256x128xf32>
    %41 = tpu.matmul %39, %40, %cst_13 {dimension_numbers = #tpu.dot_dimension_numbers<[1], [0], [0], [1], [0, 0, 1, 1], [], []>} : vector<256x128xbf16>, vector<128x128xbf16>, vector<256x128xf32> -> vector<256x128xf32>
    %c0_14 = arith.constant 0 : index
    %c0_15 = arith.constant 0 : index
    %42 = vector.load %arg5[%c0_14, %c0_15] : memref<1x128xf32, #tpu.memory_space<vmem>>, vector<1x128xf32>
    %43 = vector.broadcast %42 : vector<1x128xf32> to vector<256x128xf32>
    %44 = arith.addf %41, %43 : vector<256x128xf32>
    %45 = vector.shape_cast %44 : vector<256x128xf32> to vector<16x16x128xf32>
    %c0_16 = arith.constant 0 : index
    %c0_17 = arith.constant 0 : index
    %c0_18 = arith.constant 0 : index
    %46 = vector.load %arg6[%c0_16, %c0_17, %c0_18] : memref<16x16x128xf32, #tpu.memory_space<vmem>>, vector<16x16x128xf32>
    tpu.vector_store %arg6[%c0_16, %c0_17, %c0_18], %45 {strides = array<i32>} : memref<16x16x128xf32, #tpu.memory_space<vmem>>, vector<16x16x128xf32>,
    return
  }
  func.func @transform_0(%arg0: i32) -> (i32, i32, i32) {
    %c0_i32 = arith.constant 0 : i32
    %c0_i32_0 = arith.constant 0 : i32
    %c0_i32_1 = arith.constant 0 : i32
    return %arg0, %c0_i32, %c0_i32_0 : i32, i32, i32
  }
  func.func @transform_1(%arg0: i32) -> (i32, i32) {
    %c0_i32 = arith.constant 0 : i32
    %c0_i32_0 = arith.constant 0 : i32
    %c0_i32_1 = arith.constant 0 : i32
    return %c0_i32, %c0_i32_0 : i32, i32
  }
  func.func @transform_2(%arg0: i32) -> (i32, i32) {
    %c0_i32 = arith.constant 0 : i32
    %c0_i32_0 = arith.constant 0 : i32
    %c0_i32_1 = arith.constant 0 : i32
    return %c0_i32, %c0_i32_0 : i32, i32
  }
  func.func @transform_3(%arg0: i32) -> (i32, i32) {
    %c0_i32 = arith.constant 0 : i32
    %c0_i32_0 = arith.constant 0 : i32
    %c0_i32_1 = arith.constant 0 : i32
    return %c0_i32, %c0_i32_0 : i32, i32
  }
  func.func @transform_4(%arg0: i32) -> (i32, i32) {
    %c0_i32 = arith.constant 0 : i32
    %c0_i32_0 = arith.constant 0 : i32
    %c0_i32_1 = arith.constant 0 : i32
    return %c0_i32, %c0_i32_0 : i32, i32
  }
  func.func @transform_5(%arg0: i32) -> (i32, i32, i32) {
    %c0_i32 = arith.constant 0 : i32
    %c0_i32_0 = arith.constant 0 : i32
    %c0_i32_1 = arith.constant 0 : i32
    return %arg0, %c0_i32, %c0_i32_0 : i32, i32, i32
  }
}

</mosaic_0001>

<llo_original>
// kernel: tpu_custom_call.1
$region0: #{tpu_custom_call.1}
  #allocation0 [shape = 'u32[]', space=smem, size = 0x4, offset = 0x4, fixed_abs, tag = 'smem constant byte address 0x4 - core index']
  #allocation1 [shape = 'u32[144,128]{1,0:T(1,128)}', space=vmem, size = 0x12000, scoped, tag = 'internal scratch']
  %s0 = inlined_call_operand.hbm [shape: f32[32,16,128], index: 0, kind: input, shape index: {}]
  %s1 = inlined_call_operand.hbm [shape: bf16[128,384], index: 1, kind: input, shape index: {}]
  %s2 = inlined_call_operand.vmem [shape: f32[1,384], index: 2, kind: input, shape index: {}]
  %s3 = inlined_call_operand.hbm [shape: bf16[128,128], index: 3, kind: input, shape index: {}]
  %s4 = inlined_call_operand.vmem [shape: f32[1,128], index: 4, kind: input, shape index: {}]
  %s5 = inlined_call_operand.hbm [shape: f32[32,16,128], index: 5, kind: output, shape index: {}]
  %s6 = sld [smem:[#allocation0]]
  $region65: #{tpu_custom_call.1} parent=0
    _
  %s8 = ssub.s32 1, %s6
  %s9 = scalar_select 0, %s8, %s6
  $region1: #{tpu_custom_call.1} parent=0
    #allocation2 [shape = 'u8[262144]{0}', space=vmem, size = 0x40000, scoped, tag = 'input window, operand 0']
    #allocation3 [shape = 's32[2]{0}', space=sflag, size = 0x8, scoped, tag = 'scoped memory for tpu_custom_call.1']
    #allocation4 [shape = 's32[2]{0}', space=sflag, size = 0x8, scoped, tag = 'scoped memory for tpu_custom_call.1']
    #allocation5 [shape = 'u8[98304]{0}', space=vmem, size = 0x18000, scoped, tag = 'input window, operand 1, single buffered']
    #allocation6 [shape = 's32[1]{0}', space=sflag, size = 0x4, scoped, tag = 'scoped memory for tpu_custom_call.1']
    #allocation7 [shape = 'u8[32768]{0}', space=vmem, size = 0x8000, scoped, tag = 'input window, operand 3, single buffered']
    #allocation8 [shape = 'u8[262144]{0}', space=vmem, size = 0x40000, scoped, tag = 'output window, operand 0']
    %10 = vsyncpa [#allocation3], 0
    %s11 = scalar_lea.sflag [#allocation3], 1
    %12 = vsyncpa %s11, 0
    %13 = vsyncpa [#allocation6], 0
    %14 = vsyncpa [#allocation4], 0
    %s15 = scalar_lea.sflag [#allocation4], 1
    %16 = vsyncpa %s15, 0
    loop: start=0, step=1, limit=4
    $region2: #{tpu_custom_call.1} parent=1 // loop_pre_header
      _
    $region3: #{tpu_custom_call.1} parent=1 // loop_header
      %s18 = sphi 0, %s22
      %p19 = scmp.ge.s32.totalorder %s18, 4
      %s28 = sphi 0, %s30
      %s31 = sphi 0, %s28
      %s32 = sphi 0, %s31
      %s48 = sphi 0, %s32
      %s52 = sphi 0, %s52
      %s54 = sphi 0, %s52
      %s55 = sphi 0, %s54
      %s69 = sphi 0, %s55
      %s73 = sphi 0, %s73
      %s75 = sphi 0, %s73
      %s76 = sphi 0, %s75
      %s90 = sphi 0, %s76
      %s94 = sphi 0, %s94
      %s96 = sphi 0, %s94
      %s97 = sphi 0, %s96
      %s111 = sphi 0, %s97
      %s115 = sphi 0, %s115
      %s117 = sphi 0, %s115
      %s118 = sphi 0, %s117
      %s132 = sphi 0, %s118
      %s138 = sphi 0, %s140
      %s141 = sphi 0, %s138
      %s142 = sphi 0, %s141
      %s158 = sphi 0, %s142
    $region4: #{tpu_custom_call.1} parent=1 // loop_header_branch
      %21 = sbr.rel (%p19) target = $region8
    $region5: #{tpu_custom_call.1} parent=1 // loop_body
      %s23 = ssub.s32 %s18, 1
      %s24 = ssub.s32 %s18, 2
      %s25 = sadd.s32 %s18, 1
      %s26 = ssub.s32 %s18, %s25
      %p27 = scmp.eq.s32.totalorder %s26, 0
      %s29 = sadd.s32 %s28, 1
      %s30 = scalar_select %p27, %s28, %s29
      %p33 = pneg %p27
      %p34 = scmp.eq.s32.totalorder %s18, 1
      %p35 = por %p33, %p34
      %p36 = scmp.ne.s32.totalorder %s28, %s31
      %p37 = scmp.eq.s32.totalorder %s18, 0
      %p38 = por %p36, %p37
      %p39 = scmp.ne.s32.totalorder %s28, %s31
      %p40 = scmp.eq.s32.totalorder %s23, 1
      %p41 = por %p39, %p40
      %p42 = scmp.ne.s32.totalorder %s31, %s32
      %p43 = scmp.eq.s32.totalorder %s23, 0
      %p44 = por %p42, %p43
      %p45 = scmp.ne.s32.totalorder %s31, %s32
      %p46 = scmp.eq.s32.totalorder %s24, 1
      %p47 = por %p45, %p46
      %p49 = scmp.ne.s32.totalorder %s32, %s48
      %p50 = scmp.eq.s32.totalorder %s24, 0
      %p51 = por %p49, %p50
      %s53 = sadd.s32 %s52, 1
      %p56 = scmp.eq.s32.totalorder %s18, 1
      %p57 = scmp.ne.s32.totalorder %s52, %s54
      %p58 = scmp.eq.s32.totalorder %s18, 0
      %p59 = por %p57, %p58
      %p60 = scmp.ne.s32.totalorder %s52, %s54
      %p61 = scmp.eq.s32.totalorder %s23, 1
      %p62 = por %p60, %p61
      %p63 = scmp.ne.s32.totalorder %s54, %s55
      %p64 = scmp.eq.s32.totalorder %s23, 0
      %p65 = por %p63, %p64
      %p66 = scmp.ne.s32.totalorder %s54, %s55
      %p67 = scmp.eq.s32.totalorder %s24, 1
      %p68 = por %p66, %p67
      %p70 = scmp.ne.s32.totalorder %s55, %s69
      %p71 = scmp.eq.s32.totalorder %s24, 0
      %p72 = por %p70, %p71
      %s74 = sadd.s32 %s73, 1
      %p77 = scmp.eq.s32.totalorder %s18, 1
      %p78 = scmp.ne.s32.totalorder %s73, %s75
      %p79 = scmp.eq.s32.totalorder %s18, 0
      %p80 = por %p78, %p79
      %p81 = scmp.ne.s32.totalorder %s73, %s75
      %p82 = scmp.eq.s32.totalorder %s23, 1
      %p83 = por %p81, %p82
      %p84 = scmp.ne.s32.totalorder %s75, %s76
      %p85 = scmp.eq.s32.totalorder %s23, 0
      %p86 = por %p84, %p85
      %p87 = scmp.ne.s32.totalorder %s75, %s76
      %p88 = scmp.eq.s32.totalorder %s24, 1
      %p89 = por %p87, %p88
      %p91 = scmp.ne.s32.totalorder %s76, %s90
      %p92 = scmp.eq.s32.totalorder %s24, 0
      %p93 = por %p91, %p92
      %s95 = sadd.s32 %s94, 1
      %p98 = scmp.eq.s32.totalorder %s18, 1
      %p99 = scmp.ne.s32.totalorder %s94, %s96
      %p100 = scmp.eq.s32.totalorder %s18, 0
      %p101 = por %p99, %p100
      %p102 = scmp.ne.s32.totalorder %s94, %s96
      %p103 = scmp.eq.s32.totalorder %s23, 1
      %p104 = por %p102, %p103
      %p105 = scmp.ne.s32.totalorder %s96, %s97
      %p106 = scmp.eq.s32.totalorder %s23, 0
      %p107 = por %p105, %p106
      %p108 = scmp.ne.s32.totalorder %s96, %s97
      %p109 = scmp.eq.s32.totalorder %s24, 1
      %p110 = por %p108, %p109
      %p112 = scmp.ne.s32.totalorder %s97, %s111
      %p113 = scmp.eq.s32.totalorder %s24, 0
      %p114 = por %p112, %p113
      %s116 = sadd.s32 %s115, 1
      %p119 = scmp.eq.s32.totalorder %s18, 1
      %p120 = scmp.ne.s32.totalorder %s115, %s117
      %p121 = scmp.eq.s32.totalorder %s18, 0
      %p122 = por %p120, %p121
      %p123 = scmp.ne.s32.totalorder %s115, %s117
      %p124 = scmp.eq.s32.totalorder %s23, 1
      %p125 = por %p123, %p124
      %p126 = scmp.ne.s32.totalorder %s117, %s118
      %p127 = scmp.eq.s32.totalorder %s23, 0
      %p128 = por %p126, %p127
      %p129 = scmp.ne.s32.totalorder %s117, %s118
      %p130 = scmp.eq.s32.totalorder %s24, 1
      %p131 = por %p129, %p130
      %p133 = scmp.ne.s32.totalorder %s118, %s132
      %p134 = scmp.eq.s32.totalorder %s24, 0
      %p135 = por %p133, %p134
      %s136 = ssub.s32 %s18, %s25
      %p137 = scmp.eq.s32.totalorder %s136, 0
      %s139 = sadd.s32 %s138, 1
      %s140 = scalar_select %p137, %s138, %s139
      %p143 = pneg %p137
      %p144 = scmp.eq.s32.totalorder %s18, 1
      %p145 = por %p143, %p144
      %p146 = scmp.ne.s32.totalorder %s138, %s141
      %p147 = scmp.eq.s32.totalorder %s18, 0
      %p148 = por %p146, %p147
      %p149 = scmp.ne.s32.totalorder %s138, %s141
      %p150 = scmp.eq.s32.totalorder %s23, 1
      %p151 = por %p149, %p150
      %p152 = scmp.ne.s32.totalorder %s141, %s142
      %p153 = scmp.eq.s32.totalorder %s23, 0
      %p154 = por %p152, %p153
      %p155 = scmp.ne.s32.totalorder %s141, %s142
      %p156 = scmp.eq.s32.totalorder %s24, 1
      %p157 = por %p155, %p156
      %p159 = scmp.ne.s32.totalorder %s142, %s158
      %p160 = scmp.eq.s32.totalorder %s24, 0
      %p161 = por %p159, %p160
      %p162 = scmp.le.s32.totalorder 1, %s18
      %p163 = scmp.lt.s32.totalorder %s18, 3
      %p164 = pnand %p162, %p163
      %p165 = pneg %p164
      // Predicated region
      $region9: #{tpu_custom_call.1} parent=5 // pred_check
        _
      $region10: #{tpu_custom_call.1} parent=5 // pred_check_branch
        %167 = sbr.rel (%p164) target = $region12
      $region11: #{tpu_custom_call.1} parent=5 // pred_region
        %s168 = ssub.s32 %s18, 1
        // Predicated region
        $region13: #{tpu_custom_call.1} parent=11 // pred_check
          %p169 = pneg %p65
        $region14: #{tpu_custom_call.1} parent=11 // pred_check_branch
          %171 = sbr.rel (%p169) target = $region16
        $region15: #{tpu_custom_call.1} parent=11 // pred_region
          %s173 = ssub.s32 3072, 3072
          %174 = vsyncadd [#allocation6], %s173
          %s175 = sshll.u32 [#allocation5], 4
          %s176 = int_to_ptr.vmem [resolvable:$true] %s175
          %181 = dma.hbm_to_vmem [thread:$0]  %s1, 3072, %s176, [#allocation6], 192, 192, 12
        $region16: #{tpu_custom_call.1} parent=11 // pred_fallthru
          _
        // Predicated region
        $region17: #{tpu_custom_call.1} parent=11 // pred_check
          %p182 = pneg %p86
        $region18: #{tpu_custom_call.1} parent=11 // pred_check_branch
          %184 = sbr.rel (%p182) target = $region20
        $region19: #{tpu_custom_call.1} parent=11 // pred_region
          _
        $region20: #{tpu_custom_call.1} parent=11 // pred_fallthru
          _
        // Predicated region
        $region21: #{tpu_custom_call.1} parent=11 // pred_check
          %p185 = pneg %p107
        $region22: #{tpu_custom_call.1} parent=11 // pred_check_branch
          %187 = sbr.rel (%p185) target = $region24
        $region23: #{tpu_custom_call.1} parent=11 // pred_region
          %s189 = ssub.s32 1024, 1024
          %190 = vsyncadd [#allocation6], %s189
          %s191 = sshll.u32 [#allocation7], 4
          %s192 = int_to_ptr.vmem [resolvable:$true] %s191
          %197 = dma.hbm_to_vmem [thread:$0]  %s3, 1024, %s192, [#allocation6], 64, 64, 4
        $region24: #{tpu_custom_call.1} parent=11 // pred_fallthru
          _
        // Predicated region
        $region25: #{tpu_custom_call.1} parent=11 // pred_check
          %p198 = pneg %p128
        $region26: #{tpu_custom_call.1} parent=11 // pred_check_branch
          %200 = sbr.rel (%p198) target = $region28
        $region27: #{tpu_custom_call.1} parent=11 // pred_region
          _
        $region28: #{tpu_custom_call.1} parent=11 // pred_fallthru
          _
      $region12: #{tpu_custom_call.1} parent=5 // pred_fallthru
        _
      %p201 = scmp.lt.s32.totalorder %s18, 2
      // Predicated region
      $region29: #{tpu_custom_call.1} parent=5 // pred_check
        %p202 = pneg %p201
      $region30: #{tpu_custom_call.1} parent=5 // pred_check_branch
        %204 = sbr.rel (%p202) target = $region32
      $region31: #{tpu_custom_call.1} parent=5 // pred_region
        // Predicated region
        $region33: #{tpu_custom_call.1} parent=31 // pred_check
          %p205 = pneg %p38
        $region34: #{tpu_custom_call.1} parent=31 // pred_check_branch
          %207 = sbr.rel (%p205) target = $region36
        $region35: #{tpu_custom_call.1} parent=31 // pred_region
          %s208 = sand.u32 %s28, 1
          %s209 = scalar_lea.sflag [#allocation3], %s208
          %s210 = sand.u32 %s28, 1
          %s211 = smul.addr %s210, 256
          %s212 = scalar_lea.vmem [#allocation2], %s211
          %s213 = smul.u32 16, %s18
          %s215 = ssub.s32 4096, 4096
          %216 = vsyncadd %s209, %s215
          %s217 = smul.addr %s213, 2
          %s218 = smul.addr %s217, 128
          %s219 = scalar_lea.hbm %s0, %s218
          %s220 = sshll.u32 %s212, 4
          %s221 = int_to_ptr.vmem [resolvable:$true] %s220
          %226 = dma.hbm_to_vmem [thread:$0]  %s219, 4096, %s221, %s209, 128, 128, 8
        $region36: #{tpu_custom_call.1} parent=31 // pred_fallthru
          _
      $region32: #{tpu_custom_call.1} parent=5 // pred_fallthru
        _
      %p227 = scmp.le.s32.totalorder 1, %s18
      %p228 = scmp.lt.s32.totalorder %s18, 3
      %p229 = pnand %p227, %p228
      %p230 = pneg %p229
      // Predicated region
      $region37: #{tpu_custom_call.1} parent=5 // pred_check
        _
      $region38: #{tpu_custom_call.1} parent=5 // pred_check_branch
        %232 = sbr.rel (%p229) target = $region40
      $region39: #{tpu_custom_call.1} parent=5 // pred_region
        %s233 = ssub.s32 %s18, 1
        %s234 = sand.u32 %s31, 1
        %s235 = scalar_lea.sflag [#allocation3], %s234
        %s236 = sand.u32 %s31, 1
        %s237 = smul.addr %s236, 256
        %s238 = scalar_lea.vmem [#allocation2], %s237
        // Predicated region
        $region41: #{tpu_custom_call.1} parent=39 // pred_check
          %p239 = pneg %p44
        $region42: #{tpu_custom_call.1} parent=39 // pred_check_branch
          %241 = sbr.rel (%p239) target = $region44
        $region43: #{tpu_custom_call.1} parent=39 // pred_region
          %242 = dma.done %s235, 4096
        $region44: #{tpu_custom_call.1} parent=39 // pred_fallthru
          _
        // Predicated region
        $region45: #{tpu_custom_call.1} parent=39 // pred_check
          %p243 = pneg %p65
        $region46: #{tpu_custom_call.1} parent=39 // pred_check_branch
          %245 = sbr.rel (%p243) target = $region48
        $region47: #{tpu_custom_call.1} parent=39 // pred_region
          %246 = dma.done [#allocation6], 3072
        $region48: #{tpu_custom_call.1} parent=39 // pred_fallthru
          _
        // Predicated region
        $region49: #{tpu_custom_call.1} parent=39 // pred_check
          %p247 = pneg %p107
        $region50: #{tpu_custom_call.1} parent=39 // pred_check_branch
          %249 = sbr.rel (%p247) target = $region52
        $region51: #{tpu_custom_call.1} parent=39 // pred_region
          %250 = dma.done [#allocation6], 1024
        $region52: #{tpu_custom_call.1} parent=39 // pred_fallthru
          _
        %s251 = sand.u32 %s31, 1
        %s252 = scalar_lea.sflag [#allocation3], %s251
        %s253 = sand.u32 %s31, 1
        %s254 = smul.addr %s253, 256
        %s255 = scalar_lea.vmem [#allocation2], %s254
        %p256 = pneg %p44
        %p257 = pneg %p41
        %p258 = pneg %p65
        %p259 = pneg %p62
        %p260 = pneg %p86
        %p261 = pneg %p83
        %p262 = pneg %p107
        %p263 = pneg %p104
        %p264 = pneg %p128
        %p265 = pneg %p125
        %p266 = pneg %p154
        %p267 = pneg %p151
        %s268 = sand.u32 %s141, 1
        %s269 = scalar_lea.sflag [#allocation4], %s268
        %s270 = sand.u32 %s141, 1
        %s271 = smul.addr %s270, 256
        %s272 = scalar_lea.vmem [#allocation8], %s271
        %s273 = smul.u32 16, %s23
        %s274 = smul.u32 16, %s23
        %v276 = vld [vmem:[%s238] sm:$0xff]
        %v277 = vld [vmem:[%s238 + $0x8] sm:$0xff]
        %v278 = vld [vmem:[%s238 + $0x10] sm:$0xff]
        %v279 = vld [vmem:[%s238 + $0x18] sm:$0xff]
        %v280 = vld [vmem:[%s238 + $0x20] sm:$0xff]
        %v281 = vld [vmem:[%s238 + $0x28] sm:$0xff]
        %v282 = vld [vmem:[%s238 + $0x30] sm:$0xff]
        %v283 = vld [vmem:[%s238 + $0x38] sm:$0xff]
        %v284 = vld [vmem:[%s238 + $0x40] sm:$0xff]
        %v285 = vld [vmem:[%s238 + $0x48] sm:$0xff]
        %v286 = vld [vmem:[%s238 + $0x50] sm:$0xff]
        %v287 = vld [vmem:[%s238 + $0x58] sm:$0xff]
        %v288 = vld [vmem:[%s238 + $0x60] sm:$0xff]
        %v289 = vld [vmem:[%s238 + $0x68] sm:$0xff]
        %v290 = vld [vmem:[%s238 + $0x70] sm:$0xff]
        %v291 = vld [vmem:[%s238 + $0x78] sm:$0xff]
        %v292 = vld [vmem:[%s238 + $0x80] sm:$0xff]
        %v293 = vld [vmem:[%s238 + $0x88] sm:$0xff]
        %v294 = vld [vmem:[%s238 + $0x90] sm:$0xff]
        %v295 = vld [vmem:[%s238 + $0x98] sm:$0xff]
        %v296 = vld [vmem:[%s238 + $0xa0] sm:$0xff]
        %v297 = vld [vmem:[%s238 + $0xa8] sm:$0xff]
        %v298 = vld [vmem:[%s238 + $0xb0] sm:$0xff]
        %v299 = vld [vmem:[%s238 + $0xb8] sm:$0xff]
        %v300 = vld [vmem:[%s238 + $0xc0] sm:$0xff]
        %v301 = vld [vmem:[%s238 + $0xc8] sm:$0xff]
        %v302 = vld [vmem:[%s238 + $0xd0] sm:$0xff]
        %v303 = vld [vmem:[%s238 + $0xd8] sm:$0xff]
        %v304 = vld [vmem:[%s238 + $0xe0] sm:$0xff]
        %v305 = vld [vmem:[%s238 + $0xe8] sm:$0xff]
        %v306 = vld [vmem:[%s238 + $0xf0] sm:$0xff]
        %v307 = vld [vmem:[%s238 + $0xf8] sm:$0xff]
        %v308 = vpack.c.bf16 %v277, %v276
        %v309 = vpack.c.bf16 %v279, %v278
        %v310 = vpack.c.bf16 %v281, %v280
        %v311 = vpack.c.bf16 %v283, %v282
        %v312 = vpack.c.bf16 %v285, %v284
        %v313 = vpack.c.bf16 %v287, %v286
        %v314 = vpack.c.bf16 %v289, %v288
        %v315 = vpack.c.bf16 %v291, %v290
        %v316 = vpack.c.bf16 %v293, %v292
        %v317 = vpack.c.bf16 %v295, %v294
        %v318 = vpack.c.bf16 %v297, %v296
        %v319 = vpack.c.bf16 %v299, %v298
        %v320 = vpack.c.bf16 %v301, %v300
        %v321 = vpack.c.bf16 %v303, %v302
        %v322 = vpack.c.bf16 %v305, %v304
        %v323 = vpack.c.bf16 %v307, %v306
        %v324 = vld [vmem:[#allocation5] sm:$0xff]
        %v325 = vld [vmem:[#allocation5 + $0x8] sm:$0xf]
        %v326 = vld [vmem:[#allocation5 + $0xc] sm:$0xff]
        %v327 = vld [vmem:[#allocation5 + $0x14] sm:$0xf]
        %v328 = vld [vmem:[#allocation5 + $0x18] sm:$0xff]
        %v329 = vld [vmem:[#allocation5 + $0x20] sm:$0xf]
        %v330 = vld [vmem:[#allocation5 + $0x24] sm:$0xff]
        %v331 = vld [vmem:[#allocation5 + $0x2c] sm:$0xf]
        %v332 = vld [vmem:[#allocation5 + $0x30] sm:$0xff]
        %v333 = vld [vmem:[#allocation5 + $0x38] sm:$0xf]
        %v334 = vld [vmem:[#allocation5 + $0x3c] sm:$0xff]
        %v335 = vld [vmem:[#allocation5 + $0x44] sm:$0xf]
        %v336 = vld [vmem:[#allocation5 + $0x48] sm:$0xff]
        %v337 = vld [vmem:[#allocation5 + $0x50] sm:$0xf]
        %v338 = vld [vmem:[#allocation5 + $0x54] sm:$0xff]
        %v339 = vld [vmem:[#allocation5 + $0x5c] sm:$0xf]
        %v340 = vld [vmem:[#allocation5 + $0x60] sm:$0xff]
        %v341 = vld [vmem:[#allocation5 + $0x68] sm:$0xf]
        %v342 = vld [vmem:[#allocation5 + $0x6c] sm:$0xff]
        %v343 = vld [vmem:[#allocation5 + $0x74] sm:$0xf]
        %v344 = vld [vmem:[#allocation5 + $0x78] sm:$0xff]
        %v345 = vld [vmem:[#allocation5 + $0x80] sm:$0xf]
        %v346 = vld [vmem:[#allocation5 + $0x84] sm:$0xff]
        %v347 = vld [vmem:[#allocation5 + $0x8c] sm:$0xf]
        %v348 = vld [vmem:[#allocation5 + $0x90] sm:$0xff]
        %v349 = vld [vmem:[#allocation5 + $0x98] sm:$0xf]
        %v350 = vld [vmem:[#allocation5 + $0x9c] sm:$0xff]
        %v351 = vld [vmem:[#allocation5 + $0xa4] sm:$0xf]
        %v352 = vld [vmem:[#allocation5 + $0xa8] sm:$0xff]
        %v353 = vld [vmem:[#allocation5 + $0xb0] sm:$0xf]
        %v354 = vld [vmem:[#allocation5 + $0xb4] sm:$0xff]
        %v355 = vld [vmem:[#allocation5 + $0xbc] sm:$0xf]
        %v356 = vld [vmem:[%s2] sm:$0x7]
        %v358 = vlaneseq
        %v359 = vshrl.u32 %v358, 7
        %v360 = vsub.s32 0, %v359
        %v361 = vrot.slane %v356, %v360
        %v362 = vlaneseq
        %v363 = vshrl.u32 %v362, 7
        %v364 = vsub.s32 1, %v363
        %v365 = vrot.slane %v356, %v364
        %v366 = vlaneseq
        %v367 = vshrl.u32 %v366, 7
        %v368 = vsub.s32 2, %v367
        %v369 = vrot.slane %v356, %v368
        %v405 = vunpack.c.l.b16 %v324
        %v406 = vunpack.c.h.b16 %v324
        %v407 = vunpack.c.l.b16 %v325
        %v408 = vunpack.c.l.b16 %v326
        %v409 = vunpack.c.h.b16 %v326
        %v410 = vunpack.c.l.b16 %v327
        %v411 = vunpack.c.l.b16 %v328
        %v412 = vunpack.c.h.b16 %v328
        %v413 = vunpack.c.l.b16 %v329
        %v414 = vunpack.c.l.b16 %v330
        %v415 = vunpack.c.h.b16 %v330
        %v416 = vunpack.c.l.b16 %v331
        %v417 = vunpack.c.l.b16 %v332
        %v418 = vunpack.c.h.b16 %v332
        %v419 = vunpack.c.l.b16 %v333
        %v420 = vunpack.c.l.b16 %v334
        %v421 = vunpack.c.h.b16 %v334
        %v422 = vunpack.c.l.b16 %v335
        %v423 = vunpack.c.l.b16 %v336
        %v424 = vunpack.c.h.b16 %v336
        %v425 = vunpack.c.l.b16 %v337
        %v426 = vunpack.c.l.b16 %v338
        %v427 = vunpack.c.h.b16 %v338
        %v428 = vunpack.c.l.b16 %v339
        %v429 = vunpack.c.l.b16 %v340
        %v430 = vunpack.c.h.b16 %v340
        %v431 = vunpack.c.l.b16 %v341
        %v432 = vunpack.c.l.b16 %v342
        %v433 = vunpack.c.h.b16 %v342
        %v434 = vunpack.c.l.b16 %v343
        %v435 = vunpack.c.l.b16 %v344
        %v436 = vunpack.c.h.b16 %v344
        %v437 = vunpack.c.l.b16 %v345
        %v438 = vunpack.c.l.b16 %v346
        %v439 = vunpack.c.h.b16 %v346
        %v440 = vunpack.c.l.b16 %v347
        %v441 = vunpack.c.l.b16 %v348
        %v442 = vunpack.c.h.b16 %v348
        %v443 = vunpack.c.l.b16 %v349
        %v444 = vunpack.c.l.b16 %v350
        %v445 = vunpack.c.h.b16 %v350
        %v446 = vunpack.c.l.b16 %v351
        %v447 = vunpack.c.l.b16 %v352
        %v448 = vunpack.c.h.b16 %v352
        %v449 = vunpack.c.l.b16 %v353
        %v450 = vunpack.c.l.b16 %v354
        %v451 = vunpack.c.h.b16 %v354
        %v452 = vunpack.c.l.b16 %v355
        %v453 = vpack.c.b16 %v408, %v405
        %v454 = vpack.c.b16 %v409, %v406
        %v455 = vpack.c.b16 %v410, %v407
        %v456 = vpack.c.b16 %v414, %v411
        %v457 = vpack.c.b16 %v415, %v412
        %v458 = vpack.c.b16 %v416, %v413
        %v459 = vpack.c.b16 %v420, %v417
        %v460 = vpack.c.b16 %v421, %v418
        %v461 = vpack.c.b16 %v422, %v419
        %v462 = vpack.c.b16 %v426, %v423
        %v463 = vpack.c.b16 %v427, %v424
        %v464 = vpack.c.b16 %v428, %v425
        %v465 = vpack.c.b16 %v432, %v429
        %v466 = vpack.c.b16 %v433, %v430
        %v467 = vpack.c.b16 %v434, %v431
        %v468 = vpack.c.b16 %v438, %v435
        %v469 = vpack.c.b16 %v439, %v436
        %v470 = vpack.c.b16 %v440, %v437
        %v471 = vpack.c.b16 %v444, %v441
        %v472 = vpack.c.b16 %v445, %v442
        %v473 = vpack.c.b16 %v446, %v443
        %v474 = vpack.c.b16 %v450, %v447
        %v475 = vpack.c.b16 %v451, %v448
        %v476 = vpack.c.b16 %v452, %v449
        %501 = vmatprep.subr.bf16.mxu0 %v475
        %502 = vmatpush1.bf16.msra.mxu0 %v474
        %503 = vmatprep.subr.bf16.mxu0 %v472
        %504 = vmatpush1.bf16.msra.mxu0 %v471
        %505 = vmatprep.subr.bf16.mxu0 %v469
        %506 = vmatpush1.bf16.msra.mxu0 %v468
        %507 = vmatprep.subr.bf16.mxu0 %v466
        %508 = vmatpush1.bf16.msra.mxu0 %v465
        %509 = vmatprep.subr.bf16.mxu0 %v463
        %510 = vmatpush1.bf16.msra.mxu0 %v462
        %511 = vmatprep.subr.bf16.mxu0 %v460
        %512 = vmatpush1.bf16.msra.mxu0 %v459
        %513 = vmatprep.subr.bf16.mxu0 %v457
        %514 = vmatpush1.bf16.msra.mxu0 %v456
        %515 = vmatprep.subr.bf16.mxu0 %v454
        %516 = vmatpush1.bf16.msra.mxu0 %v453
        %517 = vmatprep.subr.bf16.mxu0 0
        %518 = vmatpush2.bf16.msra.mxu0 0
        %519 = vmatprep.subr.bf16.mxu0 0
        %520 = vmatpush2.bf16.msra.mxu0 0
        %521 = vmatprep.subr.bf16.mxu0 0
        %522 = vmatpush2.bf16.msra.mxu0 0
        %523 = vmatprep.subr.bf16.mxu0 0
        %524 = vmatpush2.bf16.msra.mxu0 0
        %525 = vmatprep.subr.bf16.mxu0 0
        %526 = vmatpush2.bf16.msra.mxu0 0
        %527 = vmatprep.subr.bf16.mxu0 0
        %528 = vmatpush2.bf16.msra.mxu0 0
        %529 = vmatprep.subr.bf16.mxu0 0
        %530 = vmatpush2.bf16.msra.mxu0 0
        %531 = vmatprep.subr.bf16.mxu0 0
        %532 = vmatpush2.bf16.msra.mxu0 0
        %533 = vmatprep.mubr.bf16.mxu0 0
        %534 = vmatmul.mubr.bf16.gmra.mxu0 %v308
        %v535 = vpop.f32.mrf.mxu0
        %v536 = vadd.f32 %v361, %v535
        %v537 = vpop.f32.mrf.mxu0
        %v538 = vadd.f32 %v365, %v537
        %v539 = vpop.f32.mrf.mxu0
        %v540 = vadd.f32 %v361, %v539
        %v541 = vpop.f32.mrf.mxu0
        %v542 = vadd.f32 %v365, %v541
        %543 = vmatprep.mubr.bf16.mxu0 0
        %544 = vmatmul.mubr.bf16.gmra.mxu0 %v309
        %v545 = vpop.f32.mrf.mxu0
        %v546 = vadd.f32 %v361, %v545
        %v547 = vpop.f32.mrf.mxu0
        %v548 = vadd.f32 %v365, %v547
        %v549 = vpop.f32.mrf.mxu0
        %v550 = vadd.f32 %v361, %v549
        %v551 = vpop.f32.mrf.mxu0
        %v552 = vadd.f32 %v365, %v551
        %553 = vmatprep.mubr.bf16.mxu0 0
        %554 = vmatmul.mubr.bf16.gmra.mxu0 %v310
        %v555 = vpop.f32.mrf.mxu0
        %v556 = vadd.f32 %v361, %v555
        %v557 = vpop.f32.mrf.mxu0
        %v558 = vadd.f32 %v365, %v557
        %v559 = vpop.f32.mrf.mxu0
        %v560 = vadd.f32 %v361, %v559
        %v561 = vpop.f32.mrf.mxu0
        %v562 = vadd.f32 %v365, %v561
        %563 = vmatprep.mubr.bf16.mxu0 0
        %564 = vmatmul.mubr.bf16.gmra.mxu0 %v311
        %v565 = vpop.f32.mrf.mxu0
        %v566 = vadd.f32 %v361, %v565
        %v567 = vpop.f32.mrf.mxu0
        %v568 = vadd.f32 %v365, %v567
        %v569 = vpop.f32.mrf.mxu0
        %v570 = vadd.f32 %v361, %v569
        %v571 = vpop.f32.mrf.mxu0
        %v572 = vadd.f32 %v365, %v571
        %573 = vmatprep.mubr.bf16.mxu0 0
        %574 = vmatmul.mubr.bf16.gmra.mxu0 %v312
        %v575 = vpop.f32.mrf.mxu0
        %v576 = vadd.f32 %v361, %v575
        %v577 = vpop.f32.mrf.mxu0
        %v578 = vadd.f32 %v365, %v577
        %v579 = vpop.f32.mrf.mxu0
        %v580 = vadd.f32 %v361, %v579
        %v581 = vpop.f32.mrf.mxu0
        %v582 = vadd.f32 %v365, %v581
        %583 = vmatprep.mubr.bf16.mxu0 0
        %584 = vmatmul.mubr.bf16.gmra.mxu0 %v313
        %v585 = vpop.f32.mrf.mxu0
        %v586 = vadd.f32 %v361, %v585
        %v587 = vpop.f32.mrf.mxu0
        %v588 = vadd.f32 %v365, %v587
        %v589 = vpop.f32.mrf.mxu0
        %v590 = vadd.f32 %v361, %v589
        %v591 = vpop.f32.mrf.mxu0
        %v592 = vadd.f32 %v365, %v591
        %593 = vmatprep.mubr.bf16.mxu0 0
        %594 = vmatmul.mubr.bf16.gmra.mxu0 %v314
        %v595 = vpop.f32.mrf.mxu0
        %v596 = vadd.f32 %v361, %v595
        %v597 = vpop.f32.mrf.mxu0
        %v598 = vadd.f32 %v365, %v597
        %v599 = vpop.f32.mrf.mxu0
        %v600 = vadd.f32 %v361, %v599
        %v601 = vpop.f32.mrf.mxu0
        %v602 = vadd.f32 %v365, %v601
        %603 = vmatprep.mubr.bf16.mxu0 0
        %604 = vmatmul.mubr.bf16.gmra.mxu0 %v315
        %v605 = vpop.f32.mrf.mxu0
        %v606 = vadd.f32 %v361, %v605
        %v607 = vpop.f32.mrf.mxu0
        %v608 = vadd.f32 %v365, %v607
        %v609 = vpop.f32.mrf.mxu0
        %v610 = vadd.f32 %v361, %v609
        %v611 = vpop.f32.mrf.mxu0
        %v612 = vadd.f32 %v365, %v611
        %613 = vmatprep.mubr.bf16.mxu0 0
        %614 = vmatmul.mubr.bf16.gmra.mxu0 %v316
        %v615 = vpop.f32.mrf.mxu0
        %v616 = vadd.f32 %v361, %v615
        %v617 = vpop.f32.mrf.mxu0
        %v618 = vadd.f32 %v365, %v617
        %v619 = vpop.f32.mrf.mxu0
        %v620 = vadd.f32 %v361, %v619
        %v621 = vpop.f32.mrf.mxu0
        %v622 = vadd.f32 %v365, %v621
        %623 = vmatprep.mubr.bf16.mxu0 0
        %624 = vmatmul.mubr.bf16.gmra.mxu0 %v317
        %v625 = vpop.f32.mrf.mxu0
        %v626 = vadd.f32 %v361, %v625
        %v627 = vpop.f32.mrf.mxu0
        %v628 = vadd.f32 %v365, %v627
        %v629 = vpop.f32.mrf.mxu0
        %v630 = vadd.f32 %v361, %v629
        %v631 = vpop.f32.mrf.mxu0
        %v632 = vadd.f32 %v365, %v631
        %633 = vmatprep.mubr.bf16.mxu0 0
        %634 = vmatmul.mubr.bf16.gmra.mxu0 %v318
        %v635 = vpop.f32.mrf.mxu0
        %v636 = vadd.f32 %v361, %v635
        %v637 = vpop.f32.mrf.mxu0
        %v638 = vadd.f32 %v365, %v637
        %v639 = vpop.f32.mrf.mxu0
        %v640 = vadd.f32 %v361, %v639
        %v641 = vpop.f32.mrf.mxu0
        %v642 = vadd.f32 %v365, %v641
        %643 = vmatprep.mubr.bf16.mxu0 0
        %644 = vmatmul.mubr.bf16.gmra.mxu0 %v319
        %v645 = vpop.f32.mrf.mxu0
        %v646 = vadd.f32 %v361, %v645
        %v647 = vpop.f32.mrf.mxu0
        %v648 = vadd.f32 %v365, %v647
        %v649 = vpop.f32.mrf.mxu0
        %v650 = vadd.f32 %v361, %v649
        %v651 = vpop.f32.mrf.mxu0
        %v652 = vadd.f32 %v365, %v651
        %653 = vmatprep.mubr.bf16.mxu0 0
        %654 = vmatmul.mubr.bf16.gmra.mxu0 %v320
        %v655 = vpop.f32.mrf.mxu0
        %v656 = vadd.f32 %v361, %v655
        %v657 = vpop.f32.mrf.mxu0
        %v658 = vadd.f32 %v365, %v657
        %v659 = vpop.f32.mrf.mxu0
        %v660 = vadd.f32 %v361, %v659
        %v661 = vpop.f32.mrf.mxu0
        %v662 = vadd.f32 %v365, %v661
        %663 = vmatprep.mubr.bf16.mxu0 0
        %664 = vmatmul.mubr.bf16.gmra.mxu0 %v321
        %v665 = vpop.f32.mrf.mxu0
        %v666 = vadd.f32 %v361, %v665
        %v667 = vpop.f32.mrf.mxu0
        %v668 = vadd.f32 %v365, %v667
        %v669 = vpop.f32.mrf.mxu0
        %v670 = vadd.f32 %v361, %v669
        %v671 = vpop.f32.mrf.mxu0
        %v672 = vadd.f32 %v365, %v671
        %673 = vmatprep.mubr.bf16.mxu0 0
        %674 = vmatmul.mubr.bf16.gmra.mxu0 %v322
        %v675 = vpop.f32.mrf.mxu0
        %v676 = vadd.f32 %v361, %v675
        %v677 = vpop.f32.mrf.mxu0
        %v678 = vadd.f32 %v365, %v677
        %v679 = vpop.f32.mrf.mxu0
        %v680 = vadd.f32 %v361, %v679
        %v681 = vpop.f32.mrf.mxu0
        %v682 = vadd.f32 %v365, %v681
        %683 = vmatprep.mubr.bf16.mxu0 0
        %684 = vmatmul.mubr.bf16.gmra.mxu0 %v323
        %v685 = vpop.f32.mrf.mxu0
        %v686 = vadd.f32 %v361, %v685
        %v687 = vpop.f32.mrf.mxu0
        %v688 = vadd.f32 %v365, %v687
        %v689 = vpop.f32.mrf.mxu0
        %v690 = vadd.f32 %v361, %v689
        %v691 = vpop.f32.mrf.mxu0
        %v692 = vadd.f32 %v365, %v691
        %693 = vdwg.mxu0
        %694 = vmatprep.subr.bf16.mxu0 0
        %695 = vmatpush1.bf16.msra.mxu0 %v476
        %696 = vmatprep.subr.bf16.mxu0 0
        %697 = vmatpush1.bf16.msra.mxu0 %v473
        %698 = vmatprep.subr.bf16.mxu0 0
        %699 = vmatpush1.bf16.msra.mxu0 %v470
        %700 = vmatprep.subr.bf16.mxu0 0
        %701 = vmatpush1.bf16.msra.mxu0 %v467
        %702 = vmatprep.subr.bf16.mxu0 0
        %703 = vmatpush1.bf16.msra.mxu0 %v464
        %704 = vmatprep.subr.bf16.mxu0 0
        %705 = vmatpush1.bf16.msra.mxu0 %v461
        %706 = vmatprep.subr.bf16.mxu0 0
        %707 = vmatpush1.bf16.msra.mxu0 %v458
        %708 = vmatprep.subr.bf16.mxu0 0
        %709 = vmatpush1.bf16.msra.mxu0 %v455
        %710 = vmatprep.subr.bf16.mxu0 0
        %711 = vmatpush2.bf16.msra.mxu0 0
        %712 = vmatprep.subr.bf16.mxu0 0
        %713 = vmatpush2.bf16.msra.mxu0 0
        %714 = vmatprep.subr.bf16.mxu0 0
        %715 = vmatpush2.bf16.msra.mxu0 0
        %716 = vmatprep.subr.bf16.mxu0 0
        %717 = vmatpush2.bf16.msra.mxu0 0
        %718 = vmatprep.subr.bf16.mxu0 0
        %719 = vmatpush2.bf16.msra.mxu0 0
        %720 = vmatprep.subr.bf16.mxu0 0
        %721 = vmatpush2.bf16.msra.mxu0 0
        %722 = vmatprep.subr.bf16.mxu0 0
        %723 = vmatpush2.bf16.msra.mxu0 0
        %724 = vmatprep.subr.bf16.mxu0 0
        %725 = vmatpush2.bf16.msra.mxu0 0
        %726 = vmatprep.mubr.bf16.mxu0 0
        %727 = vmatmul.mubr.bf16.gmra.mxu0 %v308
        %v728 = vpop.f32.mrf.mxu0
        %v729 = vadd.f32 %v369, %v728
        %v730 = vpop.f32.mrf.mxu0
        %v731 = vpop.f32.mrf.mxu0
        %v732 = vadd.f32 %v369, %v731
        %v733 = vpop.f32.mrf.mxu0
        %734 = vmatprep.mubr.bf16.mxu0 0
        %735 = vmatmul.mubr.bf16.gmra.mxu0 %v309
        %v736 = vpop.f32.mrf.mxu0
        %v737 = vadd.f32 %v369, %v736
        %v738 = vpop.f32.mrf.mxu0
        %v739 = vpop.f32.mrf.mxu0
        %v740 = vadd.f32 %v369, %v739
        %v741 = vpop.f32.mrf.mxu0
        %742 = vmatprep.mubr.bf16.mxu0 0
        %743 = vmatmul.mubr.bf16.gmra.mxu0 %v310
        %v744 = vpop.f32.mrf.mxu0
        %v745 = vadd.f32 %v369, %v744
        %v746 = vpop.f32.mrf.mxu0
        %v747 = vpop.f32.mrf.mxu0
        %v748 = vadd.f32 %v369, %v747
        %v749 = vpop.f32.mrf.mxu0
        %750 = vmatprep.mubr.bf16.mxu0 0
        %751 = vmatmul.mubr.bf16.gmra.mxu0 %v311
        %v752 = vpop.f32.mrf.mxu0
        %v753 = vadd.f32 %v369, %v752
        %v754 = vpop.f32.mrf.mxu0
        %v755 = vpop.f32.mrf.mxu0
        %v756 = vadd.f32 %v369, %v755
        %v757 = vpop.f32.mrf.mxu0
        %758 = vmatprep.mubr.bf16.mxu0 0
        %759 = vmatmul.mubr.bf16.gmra.mxu0 %v312
        %v760 = vpop.f32.mrf.mxu0
        %v761 = vadd.f32 %v369, %v760
        %v762 = vpop.f32.mrf.mxu0
        %v763 = vpop.f32.mrf.mxu0
        %v764 = vadd.f32 %v369, %v763
        %v765 = vpop.f32.mrf.mxu0
        %766 = vmatprep.mubr.bf16.mxu0 0
        %767 = vmatmul.mubr.bf16.gmra.mxu0 %v313
        %v768 = vpop.f32.mrf.mxu0
        %v769 = vadd.f32 %v369, %v768
        %v770 = vpop.f32.mrf.mxu0
        %v771 = vpop.f32.mrf.mxu0
        %v772 = vadd.f32 %v369, %v771
        %v773 = vpop.f32.mrf.mxu0
        %774 = vmatprep.mubr.bf16.mxu0 0
        %775 = vmatmul.mubr.bf16.gmra.mxu0 %v314
        %v776 = vpop.f32.mrf.mxu0
        %v777 = vadd.f32 %v369, %v776
        %v778 = vpop.f32.mrf.mxu0
        %v779 = vpop.f32.mrf.mxu0
        %v780 = vadd.f32 %v369, %v779
        %v781 = vpop.f32.mrf.mxu0
        %782 = vmatprep.mubr.bf16.mxu0 0
        %783 = vmatmul.mubr.bf16.gmra.mxu0 %v315
        %v784 = vpop.f32.mrf.mxu0
        %v785 = vadd.f32 %v369, %v784
        %v786 = vpop.f32.mrf.mxu0
        %v787 = vpop.f32.mrf.mxu0
        %v788 = vadd.f32 %v369, %v787
        %v789 = vpop.f32.mrf.mxu0
        %790 = vmatprep.mubr.bf16.mxu0 0
        %791 = vmatmul.mubr.bf16.gmra.mxu0 %v316
        %v792 = vpop.f32.mrf.mxu0
        %v793 = vadd.f32 %v369, %v792
        %v794 = vpop.f32.mrf.mxu0
        %v795 = vpop.f32.mrf.mxu0
        %v796 = vadd.f32 %v369, %v795
        %v797 = vpop.f32.mrf.mxu0
        %798 = vmatprep.mubr.bf16.mxu0 0
        %799 = vmatmul.mubr.bf16.gmra.mxu0 %v317
        %v800 = vpop.f32.mrf.mxu0
        %v801 = vadd.f32 %v369, %v800
        %v802 = vpop.f32.mrf.mxu0
        %v803 = vpop.f32.mrf.mxu0
        %v804 = vadd.f32 %v369, %v803
        %v805 = vpop.f32.mrf.mxu0
        %806 = vmatprep.mubr.bf16.mxu0 0
        %807 = vmatmul.mubr.bf16.gmra.mxu0 %v318
        %v808 = vpop.f32.mrf.mxu0
        %v809 = vadd.f32 %v369, %v808
        %v810 = vpop.f32.mrf.mxu0
        %v811 = vpop.f32.mrf.mxu0
        %v812 = vadd.f32 %v369, %v811
        %v813 = vpop.f32.mrf.mxu0
        %814 = vmatprep.mubr.bf16.mxu0 0
        %815 = vmatmul.mubr.bf16.gmra.mxu0 %v319
        %v816 = vpop.f32.mrf.mxu0
        %v817 = vadd.f32 %v369, %v816
        %v818 = vpop.f32.mrf.mxu0
        %v819 = vpop.f32.mrf.mxu0
        %v820 = vadd.f32 %v369, %v819
        %v821 = vpop.f32.mrf.mxu0
        %822 = vmatprep.mubr.bf16.mxu0 0
        %823 = vmatmul.mubr.bf16.gmra.mxu0 %v320
        %v824 = vpop.f32.mrf.mxu0
        %v825 = vadd.f32 %v369, %v824
        %v826 = vpop.f32.mrf.mxu0
        %v827 = vpop.f32.mrf.mxu0
        %v828 = vadd.f32 %v369, %v827
        %v829 = vpop.f32.mrf.mxu0
        %830 = vmatprep.mubr.bf16.mxu0 0
        %831 = vmatmul.mubr.bf16.gmra.mxu0 %v321
        %v832 = vpop.f32.mrf.mxu0
        %v833 = vadd.f32 %v369, %v832
        %v834 = vpop.f32.mrf.mxu0
        %v835 = vpop.f32.mrf.mxu0
        %v836 = vadd.f32 %v369, %v835
        %v837 = vpop.f32.mrf.mxu0
        %838 = vmatprep.mubr.bf16.mxu0 0
        %839 = vmatmul.mubr.bf16.gmra.mxu0 %v322
        %v840 = vpop.f32.mrf.mxu0
        %v841 = vadd.f32 %v369, %v840
        %v842 = vpop.f32.mrf.mxu0
        %v843 = vpop.f32.mrf.mxu0
        %v844 = vadd.f32 %v369, %v843
        %v845 = vpop.f32.mrf.mxu0
        %846 = vmatprep.mubr.bf16.mxu0 0
        %847 = vmatmul.mubr.bf16.gmra.mxu0 %v323
        %v848 = vpop.f32.mrf.mxu0
        %v849 = vadd.f32 %v369, %v848
        %v850 = vpop.f32.mrf.mxu0
        %v851 = vpop.f32.mrf.mxu0
        %v852 = vadd.f32 %v369, %v851
        %v853 = vpop.f32.mrf.mxu0
        %854 = vdwg.mxu0
        %v855 = vrot.slane %v538, 5
        %v856 = vrot.slane %v729, 5
        %v857 = vrot.slane %v548, 5
        %v858 = vrot.slane %v737, 5
        %v859 = vrot.slane %v558, 5
        %v860 = vrot.slane %v745, 5
        %v861 = vrot.slane %v568, 5
        %v862 = vrot.slane %v753, 5
        %v863 = vrot.slane %v578, 5
        %v864 = vrot.slane %v761, 5
        %v865 = vrot.slane %v588, 5
        %v866 = vrot.slane %v769, 5
        %v867 = vrot.slane %v598, 5
        %v868 = vrot.slane %v777, 5
        %v869 = vrot.slane %v608, 5
        %v870 = vrot.slane %v785, 5
        %v871 = vrot.slane %v618, 5
        %v872 = vrot.slane %v793, 5
        %v873 = vrot.slane %v628, 5
        %v874 = vrot.slane %v801, 5
        %v875 = vrot.slane %v638, 5
        %v876 = vrot.slane %v809, 5
        %v877 = vrot.slane %v648, 5
        %v878 = vrot.slane %v817, 5
        %v879 = vrot.slane %v658, 5
        %v880 = vrot.slane %v825, 5
        %v881 = vrot.slane %v668, 5
        %v882 = vrot.slane %v833, 5
        %v883 = vrot.slane %v678, 5
        %v884 = vrot.slane %v841, 5
        %v885 = vrot.slane %v688, 5
        %v886 = vrot.slane %v849, 5
        %v887 = vrot.slane %v542, 5
        %v888 = vrot.slane %v732, 5
        %v889 = vrot.slane %v552, 5
        %v890 = vrot.slane %v740, 5
        %v891 = vrot.slane %v562, 5
        %v892 = vrot.slane %v748, 5
        %v893 = vrot.slane %v572, 5
        %v894 = vrot.slane %v756, 5
        %v895 = vrot.slane %v582, 5
        %v896 = vrot.slane %v764, 5
        %v897 = vrot.slane %v592, 5
        %v898 = vrot.slane %v772, 5
        %v899 = vrot.slane %v602, 5
        %v900 = vrot.slane %v780, 5
        %v901 = vrot.slane %v612, 5
        %v902 = vrot.slane %v788, 5
        %v903 = vrot.slane %v622, 5
        %v904 = vrot.slane %v796, 5
        %v905 = vrot.slane %v632, 5
        %v906 = vrot.slane %v804, 5
        %v907 = vrot.slane %v642, 5
        %v908 = vrot.slane %v812, 5
        %v909 = vrot.slane %v652, 5
        %v910 = vrot.slane %v820, 5
        %v911 = vrot.slane %v662, 5
        %v912 = vrot.slane %v828, 5
        %v913 = vrot.slane %v672, 5
        %v914 = vrot.slane %v836, 5
        %v915 = vrot.slane %v682, 5
        %v916 = vrot.slane %v844, 5
        %v917 = vrot.slane %v692, 5
        %v918 = vrot.slane %v852, 5
        %v919 = vlaneseq
        %v920 = vshrl.u32 %v919, 7
        %vm921 = vcmp.lt.s32.totalorder %v920, 3
        %v922 = vsel %vm921, %v855, %v887
        %v923 = vsel %vm921, %v856, %v888
        %v924 = vsel %vm921, %v857, %v889
        %v925 = vsel %vm921, %v858, %v890
        %v926 = vsel %vm921, %v859, %v891
        %v927 = vsel %vm921, %v860, %v892
        %v928 = vsel %vm921, %v861, %v893
        %v929 = vsel %vm921, %v862, %v894
        %v930 = vsel %vm921, %v863, %v895
        %v931 = vsel %vm921, %v864, %v896
        %v932 = vsel %vm921, %v865, %v897
        %v933 = vsel %vm921, %v866, %v898
        %v934 = vsel %vm921, %v867, %v899
        %v935 = vsel %vm921, %v868, %v900
        %v936 = vsel %vm921, %v869, %v901
        %v937 = vsel %vm921, %v870, %v902
        %v938 = vsel %vm921, %v871, %v903
        %v939 = vsel %vm921, %v872, %v904
        %v940 = vsel %vm921, %v873, %v905
        %v941 = vsel %vm921, %v874, %v906
        %v942 = vsel %vm921, %v875, %v907
        %v943 = vsel %vm921, %v876, %v908
        %v944 = vsel %vm921, %v877, %v909
        %v945 = vsel %vm921, %v878, %v910
        %v946 = vsel %vm921, %v879, %v911
        %v947 = vsel %vm921, %v880, %v912
        %v948 = vsel %vm921, %v881, %v913
        %v949 = vsel %vm921, %v882, %v914
        %v950 = vsel %vm921, %v883, %v915
        %v951 = vsel %vm921, %v884, %v916
        %v952 = vsel %vm921, %v885, %v917
        %v953 = vsel %vm921, %v886, %v918
        %v954 = vsel %vm921, %v887, %v855
        %v955 = vsel %vm921, %v888, %v856
        %v956 = vsel %vm921, %v889, %v857
        %v957 = vsel %vm921, %v890, %v858
        %v958 = vsel %vm921, %v891, %v859
        %v959 = vsel %vm921, %v892, %v860
        %v960 = vsel %vm921, %v893, %v861
        %v961 = vsel %vm921, %v894, %v862
        %v962 = vsel %vm921, %v895, %v863
        %v963 = vsel %vm921, %v896, %v864
        %v964 = vsel %vm921, %v897, %v865
        %v965 = vsel %vm921, %v898, %v866
        %v966 = vsel %vm921, %v899, %v867
        %v967 = vsel %vm921, %v900, %v868
        %v968 = vsel %vm921, %v901, %v869
        %v969 = vsel %vm921, %v902, %v870
        %v970 = vsel %vm921, %v903, %v871
        %v971 = vsel %vm921, %v904, %v872
        %v972 = vsel %vm921, %v905, %v873
        %v973 = vsel %vm921, %v906, %v874
        %v974 = vsel %vm921, %v907, %v875
        %v975 = vsel %vm921, %v908, %v876
        %v976 = vsel %vm921, %v909, %v877
        %v977 = vsel %vm921, %v910, %v878
        %v978 = vsel %vm921, %v911, %v879
        %v979 = vsel %vm921, %v912, %v880
        %v980 = vsel %vm921, %v913, %v881
        %v981 = vsel %vm921, %v914, %v882
        %v982 = vsel %vm921, %v915, %v883
        %v983 = vsel %vm921, %v916, %v884
        %v984 = vsel %vm921, %v917, %v885
        %v985 = vsel %vm921, %v918, %v886
        %v986 = vadd.s32 %v920, 8
        %vm987 = vcmp.lt.s32.totalorder %v986, 3
        %v988 = vlaneseq
        %v989 = vshrl.u32 %v988, 7
        %v990 = vsub.s32 0, %v989
        %v991 = vrot.slane %v538, %v990
        %v992 = vlaneseq
        %v993 = vshrl.u32 %v992, 7
        %v994 = vsub.s32 0, %v993
        %v995 = vrot.slane %v729, %v994
        %v996 = vlaneseq
        %v997 = vshrl.u32 %v996, 7
        %v998 = vsub.s32 0, %v997
        %v999 = vrot.slane %v548, %v998
        %v1000 = vlaneseq
        %v1001 = vshrl.u32 %v1000, 7
        %v1002 = vsub.s32 0, %v1001
        %v1003 = vrot.slane %v737, %v1002
        %v1004 = vlaneseq
        %v1005 = vshrl.u32 %v1004, 7
        %v1006 = vsub.s32 0, %v1005
        %v1007 = vrot.slane %v558, %v1006
        %v1008 = vlaneseq
        %v1009 = vshrl.u32 %v1008, 7
        %v1010 = vsub.s32 0, %v1009
        %v1011 = vrot.slane %v745, %v1010
        %v1012 = vlaneseq
        %v1013 = vshrl.u32 %v1012, 7
        %v1014 = vsub.s32 0, %v1013
        %v1015 = vrot.slane %v568, %v1014
        %v1016 = vlaneseq
        %v1017 = vshrl.u32 %v1016, 7
        %v1018 = vsub.s32 0, %v1017
        %v1019 = vrot.slane %v753, %v1018
        %v1020 = vlaneseq
        %v1021 = vshrl.u32 %v1020, 7
        %v1022 = vsub.s32 0, %v1021
        %v1023 = vrot.slane %v578, %v1022
        %v1024 = vlaneseq
        %v1025 = vshrl.u32 %v1024, 7
        %v1026 = vsub.s32 0, %v1025
        %v1027 = vrot.slane %v761, %v1026
        %v1028 = vlaneseq
        %v1029 = vshrl.u32 %v1028, 7
        %v1030 = vsub.s32 0, %v1029
        %v1031 = vrot.slane %v588, %v1030
        %v1032 = vlaneseq
        %v1033 = vshrl.u32 %v1032, 7
        %v1034 = vsub.s32 0, %v1033
        %v1035 = vrot.slane %v769, %v1034
        %v1036 = vlaneseq
        %v1037 = vshrl.u32 %v1036, 7
        %v1038 = vsub.s32 0, %v1037
        %v1039 = vrot.slane %v598, %v1038
        %v1040 = vlaneseq
        %v1041 = vshrl.u32 %v1040, 7
        %v1042 = vsub.s32 0, %v1041
        %v1043 = vrot.slane %v777, %v1042
        %v1044 = vlaneseq
        %v1045 = vshrl.u32 %v1044, 7
        %v1046 = vsub.s32 0, %v1045
        %v1047 = vrot.slane %v608, %v1046
        %v1048 = vlaneseq
        %v1049 = vshrl.u32 %v1048, 7
        %v1050 = vsub.s32 0, %v1049
        %v1051 = vrot.slane %v785, %v1050
        %v1052 = vlaneseq
        %v1053 = vshrl.u32 %v1052, 7
        %v1054 = vsub.s32 0, %v1053
        %v1055 = vrot.slane %v618, %v1054
        %v1056 = vlaneseq
        %v1057 = vshrl.u32 %v1056, 7
        %v1058 = vsub.s32 0, %v1057
        %v1059 = vrot.slane %v793, %v1058
        %v1060 = vlaneseq
        %v1061 = vshrl.u32 %v1060, 7
        %v1062 = vsub.s32 0, %v1061
        %v1063 = vrot.slane %v628, %v1062
        %v1064 = vlaneseq
        %v1065 = vshrl.u32 %v1064, 7
        %v1066 = vsub.s32 0, %v1065
        %v1067 = vrot.slane %v801, %v1066
        %v1068 = vlaneseq
        %v1069 = vshrl.u32 %v1068, 7
        %v1070 = vsub.s32 0, %v1069
        %v1071 = vrot.slane %v638, %v1070
        %v1072 = vlaneseq
        %v1073 = vshrl.u32 %v1072, 7
        %v1074 = vsub.s32 0, %v1073
        %v1075 = vrot.slane %v809, %v1074
        %v1076 = vlaneseq
        %v1077 = vshrl.u32 %v1076, 7
        %v1078 = vsub.s32 0, %v1077
        %v1079 = vrot.slane %v648, %v1078
        %v1080 = vlaneseq
        %v1081 = vshrl.u32 %v1080, 7
        %v1082 = vsub.s32 0, %v1081
        %v1083 = vrot.slane %v817, %v1082
        %v1084 = vlaneseq
        %v1085 = vshrl.u32 %v1084, 7
        %v1086 = vsub.s32 0, %v1085
        %v1087 = vrot.slane %v658, %v1086
        %v1088 = vlaneseq
        %v1089 = vshrl.u32 %v1088, 7
        %v1090 = vsub.s32 0, %v1089
        %v1091 = vrot.slane %v825, %v1090
        %v1092 = vlaneseq
        %v1093 = vshrl.u32 %v1092, 7
        %v1094 = vsub.s32 0, %v1093
        %v1095 = vrot.slane %v668, %v1094
        %v1096 = vlaneseq
        %v1097 = vshrl.u32 %v1096, 7
        %v1098 = vsub.s32 0, %v1097
        %v1099 = vrot.slane %v833, %v1098
        %v1100 = vlaneseq
        %v1101 = vshrl.u32 %v1100, 7
        %v1102 = vsub.s32 0, %v1101
        %v1103 = vrot.slane %v678, %v1102
        %v1104 = vlaneseq
        %v1105 = vshrl.u32 %v1104, 7
        %v1106 = vsub.s32 0, %v1105
        %v1107 = vrot.slane %v841, %v1106
        %v1108 = vlaneseq
        %v1109 = vshrl.u32 %v1108, 7
        %v1110 = vsub.s32 0, %v1109
        %v1111 = vrot.slane %v688, %v1110
        %v1112 = vlaneseq
        %v1113 = vshrl.u32 %v1112, 7
        %v1114 = vsub.s32 0, %v1113
        %v1115 = vrot.slane %v849, %v1114
        %v1116 = vsel %vm921, %v991, %v954
        %v1117 = vsel %vm921, %v995, %v955
        %v1118 = vsel %vm987, %v991, %v922
        %v1119 = vsel %vm987, %v995, %v923
        %v1120 = vsel %vm921, %v999, %v956
        %v1121 = vsel %vm921, %v1003, %v957
        %v1122 = vsel %vm987, %v999, %v924
        %v1123 = vsel %vm987, %v1003, %v925
        %v1124 = vsel %vm921, %v1007, %v958
        %v1125 = vsel %vm921, %v1011, %v959
        %v1126 = vsel %vm987, %v1007, %v926
        %v1127 = vsel %vm987, %v1011, %v927
        %v1128 = vsel %vm921, %v1015, %v960
        %v1129 = vsel %vm921, %v1019, %v961
        %v1130 = vsel %vm987, %v1015, %v928
        %v1131 = vsel %vm987, %v1019, %v929
        %v1132 = vsel %vm921, %v1023, %v962
        %v1133 = vsel %vm921, %v1027, %v963
        %v1134 = vsel %vm987, %v1023, %v930
        %v1135 = vsel %vm987, %v1027, %v931
        %v1136 = vsel %vm921, %v1031, %v964
        %v1137 = vsel %vm921, %v1035, %v965
        %v1138 = vsel %vm987, %v1031, %v932
        %v1139 = vsel %vm987, %v1035, %v933
        %v1140 = vsel %vm921, %v1039, %v966
        %v1141 = vsel %vm921, %v1043, %v967
        %v1142 = vsel %vm987, %v1039, %v934
        %v1143 = vsel %vm987, %v1043, %v935
        %v1144 = vsel %vm921, %v1047, %v968
        %v1145 = vsel %vm921, %v1051, %v969
        %v1146 = vsel %vm987, %v1047, %v936
        %v1147 = vsel %vm987, %v1051, %v937
        %v1148 = vsel %vm921, %v1055, %v970
        %v1149 = vsel %vm921, %v1059, %v971
        %v1150 = vsel %vm987, %v1055, %v938
        %v1151 = vsel %vm987, %v1059, %v939
        %v1152 = vsel %vm921, %v1063, %v972
        %v1153 = vsel %vm921, %v1067, %v973
        %v1154 = vsel %vm987, %v1063, %v940
        %v1155 = vsel %vm987, %v1067, %v941
        %v1156 = vsel %vm921, %v1071, %v974
        %v1157 = vsel %vm921, %v1075, %v975
        %v1158 = vsel %vm987, %v1071, %v942
        %v1159 = vsel %vm987, %v1075, %v943
        %v1160 = vsel %vm921, %v1079, %v976
        %v1161 = vsel %vm921, %v1083, %v977
        %v1162 = vsel %vm987, %v1079, %v944
        %v1163 = vsel %vm987, %v1083, %v945
        %v1164 = vsel %vm921, %v1087, %v978
        %v1165 = vsel %vm921, %v1091, %v979
        %v1166 = vsel %vm987, %v1087, %v946
        %v1167 = vsel %vm987, %v1091, %v947
        %v1168 = vsel %vm921, %v1095, %v980
        %v1169 = vsel %vm921, %v1099, %v981
        %v1170 = vsel %vm987, %v1095, %v948
        %v1171 = vsel %vm987, %v1099, %v949
        %v1172 = vsel %vm921, %v1103, %v982
        %v1173 = vsel %vm921, %v1107, %v983
        %v1174 = vsel %vm987, %v1103, %v950
        %v1175 = vsel %vm987, %v1107, %v951
        %v1176 = vsel %vm921, %v1111, %v984
        %v1177 = vsel %vm921, %v1115, %v985
        %v1178 = vsel %vm987, %v1111, %v952
        %v1179 = vsel %vm987, %v1115, %v953
        %v1180 = vpack.c.bf16 %v1118, %v1116
        %v1181 = vpack.c.bf16 %v1122, %v1120
        %v1182 = vpack.c.bf16 %v1126, %v1124
        %v1183 = vpack.c.bf16 %v1130, %v1128
        %v1184 = vpack.c.bf16 %v1134, %v1132
        %v1185 = vpack.c.bf16 %v1138, %v1136
        %v1186 = vpack.c.bf16 %v1142, %v1140
        %v1187 = vpack.c.bf16 %v1146, %v1144
        %v1188 = vpack.c.bf16 %v1150, %v1148
        %v1189 = vpack.c.bf16 %v1154, %v1152
        %v1190 = vpack.c.bf16 %v1158, %v1156
        %v1191 = vpack.c.bf16 %v1162, %v1160
        %v1192 = vpack.c.bf16 %v1166, %v1164
        %v1193 = vpack.c.bf16 %v1170, %v1168
        %v1194 = vpack.c.bf16 %v1174, %v1172
        %v1195 = vpack.c.bf16 %v1178, %v1176
        %v1196 = vpack.c.bf16 %v1119, %v1117
        %v1197 = vpack.c.bf16 %v1123, %v1121
        %v1198 = vpack.c.bf16 %v1127, %v1125
        %v1199 = vpack.c.bf16 %v1131, %v1129
        %v1200 = vpack.c.bf16 %v1135, %v1133
        %v1201 = vpack.c.bf16 %v1139, %v1137
        %v1202 = vpack.c.bf16 %v1143, %v1141
        %v1203 = vpack.c.bf16 %v1147, %v1145
        %v1204 = vpack.c.bf16 %v1151, %v1149
        %v1205 = vpack.c.bf16 %v1155, %v1153
        %v1206 = vpack.c.bf16 %v1159, %v1157
        %v1207 = vpack.c.bf16 %v1163, %v1161
        %v1208 = vpack.c.bf16 %v1167, %v1165
        %v1209 = vpack.c.bf16 %v1171, %v1169
        %v1210 = vpack.c.bf16 %v1175, %v1173
        %v1211 = vpack.c.bf16 %v1179, %v1177
        %v1212 = vpack.c.bf16 %v540, %v536
        %v1213 = vpack.c.bf16 %v550, %v546
        %v1214 = vpack.c.bf16 %v560, %v556
        %v1215 = vpack.c.bf16 %v570, %v566
        %v1216 = vpack.c.bf16 %v580, %v576
        %v1217 = vpack.c.bf16 %v590, %v586
        %v1218 = vpack.c.bf16 %v600, %v596
        %v1219 = vpack.c.bf16 %v610, %v606
        %v1220 = vpack.c.bf16 %v620, %v616
        %v1221 = vpack.c.bf16 %v630, %v626
        %v1222 = vpack.c.bf16 %v640, %v636
        %v1223 = vpack.c.bf16 %v650, %v646
        %v1224 = vpack.c.bf16 %v660, %v656
        %v1225 = vpack.c.bf16 %v670, %v666
        %v1226 = vpack.c.bf16 %v680, %v676
        %v1227 = vpack.c.bf16 %v690, %v686
        %1228 = vmatprep.subr.bf16.mxu0 0
        %1229 = vmatpush1.bf16.xpose.msra.mxu0 0
        %1230 = vmatprep.subr.bf16.mxu0 0
        %1231 = vmatpush1.bf16.xpose.msra.mxu0 0
        %1232 = vmatprep.subr.bf16.mxu0 0
        %1233 = vmatpush1.bf16.xpose.msra.mxu0 0
        %1234 = vmatprep.subr.bf16.mxu0 0
        %1235 = vmatpush1.bf16.xpose.msra.mxu0 0
        %1236 = vmatprep.subr.bf16.mxu0 0
        %1237 = vmatpush1.bf16.xpose.msra.mxu0 0
        %1238 = vmatprep.subr.bf16.mxu0 0
        %1239 = vmatpush1.bf16.xpose.msra.mxu0 0
        %1240 = vmatprep.subr.bf16.mxu0 0
        %1241 = vmatpush1.bf16.xpose.msra.mxu0 0
        %1242 = vmatprep.subr.bf16.mxu0 0
        %1243 = vmatpush1.bf16.xpose.msra.mxu0 %v1180
        %1244 = vmatprep.subr.bf16.mxu0 0
        %1245 = vmatpush2.bf16.xpose.msra.mxu0 0
        %1246 = vmatprep.subr.bf16.mxu0 0
        %1247 = vmatpush2.bf16.xpose.msra.mxu0 0
        %1248 = vmatprep.subr.bf16.mxu0 0
        %1249 = vmatpush2.bf16.xpose.msra.mxu0 0
        %1250 = vmatprep.subr.bf16.mxu0 0
        %1251 = vmatpush2.bf16.xpose.msra.mxu0 0
        %1252 = vmatprep.subr.bf16.mxu0 0
        %1253 = vmatpush2.bf16.xpose.msra.mxu0 0
        %1254 = vmatprep.subr.bf16.mxu0 0
        %1255 = vmatpush2.bf16.xpose.msra.mxu0 0
        %1256 = vmatprep.subr.bf16.mxu0 0
        %1257 = vmatpush2.bf16.xpose.msra.mxu0 0
        %1258 = vmatprep.subr.bf16.mxu0 0
        %1259 = vmatpush2.bf16.xpose.msra.mxu0 0
        %1260 = vmatprep.mubr.bf16.mxu0 0
        %1261 = vmatmul.mubr.bf16.gmra.mxu0 %v1212
        %v1262 = vpop.f32.mrf.mxu0
        %v1263 = vadd.f32 0.0, %v1262
        %v1264 = vpop.f32.mrf.mxu0
        %v1265 = vpop.f32.mrf.mxu0
        %v1266 = vadd.f32 0.0, %v1265
        %v1267 = vpop.f32.mrf.mxu0
        %1268 = vdwg.mxu0
        %1269 = vmatprep.subr.bf16.mxu0 0
        %1270 = vmatpush1.bf16.xpose.msra.mxu0 0
        %1271 = vmatprep.subr.bf16.mxu0 0
        %1272 = vmatpush1.bf16.xpose.msra.mxu0 0
        %1273 = vmatprep.subr.bf16.mxu0 0
        %1274 = vmatpush1.bf16.xpose.msra.mxu0 0
        %1275 = vmatprep.subr.bf16.mxu0 0
        %1276 = vmatpush1.bf16.xpose.msra.mxu0 0
        %1277 = vmatprep.subr.bf16.mxu0 0
        %1278 = vmatpush1.bf16.xpose.msra.mxu0 0
        %1279 = vmatprep.subr.bf16.mxu0 0
        %1280 = vmatpush1.bf16.xpose.msra.mxu0 0
        %1281 = vmatprep.subr.bf16.mxu0 0
        %1282 = vmatpush1.bf16.xpose.msra.mxu0 0
        %1283 = vmatprep.subr.bf16.mxu0 0
        %1284 = vmatpush1.bf16.xpose.msra.mxu0 %v1181
        %1285 = vmatprep.subr.bf16.mxu0 0
        %1286 = vmatpush2.bf16.xpose.msra.mxu0 0
        %1287 = vmatprep.subr.bf16.mxu0 0
        %1288 = vmatpush2.bf16.xpose.msra.mxu0 0
        %1289 = vmatprep.subr.bf16.mxu0 0
        %1290 = vmatpush2.bf16.xpose.msra.mxu0 0
        %1291 = vmatprep.subr.bf16.mxu0 0
        %1292 = vmatpush2.bf16.xpose.msra.mxu0 0
        %1293 = vmatprep.subr.bf16.mxu0 0
        %1294 = vmatpush2.bf16.xpose.msra.mxu0 0
        %1295 = vmatprep.subr.bf16.mxu0 0
        %1296 = vmatpush2.bf16.xpose.msra.mxu0 0
        %1297 = vmatprep.subr.bf16.mxu0 0
        %1298 = vmatpush2.bf16.xpose.msra.mxu0 0
        %1299 = vmatprep.subr.bf16.mxu0 0
        %1300 = vmatpush2.bf16.xpose.msra.mxu0 0
        %1301 = vmatprep.mubr.bf16.mxu0 0
        %1302 = vmatmul.mubr.bf16.gmra.mxu0 %v1213
        %v1303 = vpop.f32.mrf.mxu0
        %v1304 = vadd.f32 0.0, %v1303
        %v1305 = vpop.f32.mrf.mxu0
        %v1306 = vpop.f32.mrf.mxu0
        %v1307 = vadd.f32 0.0, %v1306
        %v1308 = vpop.f32.mrf.mxu0
        %1309 = vdwg.mxu0
        %1310 = vmatprep.subr.bf16.mxu0 0
        %1311 = vmatpush1.bf16.xpose.msra.mxu0 0
        %1312 = vmatprep.subr.bf16.mxu0 0
        %1313 = vmatpush1.bf16.xpose.msra.mxu0 0
        %1314 = vmatprep.subr.bf16.mxu0 0
        %1315 = vmatpush1.bf16.xpose.msra.mxu0 0
        %1316 = vmatprep.subr.bf16.mxu0 0
        %1317 = vmatpush1.bf16.xpose.msra.mxu0 0
        %1318 = vmatprep.subr.bf16.mxu0 0
        %1319 = vmatpush1.bf16.xpose.msra.mxu0 0
        %1320 = vmatprep.subr.bf16.mxu0 0
        %1321 = vmatpush1.bf16.xpose.msra.mxu0 0
        %1322 = vmatprep.subr.bf16.mxu0 0
        %1323 = vmatpush1.bf16.xpose.msra.mxu0 0
        %1324 = vmatprep.subr.bf16.mxu0 0
        %1325 = vmatpush1.bf16.xpose.msra.mxu0 %v1182
        %1326 = vmatprep.subr.bf16.mxu0 0
        %1327 = vmatpush2.bf16.xpose.msra.mxu0 0
        %1328 = vmatprep.subr.bf16.mxu0 0
        %1329 = vmatpush2.bf16.xpose.msra.mxu0 0
        %1330 = vmatprep.subr.bf16.mxu0 0
        %1331 = vmatpush2.bf16.xpose.msra.mxu0 0
        %1332 = vmatprep.subr.bf16.mxu0 0
        %1333 = vmatpush2.bf16.xpose.msra.mxu0 0
        %1334 = vmatprep.subr.bf16.mxu0 0
        %1335 = vmatpush2.bf16.xpose.msra.mxu0 0
        %1336 = vmatprep.subr.bf16.mxu0 0
        %1337 = vmatpush2.bf16.xpose.msra.mxu0 0
        %1338 = vmatprep.subr.bf16.mxu0 0
        %1339 = vmatpush2.bf16.xpose.msra.mxu0 0
        %1340 = vmatprep.subr.bf16.mxu0 0
        %1341 = vmatpush2.bf16.xpose.msra.mxu0 0
        %1342 = vmatprep.mubr.bf16.mxu0 0
        %1343 = vmatmul.mubr.bf16.gmra.mxu0 %v1214
        %v1344 = vpop.f32.mrf.mxu0
        %v1345 = vadd.f32 0.0, %v1344
        %v1346 = vpop.f32.mrf.mxu0
        %v1347 = vpop.f32.mrf.mxu0
        %v1348 = vadd.f32 0.0, %v1347
        %v1349 = vpop.f32.mrf.mxu0
        %1350 = vdwg.mxu0
        %1351 = vmatprep.subr.bf16.mxu0 0
        %1352 = vmatpush1.bf16.xpose.msra.mxu0 0
        %1353 = vmatprep.subr.bf16.mxu0 0
        %1354 = vmatpush1.bf16.xpose.msra.mxu0 0
        %1355 = vmatprep.subr.bf16.mxu0 0
        %1356 = vmatpush1.bf16.xpose.msra.mxu0 0
        %1357 = vmatprep.subr.bf16.mxu0 0
        %1358 = vmatpush1.bf16.xpose.msra.mxu0 0
        %1359 = vmatprep.subr.bf16.mxu0 0
        %1360 = vmatpush1.bf16.xpose.msra.mxu0 0
        %1361 = vmatprep.subr.bf16.mxu0 0
        %1362 = vmatpush1.bf16.xpose.msra.mxu0 0
        %1363 = vmatprep.subr.bf16.mxu0 0
        %1364 = vmatpush1.bf16.xpose.msra.mxu0 0
        %1365 = vmatprep.subr.bf16.mxu0 0
        %1366 = vmatpush1.bf16.xpose.msra.mxu0 %v1183
        %1367 = vmatprep.subr.bf16.mxu0 0
        %1368 = vmatpush2.bf16.xpose.msra.mxu0 0
        %1369 = vmatprep.subr.bf16.mxu0 0
        %1370 = vmatpush2.bf16.xpose.msra.mxu0 0
        %1371 = vmatprep.subr.bf16.mxu0 0
        %1372 = vmatpush2.bf16.xpose.msra.mxu0 0
        %1373 = vmatprep.subr.bf16.mxu0 0
        %1374 = vmatpush2.bf16.xpose.msra.mxu0 0
        %1375 = vmatprep.subr.bf16.mxu0 0
        %1376 = vmatpush2.bf16.xpose.msra.mxu0 0
        %1377 = vmatprep.subr.bf16.mxu0 0
        %1378 = vmatpush2.bf16.xpose.msra.mxu0 0
        %1379 = vmatprep.subr.bf16.mxu0 0
        %1380 = vmatpush2.bf16.xpose.msra.mxu0 0
        %1381 = vmatprep.subr.bf16.mxu0 0
        %1382 = vmatpush2.bf16.xpose.msra.mxu0 0
        %1383 = vmatprep.mubr.bf16.mxu0 0
        %1384 = vmatmul.mubr.bf16.gmra.mxu0 %v1215
        %v1385 = vpop.f32.mrf.mxu0
        %v1386 = vadd.f32 0.0, %v1385
        %v1387 = vpop.f32.mrf.mxu0
        %v1388 = vpop.f32.mrf.mxu0
        %v1389 = vadd.f32 0.0, %v1388
        %v1390 = vpop.f32.mrf.mxu0
        %1391 = vdwg.mxu0
        %1392 = vmatprep.subr.bf16.mxu0 0
        %1393 = vmatpush1.bf16.xpose.msra.mxu0 0
        %1394 = vmatprep.subr.bf16.mxu0 0
        %1395 = vmatpush1.bf16.xpose.msra.mxu0 0
        %1396 = vmatprep.subr.bf16.mxu0 0
        %1397 = vmatpush1.bf16.xpose.msra.mxu0 0
        %1398 = vmatprep.subr.bf16.mxu0 0
        %1399 = vmatpush1.bf16.xpose.msra.mxu0 0
        %1400 = vmatprep.subr.bf16.mxu0 0
        %1401 = vmatpush1.bf16.xpose.msra.mxu0 0
        %1402 = vmatprep.subr.bf16.mxu0 0
        %1403 = vmatpush1.bf16.xpose.msra.mxu0 0
        %1404 = vmatprep.subr.bf16.mxu0 0
        %1405 = vmatpush1.bf16.xpose.msra.mxu0 0
        %1406 = vmatprep.subr.bf16.mxu0 0
        %1407 = vmatpush1.bf16.xpose.msra.mxu0 %v1184
        %1408 = vmatprep.subr.bf16.mxu0 0
        %1409 = vmatpush2.bf16.xpose.msra.mxu0 0
        %1410 = vmatprep.subr.bf16.mxu0 0
        %1411 = vmatpush2.bf16.xpose.msra.mxu0 0
        %1412 = vmatprep.subr.bf16.mxu0 0
        %1413 = vmatpush2.bf16.xpose.msra.mxu0 0
        %1414 = vmatprep.subr.bf16.mxu0 0
        %1415 = vmatpush2.bf16.xpose.msra.mxu0 0
        %1416 = vmatprep.subr.bf16.mxu0 0
        %1417 = vmatpush2.bf16.xpose.msra.mxu0 0
        %1418 = vmatprep.subr.bf16.mxu0 0
        %1419 = vmatpush2.bf16.xpose.msra.mxu0 0
        %1420 = vmatprep.subr.bf16.mxu0 0
        %1421 = vmatpush2.bf16.xpose.msra.mxu0 0
        %1422 = vmatprep.subr.bf16.mxu0 0
        %1423 = vmatpush2.bf16.xpose.msra.mxu0 0
        %1424 = vmatprep.mubr.bf16.mxu0 0
        %1425 = vmatmul.mubr.bf16.gmra.mxu0 %v1216
        %v1426 = vpop.f32.mrf.mxu0
        %v1427 = vadd.f32 0.0, %v1426
        %v1428 = vpop.f32.mrf.mxu0
        %v1429 = vpop.f32.mrf.mxu0
        %v1430 = vadd.f32 0.0, %v1429
        %v1431 = vpop.f32.mrf.mxu0
        %1432 = vdwg.mxu0
        %1433 = vmatprep.subr.bf16.mxu0 0
        %1434 = vmatpush1.bf16.xpose.msra.mxu0 0
        %1435 = vmatprep.subr.bf16.mxu0 0
        %1436 = vmatpush1.bf16.xpose.msra.mxu0 0
        %1437 = vmatprep.subr.bf16.mxu0 0
        %1438 = vmatpush1.bf16.xpose.msra.mxu0 0
        %1439 = vmatprep.subr.bf16.mxu0 0
        %1440 = vmatpush1.bf16.xpose.msra.mxu0 0
        %1441 = vmatprep.subr.bf16.mxu0 0
        %1442 = vmatpush1.bf16.xpose.msra.mxu0 0
        %1443 = vmatprep.subr.bf16.mxu0 0
        %1444 = vmatpush1.bf16.xpose.msra.mxu0 0
        %1445 = vmatprep.subr.bf16.mxu0 0
        %1446 = vmatpush1.bf16.xpose.msra.mxu0 0
        %1447 = vmatprep.subr.bf16.mxu0 0
        %1448 = vmatpush1.bf16.xpose.msra.mxu0 %v1185
        %1449 = vmatprep.subr.bf16.mxu0 0
        %1450 = vmatpush2.bf16.xpose.msra.mxu0 0
        %1451 = vmatprep.subr.bf16.mxu0 0
        %1452 = vmatpush2.bf16.xpose.msra.mxu0 0
        %1453 = vmatprep.subr.bf16.mxu0 0
        %1454 = vmatpush2.bf16.xpose.msra.mxu0 0
        %1455 = vmatprep.subr.bf16.mxu0 0
        %1456 = vmatpush2.bf16.xpose.msra.mxu0 0
        %1457 = vmatprep.subr.bf16.mxu0 0
        %1458 = vmatpush2.bf16.xpose.msra.mxu0 0
        %1459 = vmatprep.subr.bf16.mxu0 0
        %1460 = vmatpush2.bf16.xpose.msra.mxu0 0
        %1461 = vmatprep.subr.bf16.mxu0 0
        %1462 = vmatpush2.bf16.xpose.msra.mxu0 0
        %1463 = vmatprep.subr.bf16.mxu0 0
        %1464 = vmatpush2.bf16.xpose.msra.mxu0 0
        %1465 = vmatprep.mubr.bf16.mxu0 0
        %1466 = vmatmul.mubr.bf16.gmra.mxu0 %v1217
        %v1467 = vpop.f32.mrf.mxu0
        %v1468 = vadd.f32 0.0, %v1467
        %v1469 = vpop.f32.mrf.mxu0
        %v1470 = vpop.f32.mrf.mxu0
        %v1471 = vadd.f32 0.0, %v1470
        %v1472 = vpop.f32.mrf.mxu0
        %1473 = vdwg.mxu0
        %1474 = vmatprep.subr.bf16.mxu0 0
        %1475 = vmatpush1.bf16.xpose.msra.mxu0 0
        %1476 = vmatprep.subr.bf16.mxu0 0
        %1477 = vmatpush1.bf16.xpose.msra.mxu0 0
        %1478 = vmatprep.subr.bf16.mxu0 0
        %1479 = vmatpush1.bf16.xpose.msra.mxu0 0
        %1480 = vmatprep.subr.bf16.mxu0 0
        %1481 = vmatpush1.bf16.xpose.msra.mxu0 0
        %1482 = vmatprep.subr.bf16.mxu0 0
        %1483 = vmatpush1.bf16.xpose.msra.mxu0 0
        %1484 = vmatprep.subr.bf16.mxu0 0
        %1485 = vmatpush1.bf16.xpose.msra.mxu0 0
        %1486 = vmatprep.subr.bf16.mxu0 0
        %1487 = vmatpush1.bf16.xpose.msra.mxu0 0
        %1488 = vmatprep.subr.bf16.mxu0 0
        %1489 = vmatpush1.bf16.xpose.msra.mxu0 %v1186
        %1490 = vmatprep.subr.bf16.mxu0 0
        %1491 = vmatpush2.bf16.xpose.msra.mxu0 0
        %1492 = vmatprep.subr.bf16.mxu0 0
        %1493 = vmatpush2.bf16.xpose.msra.mxu0 0
        %1494 = vmatprep.subr.bf16.mxu0 0
        %1495 = vmatpush2.bf16.xpose.msra.mxu0 0
        %1496 = vmatprep.subr.bf16.mxu0 0
        %1497 = vmatpush2.bf16.xpose.msra.mxu0 0
        %1498 = vmatprep.subr.bf16.mxu0 0
        %1499 = vmatpush2.bf16.xpose.msra.mxu0 0
        %1500 = vmatprep.subr.bf16.mxu0 0
        %1501 = vmatpush2.bf16.xpose.msra.mxu0 0
        %1502 = vmatprep.subr.bf16.mxu0 0
        %1503 = vmatpush2.bf16.xpose.msra.mxu0 0
        %1504 = vmatprep.subr.bf16.mxu0 0
        %1505 = vmatpush2.bf16.xpose.msra.mxu0 0
        %1506 = vmatprep.mubr.bf16.mxu0 0
        %1507 = vmatmul.mubr.bf16.gmra.mxu0 %v1218
        %v1508 = vpop.f32.mrf.mxu0
        %v1509 = vadd.f32 0.0, %v1508
        %v1510 = vpop.f32.mrf.mxu0
        %v1511 = vpop.f32.mrf.mxu0
        %v1512 = vadd.f32 0.0, %v1511
        %v1513 = vpop.f32.mrf.mxu0
        %1514 = vdwg.mxu0
        %1515 = vmatprep.subr.bf16.mxu0 0
        %1516 = vmatpush1.bf16.xpose.msra.mxu0 0
        %1517 = vmatprep.subr.bf16.mxu0 0
        %1518 = vmatpush1.bf16.xpose.msra.mxu0 0
        %1519 = vmatprep.subr.bf16.mxu0 0
        %1520 = vmatpush1.bf16.xpose.msra.mxu0 0
        %1521 = vmatprep.subr.bf16.mxu0 0
        %1522 = vmatpush1.bf16.xpose.msra.mxu0 0
        %1523 = vmatprep.subr.bf16.mxu0 0
        %1524 = vmatpush1.bf16.xpose.msra.mxu0 0
        %1525 = vmatprep.subr.bf16.mxu0 0
        %1526 = vmatpush1.bf16.xpose.msra.mxu0 0
        %1527 = vmatprep.subr.bf16.mxu0 0
        %1528 = vmatpush1.bf16.xpose.msra.mxu0 0
        %1529 = vmatprep.subr.bf16.mxu0 0
        %1530 = vmatpush1.bf16.xpose.msra.mxu0 %v1187
        %1531 = vmatprep.subr.bf16.mxu0 0
        %1532 = vmatpush2.bf16.xpose.msra.mxu0 0
        %1533 = vmatprep.subr.bf16.mxu0 0
        %1534 = vmatpush2.bf16.xpose.msra.mxu0 0
        %1535 = vmatprep.subr.bf16.mxu0 0
        %1536 = vmatpush2.bf16.xpose.msra.mxu0 0
        %1537 = vmatprep.subr.bf16.mxu0 0
        %1538 = vmatpush2.bf16.xpose.msra.mxu0 0
        %1539 = vmatprep.subr.bf16.mxu0 0
        %1540 = vmatpush2.bf16.xpose.msra.mxu0 0
        %1541 = vmatprep.subr.bf16.mxu0 0
        %1542 = vmatpush2.bf16.xpose.msra.mxu0 0
        %1543 = vmatprep.subr.bf16.mxu0 0
        %1544 = vmatpush2.bf16.xpose.msra.mxu0 0
        %1545 = vmatprep.subr.bf16.mxu0 0
        %1546 = vmatpush2.bf16.xpose.msra.mxu0 0
        %1547 = vmatprep.mubr.bf16.mxu0 0
        %1548 = vmatmul.mubr.bf16.gmra.mxu0 %v1219
        %v1549 = vpop.f32.mrf.mxu0
        %v1550 = vadd.f32 0.0, %v1549
        %v1551 = vpop.f32.mrf.mxu0
        %v1552 = vpop.f32.mrf.mxu0
        %v1553 = vadd.f32 0.0, %v1552
        %v1554 = vpop.f32.mrf.mxu0
        %1555 = vdwg.mxu0
        %1556 = vmatprep.subr.bf16.mxu0 0
        %1557 = vmatpush1.bf16.xpose.msra.mxu0 0
        %1558 = vmatprep.subr.bf16.mxu0 0
        %1559 = vmatpush1.bf16.xpose.msra.mxu0 0
        %1560 = vmatprep.subr.bf16.mxu0 0
        %1561 = vmatpush1.bf16.xpose.msra.mxu0 0
        %1562 = vmatprep.subr.bf16.mxu0 0
        %1563 = vmatpush1.bf16.xpose.msra.mxu0 0
        %1564 = vmatprep.subr.bf16.mxu0 0
        %1565 = vmatpush1.bf16.xpose.msra.mxu0 0
        %1566 = vmatprep.subr.bf16.mxu0 0
        %1567 = vmatpush1.bf16.xpose.msra.mxu0 0
        %1568 = vmatprep.subr.bf16.mxu0 0
        %1569 = vmatpush1.bf16.xpose.msra.mxu0 0
        %1570 = vmatprep.subr.bf16.mxu0 0
        %1571 = vmatpush1.bf16.xpose.msra.mxu0 %v1188
        %1572 = vmatprep.subr.bf16.mxu0 0
        %1573 = vmatpush2.bf16.xpose.msra.mxu0 0
        %1574 = vmatprep.subr.bf16.mxu0 0
        %1575 = vmatpush2.bf16.xpose.msra.mxu0 0
        %1576 = vmatprep.subr.bf16.mxu0 0
        %1577 = vmatpush2.bf16.xpose.msra.mxu0 0
        %1578 = vmatprep.subr.bf16.mxu0 0
        %1579 = vmatpush2.bf16.xpose.msra.mxu0 0
        %1580 = vmatprep.subr.bf16.mxu0 0
        %1581 = vmatpush2.bf16.xpose.msra.mxu0 0
        %1582 = vmatprep.subr.bf16.mxu0 0
        %1583 = vmatpush2.bf16.xpose.msra.mxu0 0
        %1584 = vmatprep.subr.bf16.mxu0 0
        %1585 = vmatpush2.bf16.xpose.msra.mxu0 0
        %1586 = vmatprep.subr.bf16.mxu0 0
        %1587 = vmatpush2.bf16.xpose.msra.mxu0 0
        %1588 = vmatprep.mubr.bf16.mxu0 0
        %1589 = vmatmul.mubr.bf16.gmra.mxu0 %v1220
        %v1590 = vpop.f32.mrf.mxu0
        %v1591 = vadd.f32 0.0, %v1590
        %v1592 = vpop.f32.mrf.mxu0
        %v1593 = vpop.f32.mrf.mxu0
        %v1594 = vadd.f32 0.0, %v1593
        %v1595 = vpop.f32.mrf.mxu0
        %1596 = vdwg.mxu0
        %1597 = vmatprep.subr.bf16.mxu0 0
        %1598 = vmatpush1.bf16.xpose.msra.mxu0 0
        %1599 = vmatprep.subr.bf16.mxu0 0
        %1600 = vmatpush1.bf16.xpose.msra.mxu0 0
        %1601 = vmatprep.subr.bf16.mxu0 0
        %1602 = vmatpush1.bf16.xpose.msra.mxu0 0
        %1603 = vmatprep.subr.bf16.mxu0 0
        %1604 = vmatpush1.bf16.xpose.msra.mxu0 0
        %1605 = vmatprep.subr.bf16.mxu0 0
        %1606 = vmatpush1.bf16.xpose.msra.mxu0 0
        %1607 = vmatprep.subr.bf16.mxu0 0
        %1608 = vmatpush1.bf16.xpose.msra.mxu0 0
        %1609 = vmatprep.subr.bf16.mxu0 0
        %1610 = vmatpush1.bf16.xpose.msra.mxu0 0
        %1611 = vmatprep.subr.bf16.mxu0 0
        %1612 = vmatpush1.bf16.xpose.msra.mxu0 %v1189
        %1613 = vmatprep.subr.bf16.mxu0 0
        %1614 = vmatpush2.bf16.xpose.msra.mxu0 0
        %1615 = vmatprep.subr.bf16.mxu0 0
        %1616 = vmatpush2.bf16.xpose.msra.mxu0 0
        %1617 = vmatprep.subr.bf16.mxu0 0
        %1618 = vmatpush2.bf16.xpose.msra.mxu0 0
        %1619 = vmatprep.subr.bf16.mxu0 0
        %1620 = vmatpush2.bf16.xpose.msra.mxu0 0
        %1621 = vmatprep.subr.bf16.mxu0 0
        %1622 = vmatpush2.bf16.xpose.msra.mxu0 0
        %1623 = vmatprep.subr.bf16.mxu0 0
        %1624 = vmatpush2.bf16.xpose.msra.mxu0 0
        %1625 = vmatprep.subr.bf16.mxu0 0
        %1626 = vmatpush2.bf16.xpose.msra.mxu0 0
        %1627 = vmatprep.subr.bf16.mxu0 0
        %1628 = vmatpush2.bf16.xpose.msra.mxu0 0
        %1629 = vmatprep.mubr.bf16.mxu0 0
        %1630 = vmatmul.mubr.bf16.gmra.mxu0 %v1221
        %v1631 = vpop.f32.mrf.mxu0
        %v1632 = vadd.f32 0.0, %v1631
        %v1633 = vpop.f32.mrf.mxu0
        %v1634 = vpop.f32.mrf.mxu0
        %v1635 = vadd.f32 0.0, %v1634
        %v1636 = vpop.f32.mrf.mxu0
        %1637 = vdwg.mxu0
        %1638 = vmatprep.subr.bf16.mxu0 0
        %1639 = vmatpush1.bf16.xpose.msra.mxu0 0
        %1640 = vmatprep.subr.bf16.mxu0 0
        %1641 = vmatpush1.bf16.xpose.msra.mxu0 0
        %1642 = vmatprep.subr.bf16.mxu0 0
        %1643 = vmatpush1.bf16.xpose.msra.mxu0 0
        %1644 = vmatprep.subr.bf16.mxu0 0
        %1645 = vmatpush1.bf16.xpose.msra.mxu0 0
        %1646 = vmatprep.subr.bf16.mxu0 0
        %1647 = vmatpush1.bf16.xpose.msra.mxu0 0
        %1648 = vmatprep.subr.bf16.mxu0 0
        %1649 = vmatpush1.bf16.xpose.msra.mxu0 0
        %1650 = vmatprep.subr.bf16.mxu0 0
        %1651 = vmatpush1.bf16.xpose.msra.mxu0 0
        %1652 = vmatprep.subr.bf16.mxu0 0
        %1653 = vmatpush1.bf16.xpose.msra.mxu0 %v1190
        %1654 = vmatprep.subr.bf16.mxu0 0
        %1655 = vmatpush2.bf16.xpose.msra.mxu0 0
        %1656 = vmatprep.subr.bf16.mxu0 0
        %1657 = vmatpush2.bf16.xpose.msra.mxu0 0
        %1658 = vmatprep.subr.bf16.mxu0 0
        %1659 = vmatpush2.bf16.xpose.msra.mxu0 0
        %1660 = vmatprep.subr.bf16.mxu0 0
        %1661 = vmatpush2.bf16.xpose.msra.mxu0 0
        %1662 = vmatprep.subr.bf16.mxu0 0
        %1663 = vmatpush2.bf16.xpose.msra.mxu0 0
        %1664 = vmatprep.subr.bf16.mxu0 0
        %1665 = vmatpush2.bf16.xpose.msra.mxu0 0
        %1666 = vmatprep.subr.bf16.mxu0 0
        %1667 = vmatpush2.bf16.xpose.msra.mxu0 0
        %1668 = vmatprep.subr.bf16.mxu0 0
        %1669 = vmatpush2.bf16.xpose.msra.mxu0 0
        %1670 = vmatprep.mubr.bf16.mxu0 0
        %1671 = vmatmul.mubr.bf16.gmra.mxu0 %v1222
        %v1672 = vpop.f32.mrf.mxu0
        %v1673 = vadd.f32 0.0, %v1672
        %v1674 = vpop.f32.mrf.mxu0
        %v1675 = vpop.f32.mrf.mxu0
        %v1676 = vadd.f32 0.0, %v1675
        %v1677 = vpop.f32.mrf.mxu0
        %1678 = vdwg.mxu0
        %1679 = vmatprep.subr.bf16.mxu0 0
        %1680 = vmatpush1.bf16.xpose.msra.mxu0 0
        %1681 = vmatprep.subr.bf16.mxu0 0
        %1682 = vmatpush1.bf16.xpose.msra.mxu0 0
        %1683 = vmatprep.subr.bf16.mxu0 0
        %1684 = vmatpush1.bf16.xpose.msra.mxu0 0
        %1685 = vmatprep.subr.bf16.mxu0 0
        %1686 = vmatpush1.bf16.xpose.msra.mxu0 0
        %1687 = vmatprep.subr.bf16.mxu0 0
        %1688 = vmatpush1.bf16.xpose.msra.mxu0 0
        %1689 = vmatprep.subr.bf16.mxu0 0
        %1690 = vmatpush1.bf16.xpose.msra.mxu0 0
        %1691 = vmatprep.subr.bf16.mxu0 0
        %1692 = vmatpush1.bf16.xpose.msra.mxu0 0
        %1693 = vmatprep.subr.bf16.mxu0 0
        %1694 = vmatpush1.bf16.xpose.msra.mxu0 %v1191
        %1695 = vmatprep.subr.bf16.mxu0 0
        %1696 = vmatpush2.bf16.xpose.msra.mxu0 0
        %1697 = vmatprep.subr.bf16.mxu0 0
        %1698 = vmatpush2.bf16.xpose.msra.mxu0 0
        %1699 = vmatprep.subr.bf16.mxu0 0
        %1700 = vmatpush2.bf16.xpose.msra.mxu0 0
        %1701 = vmatprep.subr.bf16.mxu0 0
        %1702 = vmatpush2.bf16.xpose.msra.mxu0 0
        %1703 = vmatprep.subr.bf16.mxu0 0
        %1704 = vmatpush2.bf16.xpose.msra.mxu0 0
        %1705 = vmatprep.subr.bf16.mxu0 0
        %1706 = vmatpush2.bf16.xpose.msra.mxu0 0
        %1707 = vmatprep.subr.bf16.mxu0 0
        %1708 = vmatpush2.bf16.xpose.msra.mxu0 0
        %1709 = vmatprep.subr.bf16.mxu0 0
        %1710 = vmatpush2.bf16.xpose.msra.mxu0 0
        %1711 = vmatprep.mubr.bf16.mxu0 0
        %1712 = vmatmul.mubr.bf16.gmra.mxu0 %v1223
        %v1713 = vpop.f32.mrf.mxu0
        %v1714 = vadd.f32 0.0, %v1713
        %v1715 = vpop.f32.mrf.mxu0
        %v1716 = vpop.f32.mrf.mxu0
        %v1717 = vadd.f32 0.0, %v1716
        %v1718 = vpop.f32.mrf.mxu0
        %1719 = vdwg.mxu0
        %1720 = vmatprep.subr.bf16.mxu0 0
        %1721 = vmatpush1.bf16.xpose.msra.mxu0 0
        %1722 = vmatprep.subr.bf16.mxu0 0
        %1723 = vmatpush1.bf16.xpose.msra.mxu0 0
        %1724 = vmatprep.subr.bf16.mxu0 0
        %1725 = vmatpush1.bf16.xpose.msra.mxu0 0
        %1726 = vmatprep.subr.bf16.mxu0 0
        %1727 = vmatpush1.bf16.xpose.msra.mxu0 0
        %1728 = vmatprep.subr.bf16.mxu0 0
        %1729 = vmatpush1.bf16.xpose.msra.mxu0 0
        %1730 = vmatprep.subr.bf16.mxu0 0
        %1731 = vmatpush1.bf16.xpose.msra.mxu0 0
        %1732 = vmatprep.subr.bf16.mxu0 0
        %1733 = vmatpush1.bf16.xpose.msra.mxu0 0
        %1734 = vmatprep.subr.bf16.mxu0 0
        %1735 = vmatpush1.bf16.xpose.msra.mxu0 %v1192
        %1736 = vmatprep.subr.bf16.mxu0 0
        %1737 = vmatpush2.bf16.xpose.msra.mxu0 0
        %1738 = vmatprep.subr.bf16.mxu0 0
        %1739 = vmatpush2.bf16.xpose.msra.mxu0 0
        %1740 = vmatprep.subr.bf16.mxu0 0
        %1741 = vmatpush2.bf16.xpose.msra.mxu0 0
        %1742 = vmatprep.subr.bf16.mxu0 0
        %1743 = vmatpush2.bf16.xpose.msra.mxu0 0
        %1744 = vmatprep.subr.bf16.mxu0 0
        %1745 = vmatpush2.bf16.xpose.msra.mxu0 0
        %1746 = vmatprep.subr.bf16.mxu0 0
        %1747 = vmatpush2.bf16.xpose.msra.mxu0 0
        %1748 = vmatprep.subr.bf16.mxu0 0
        %1749 = vmatpush2.bf16.xpose.msra.mxu0 0
        %1750 = vmatprep.subr.bf16.mxu0 0
        %1751 = vmatpush2.bf16.xpose.msra.mxu0 0
        %1752 = vmatprep.mubr.bf16.mxu0 0
        %1753 = vmatmul.mubr.bf16.gmra.mxu0 %v1224
        %v1754 = vpop.f32.mrf.mxu0
        %v1755 = vadd.f32 0.0, %v1754
        %v1756 = vpop.f32.mrf.mxu0
        %v1757 = vpop.f32.mrf.mxu0
        %v1758 = vadd.f32 0.0, %v1757
        %v1759 = vpop.f32.mrf.mxu0
        %1760 = vdwg.mxu0
        %1761 = vmatprep.subr.bf16.mxu0 0
        %1762 = vmatpush1.bf16.xpose.msra.mxu0 0
        %1763 = vmatprep.subr.bf16.mxu0 0
        %1764 = vmatpush1.bf16.xpose.msra.mxu0 0
        %1765 = vmatprep.subr.bf16.mxu0 0
        %1766 = vmatpush1.bf16.xpose.msra.mxu0 0
        %1767 = vmatprep.subr.bf16.mxu0 0
        %1768 = vmatpush1.bf16.xpose.msra.mxu0 0
        %1769 = vmatprep.subr.bf16.mxu0 0
        %1770 = vmatpush1.bf16.xpose.msra.mxu0 0
        %1771 = vmatprep.subr.bf16.mxu0 0
        %1772 = vmatpush1.bf16.xpose.msra.mxu0 0
        %1773 = vmatprep.subr.bf16.mxu0 0
        %1774 = vmatpush1.bf16.xpose.msra.mxu0 0
        %1775 = vmatprep.subr.bf16.mxu0 0
        %1776 = vmatpush1.bf16.xpose.msra.mxu0 %v1193
        %1777 = vmatprep.subr.bf16.mxu0 0
        %1778 = vmatpush2.bf16.xpose.msra.mxu0 0
        %1779 = vmatprep.subr.bf16.mxu0 0
        %1780 = vmatpush2.bf16.xpose.msra.mxu0 0
        %1781 = vmatprep.subr.bf16.mxu0 0
        %1782 = vmatpush2.bf16.xpose.msra.mxu0 0
        %1783 = vmatprep.subr.bf16.mxu0 0
        %1784 = vmatpush2.bf16.xpose.msra.mxu0 0
        %1785 = vmatprep.subr.bf16.mxu0 0
        %1786 = vmatpush2.bf16.xpose.msra.mxu0 0
        %1787 = vmatprep.subr.bf16.mxu0 0
        %1788 = vmatpush2.bf16.xpose.msra.mxu0 0
        %1789 = vmatprep.subr.bf16.mxu0 0
        %1790 = vmatpush2.bf16.xpose.msra.mxu0 0
        %1791 = vmatprep.subr.bf16.mxu0 0
        %1792 = vmatpush2.bf16.xpose.msra.mxu0 0
        %1793 = vmatprep.mubr.bf16.mxu0 0
        %1794 = vmatmul.mubr.bf16.gmra.mxu0 %v1225
        %v1795 = vpop.f32.mrf.mxu0
        %v1796 = vadd.f32 0.0, %v1795
        %v1797 = vpop.f32.mrf.mxu0
        %v1798 = vpop.f32.mrf.mxu0
        %v1799 = vadd.f32 0.0, %v1798
        %v1800 = vpop.f32.mrf.mxu0
        %1801 = vdwg.mxu0
        %1802 = vmatprep.subr.bf16.mxu0 0
        %1803 = vmatpush1.bf16.xpose.msra.mxu0 0
        %1804 = vmatprep.subr.bf16.mxu0 0
        %1805 = vmatpush1.bf16.xpose.msra.mxu0 0
        %1806 = vmatprep.subr.bf16.mxu0 0
        %1807 = vmatpush1.bf16.xpose.msra.mxu0 0
        %1808 = vmatprep.subr.bf16.mxu0 0
        %1809 = vmatpush1.bf16.xpose.msra.mxu0 0
        %1810 = vmatprep.subr.bf16.mxu0 0
        %1811 = vmatpush1.bf16.xpose.msra.mxu0 0
        %1812 = vmatprep.subr.bf16.mxu0 0
        %1813 = vmatpush1.bf16.xpose.msra.mxu0 0
        %1814 = vmatprep.subr.bf16.mxu0 0
        %1815 = vmatpush1.bf16.xpose.msra.mxu0 0
        %1816 = vmatprep.subr.bf16.mxu0 0
        %1817 = vmatpush1.bf16.xpose.msra.mxu0 %v1194
        %1818 = vmatprep.subr.bf16.mxu0 0
        %1819 = vmatpush2.bf16.xpose.msra.mxu0 0
        %1820 = vmatprep.subr.bf16.mxu0 0
        %1821 = vmatpush2.bf16.xpose.msra.mxu0 0
        %1822 = vmatprep.subr.bf16.mxu0 0
        %1823 = vmatpush2.bf16.xpose.msra.mxu0 0
        %1824 = vmatprep.subr.bf16.mxu0 0
        %1825 = vmatpush2.bf16.xpose.msra.mxu0 0
        %1826 = vmatprep.subr.bf16.mxu0 0
        %1827 = vmatpush2.bf16.xpose.msra.mxu0 0
        %1828 = vmatprep.subr.bf16.mxu0 0
        %1829 = vmatpush2.bf16.xpose.msra.mxu0 0
        %1830 = vmatprep.subr.bf16.mxu0 0
        %1831 = vmatpush2.bf16.xpose.msra.mxu0 0
        %1832 = vmatprep.subr.bf16.mxu0 0
        %1833 = vmatpush2.bf16.xpose.msra.mxu0 0
        %1834 = vmatprep.mubr.bf16.mxu0 0
        %1835 = vmatmul.mubr.bf16.gmra.mxu0 %v1226
        %v1836 = vpop.f32.mrf.mxu0
        %v1837 = vadd.f32 0.0, %v1836
        %v1838 = vpop.f32.mrf.mxu0
        %v1839 = vpop.f32.mrf.mxu0
        %v1840 = vadd.f32 0.0, %v1839
        %v1841 = vpop.f32.mrf.mxu0
        %1842 = vdwg.mxu0
        %1843 = vmatprep.subr.bf16.mxu0 0
        %1844 = vmatpush1.bf16.xpose.msra.mxu0 0
        %1845 = vmatprep.subr.bf16.mxu0 0
        %1846 = vmatpush1.bf16.xpose.msra.mxu0 0
        %1847 = vmatprep.subr.bf16.mxu0 0
        %1848 = vmatpush1.bf16.xpose.msra.mxu0 0
        %1849 = vmatprep.subr.bf16.mxu0 0
        %1850 = vmatpush1.bf16.xpose.msra.mxu0 0
        %1851 = vmatprep.subr.bf16.mxu0 0
        %1852 = vmatpush1.bf16.xpose.msra.mxu0 0
        %1853 = vmatprep.subr.bf16.mxu0 0
        %1854 = vmatpush1.bf16.xpose.msra.mxu0 0
        %1855 = vmatprep.subr.bf16.mxu0 0
        %1856 = vmatpush1.bf16.xpose.msra.mxu0 0
        %1857 = vmatprep.subr.bf16.mxu0 0
        %1858 = vmatpush1.bf16.xpose.msra.mxu0 %v1195
        %1859 = vmatprep.subr.bf16.mxu0 0
        %1860 = vmatpush2.bf16.xpose.msra.mxu0 0
        %1861 = vmatprep.subr.bf16.mxu0 0
        %1862 = vmatpush2.bf16.xpose.msra.mxu0 0
        %1863 = vmatprep.subr.bf16.mxu0 0
        %1864 = vmatpush2.bf16.xpose.msra.mxu0 0
        %1865 = vmatprep.subr.bf16.mxu0 0
        %1866 = vmatpush2.bf16.xpose.msra.mxu0 0
        %1867 = vmatprep.subr.bf16.mxu0 0
        %1868 = vmatpush2.bf16.xpose.msra.mxu0 0
        %1869 = vmatprep.subr.bf16.mxu0 0
        %1870 = vmatpush2.bf16.xpose.msra.mxu0 0
        %1871 = vmatprep.subr.bf16.mxu0 0
        %1872 = vmatpush2.bf16.xpose.msra.mxu0 0
        %1873 = vmatprep.subr.bf16.mxu0 0
        %1874 = vmatpush2.bf16.xpose.msra.mxu0 0
        %1875 = vmatprep.mubr.bf16.mxu0 0
        %1876 = vmatmul.mubr.bf16.gmra.mxu0 %v1227
        %v1877 = vpop.f32.mrf.mxu0
        %v1878 = vadd.f32 0.0, %v1877
        %v1879 = vpop.f32.mrf.mxu0
        %v1880 = vpop.f32.mrf.mxu0
        %v1881 = vadd.f32 0.0, %v1880
        %v1882 = vpop.f32.mrf.mxu0
        %1883 = vdwg.mxu0
        %vm1884 = vcmask 130048
        %v1885 = vsel %vm1884, %v1263, -inf
        %1886 = vmax.xlane.f32.xlu0 %v1885
        %v1887 = vpop.xlane.xlu0 %1886
        %v1888 = vsel %vm1884, %v1266, -inf
        %1889 = vmax.xlane.f32.xlu0 %v1888
        %v1890 = vpop.xlane.xlu0 %1889
        %v1891 = vsel %vm1884, %v1304, -inf
        %1892 = vmax.xlane.f32.xlu0 %v1891
        %v1893 = vpop.xlane.xlu0 %1892
        %v1894 = vsel %vm1884, %v1307, -inf
        %1895 = vmax.xlane.f32.xlu0 %v1894
        %v1896 = vpop.xlane.xlu0 %1895
        %v1897 = vsel %vm1884, %v1345, -inf
        %1898 = vmax.xlane.f32.xlu0 %v1897
        %v1899 = vpop.xlane.xlu0 %1898
        %v1900 = vsel %vm1884, %v1348, -inf
        %1901 = vmax.xlane.f32.xlu0 %v1900
        %v1902 = vpop.xlane.xlu0 %1901
        %v1903 = vsel %vm1884, %v1386, -inf
        %1904 = vmax.xlane.f32.xlu0 %v1903
        %v1905 = vpop.xlane.xlu0 %1904
        %v1906 = vsel %vm1884, %v1389, -inf
        %1907 = vmax.xlane.f32.xlu0 %v1906
        %v1908 = vpop.xlane.xlu0 %1907
        %v1909 = vsel %vm1884, %v1427, -inf
        %1910 = vmax.xlane.f32.xlu0 %v1909
        %v1911 = vpop.xlane.xlu0 %1910
        %v1912 = vsel %vm1884, %v1430, -inf
        %1913 = vmax.xlane.f32.xlu0 %v1912
        %v1914 = vpop.xlane.xlu0 %1913
        %v1915 = vsel %vm1884, %v1468, -inf
        %1916 = vmax.xlane.f32.xlu0 %v1915
        %v1917 = vpop.xlane.xlu0 %1916
        %v1918 = vsel %vm1884, %v1471, -inf
        %1919 = vmax.xlane.f32.xlu0 %v1918
        %v1920 = vpop.xlane.xlu0 %1919
        %v1921 = vsel %vm1884, %v1509, -inf
        %1922 = vmax.xlane.f32.xlu0 %v1921
        %v1923 = vpop.xlane.xlu0 %1922
        %v1924 = vsel %vm1884, %v1512, -inf
        %1925 = vmax.xlane.f32.xlu0 %v1924
        %v1926 = vpop.xlane.xlu0 %1925
        %v1927 = vsel %vm1884, %v1550, -inf
        %1928 = vmax.xlane.f32.xlu0 %v1927
        %v1929 = vpop.xlane.xlu0 %1928
        %v1930 = vsel %vm1884, %v1553, -inf
        %1931 = vmax.xlane.f32.xlu0 %v1930
        %v1932 = vpop.xlane.xlu0 %1931
        %v1933 = vsel %vm1884, %v1591, -inf
        %1934 = vmax.xlane.f32.xlu0 %v1933
        %v1935 = vpop.xlane.xlu0 %1934
        %v1936 = vsel %vm1884, %v1594, -inf
        %1937 = vmax.xlane.f32.xlu0 %v1936
        %v1938 = vpop.xlane.xlu0 %1937
        %v1939 = vsel %vm1884, %v1632, -inf
        %1940 = vmax.xlane.f32.xlu0 %v1939
        %v1941 = vpop.xlane.xlu0 %1940
        %v1942 = vsel %vm1884, %v1635, -inf
        %1943 = vmax.xlane.f32.xlu0 %v1942
        %v1944 = vpop.xlane.xlu0 %1943
        %v1945 = vsel %vm1884, %v1673, -inf
        %1946 = vmax.xlane.f32.xlu0 %v1945
        %v1947 = vpop.xlane.xlu0 %1946
        %v1948 = vsel %vm1884, %v1676, -inf
        %1949 = vmax.xlane.f32.xlu0 %v1948
        %v1950 = vpop.xlane.xlu0 %1949
        %v1951 = vsel %vm1884, %v1714, -inf
        %1952 = vmax.xlane.f32.xlu0 %v1951
        %v1953 = vpop.xlane.xlu0 %1952
        %v1954 = vsel %vm1884, %v1717, -inf
        %1955 = vmax.xlane.f32.xlu0 %v1954
        %v1956 = vpop.xlane.xlu0 %1955
        %v1957 = vsel %vm1884, %v1755, -inf
        %1958 = vmax.xlane.f32.xlu0 %v1957
        %v1959 = vpop.xlane.xlu0 %1958
        %v1960 = vsel %vm1884, %v1758, -inf
        %1961 = vmax.xlane.f32.xlu0 %v1960
        %v1962 = vpop.xlane.xlu0 %1961
        %v1963 = vsel %vm1884, %v1796, -inf
        %1964 = vmax.xlane.f32.xlu0 %v1963
        %v1965 = vpop.xlane.xlu0 %1964
        %v1966 = vsel %vm1884, %v1799, -inf
        %1967 = vmax.xlane.f32.xlu0 %v1966
        %v1968 = vpop.xlane.xlu0 %1967
        %v1969 = vsel %vm1884, %v1837, -inf
        %1970 = vmax.xlane.f32.xlu0 %v1969
        %v1971 = vpop.xlane.xlu0 %1970
        %v1972 = vsel %vm1884, %v1840, -inf
        %1973 = vmax.xlane.f32.xlu0 %v1972
        %v1974 = vpop.xlane.xlu0 %1973
        %v1975 = vsel %vm1884, %v1878, -inf
        %1976 = vmax.xlane.f32.xlu0 %v1975
        %v1977 = vpop.xlane.xlu0 %1976
        %v1978 = vsel %vm1884, %v1881, -inf
        %1979 = vmax.xlane.f32.xlu0 %v1978
        %v1980 = vpop.xlane.xlu0 %1979
        %v1981 = vsub.f32 %v1263, %v1887
        %v1982 = vsub.f32 %v1266, %v1890
        %v1983 = vsub.f32 %v1304, %v1893
        %v1984 = vsub.f32 %v1307, %v1896
        %v1985 = vsub.f32 %v1345, %v1899
        %v1986 = vsub.f32 %v1348, %v1902
        %v1987 = vsub.f32 %v1386, %v1905
        %v1988 = vsub.f32 %v1389, %v1908
        %v1989 = vsub.f32 %v1427, %v1911
        %v1990 = vsub.f32 %v1430, %v1914
        %v1991 = vsub.f32 %v1468, %v1917
        %v1992 = vsub.f32 %v1471, %v1920
        %v1993 = vsub.f32 %v1509, %v1923
        %v1994 = vsub.f32 %v1512, %v1926
        %v1995 = vsub.f32 %v1550, %v1929
        %v1996 = vsub.f32 %v1553, %v1932
        %v1997 = vsub.f32 %v1591, %v1935
        %v1998 = vsub.f32 %v1594, %v1938
        %v1999 = vsub.f32 %v1632, %v1941
        %v2000 = vsub.f32 %v1635, %v1944
        %v2001 = vsub.f32 %v1673, %v1947
        %v2002 = vsub.f32 %v1676, %v1950
        %v2003 = vsub.f32 %v1714, %v1953
        %v2004 = vsub.f32 %v1717, %v1956
        %v2005 = vsub.f32 %v1755, %v1959
        %v2006 = vsub.f32 %v1758, %v1962
        %v2007 = vsub.f32 %v1796, %v1965
        %v2008 = vsub.f32 %v1799, %v1968
        %v2009 = vsub.f32 %v1837, %v1971
        %v2010 = vsub.f32 %v1840, %v1974
        %v2011 = vsub.f32 %v1878, %v1977
        %v2012 = vsub.f32 %v1881, %v1980
        %v2013 = vmul.f32 %v1981, 1.442695
        %v2014 = vpow.pop %v2013
        %v2015 = vmul.f32 %v1982, 1.442695
        %v2016 = vpow.pop %v2015
        %v2017 = vmul.f32 %v1983, 1.442695
        %v2018 = vpow.pop %v2017
        %v2019 = vmul.f32 %v1984, 1.442695
        %v2020 = vpow.pop %v2019
        %v2021 = vmul.f32 %v1985, 1.442695
        %v2022 = vpow.pop %v2021
        %v2023 = vmul.f32 %v1986, 1.442695
        %v2024 = vpow.pop %v2023
        %v2025 = vmul.f32 %v1987, 1.442695
        %v2026 = vpow.pop %v2025
        %v2027 = vmul.f32 %v1988, 1.442695
        %v2028 = vpow.pop %v2027
        %v2029 = vmul.f32 %v1989, 1.442695
        %v2030 = vpow.pop %v2029
        %v2031 = vmul.f32 %v1990, 1.442695
        %v2032 = vpow.pop %v2031
        %v2033 = vmul.f32 %v1991, 1.442695
        %v2034 = vpow.pop %v2033
        %v2035 = vmul.f32 %v1992, 1.442695
        %v2036 = vpow.pop %v2035
        %v2037 = vmul.f32 %v1993, 1.442695
        %v2038 = vpow.pop %v2037
        %v2039 = vmul.f32 %v1994, 1.442695
        %v2040 = vpow.pop %v2039
        %v2041 = vmul.f32 %v1995, 1.442695
        %v2042 = vpow.pop %v2041
        %v2043 = vmul.f32 %v1996, 1.442695
        %v2044 = vpow.pop %v2043
        %v2045 = vmul.f32 %v1997, 1.442695
        %v2046 = vpow.pop %v2045
        %v2047 = vmul.f32 %v1998, 1.442695
        %v2048 = vpow.pop %v2047
        %v2049 = vmul.f32 %v1999, 1.442695
        %v2050 = vpow.pop %v2049
        %v2051 = vmul.f32 %v2000, 1.442695
        %v2052 = vpow.pop %v2051
        %v2053 = vmul.f32 %v2001, 1.442695
        %v2054 = vpow.pop %v2053
        %v2055 = vmul.f32 %v2002, 1.442695
        %v2056 = vpow.pop %v2055
        %v2057 = vmul.f32 %v2003, 1.442695
        %v2058 = vpow.pop %v2057
        %v2059 = vmul.f32 %v2004, 1.442695
        %v2060 = vpow.pop %v2059
        %v2061 = vmul.f32 %v2005, 1.442695
        %v2062 = vpow.pop %v2061
        %v2063 = vmul.f32 %v2006, 1.442695
        %v2064 = vpow.pop %v2063
        %v2065 = vmul.f32 %v2007, 1.442695
        %v2066 = vpow.pop %v2065
        %v2067 = vmul.f32 %v2008, 1.442695
        %v2068 = vpow.pop %v2067
        %v2069 = vmul.f32 %v2009, 1.442695
        %v2070 = vpow.pop %v2069
        %v2071 = vmul.f32 %v2010, 1.442695
        %v2072 = vpow.pop %v2071
        %v2073 = vmul.f32 %v2011, 1.442695
        %v2074 = vpow.pop %v2073
        %v2075 = vmul.f32 %v2012, 1.442695
        %v2076 = vpow.pop %v2075
        %v2077 = vsel %vm1884, %v2014, 0.0
        %2078 = vadd.xlane.f32.xlu0 %v2077
        %v2079 = vpop.xlane.xlu0 %2078
        %v2080 = vsel %vm1884, %v2016, 0.0
        %2081 = vadd.xlane.f32.xlu0 %v2080
        %v2082 = vpop.xlane.xlu0 %2081
        %v2083 = vsel %vm1884, %v2018, 0.0
        %2084 = vadd.xlane.f32.xlu0 %v2083
        %v2085 = vpop.xlane.xlu0 %2084
        %v2086 = vsel %vm1884, %v2020, 0.0
        %2087 = vadd.xlane.f32.xlu0 %v2086
        %v2088 = vpop.xlane.xlu0 %2087
        %v2089 = vsel %vm1884, %v2022, 0.0
        %2090 = vadd.xlane.f32.xlu0 %v2089
        %v2091 = vpop.xlane.xlu0 %2090
        %v2092 = vsel %vm1884, %v2024, 0.0
        %2093 = vadd.xlane.f32.xlu0 %v2092
        %v2094 = vpop.xlane.xlu0 %2093
        %v2095 = vsel %vm1884, %v2026, 0.0
        %2096 = vadd.xlane.f32.xlu0 %v2095
        %v2097 = vpop.xlane.xlu0 %2096
        %v2098 = vsel %vm1884, %v2028, 0.0
        %2099 = vadd.xlane.f32.xlu0 %v2098
        %v2100 = vpop.xlane.xlu0 %2099
        %v2101 = vsel %vm1884, %v2030, 0.0
        %2102 = vadd.xlane.f32.xlu0 %v2101
        %v2103 = vpop.xlane.xlu0 %2102
        %v2104 = vsel %vm1884, %v2032, 0.0
        %2105 = vadd.xlane.f32.xlu0 %v2104
        %v2106 = vpop.xlane.xlu0 %2105
        %v2107 = vsel %vm1884, %v2034, 0.0
        %2108 = vadd.xlane.f32.xlu0 %v2107
        %v2109 = vpop.xlane.xlu0 %2108
        %v2110 = vsel %vm1884, %v2036, 0.0
        %2111 = vadd.xlane.f32.xlu0 %v2110
        %v2112 = vpop.xlane.xlu0 %2111
        %v2113 = vsel %vm1884, %v2038, 0.0
        %2114 = vadd.xlane.f32.xlu0 %v2113
        %v2115 = vpop.xlane.xlu0 %2114
        %v2116 = vsel %vm1884, %v2040, 0.0
        %2117 = vadd.xlane.f32.xlu0 %v2116
        %v2118 = vpop.xlane.xlu0 %2117
        %v2119 = vsel %vm1884, %v2042, 0.0
        %2120 = vadd.xlane.f32.xlu0 %v2119
        %v2121 = vpop.xlane.xlu0 %2120
        %v2122 = vsel %vm1884, %v2044, 0.0
        %2123 = vadd.xlane.f32.xlu0 %v2122
        %v2124 = vpop.xlane.xlu0 %2123
        %v2125 = vsel %vm1884, %v2046, 0.0
        %2126 = vadd.xlane.f32.xlu0 %v2125
        %v2127 = vpop.xlane.xlu0 %2126
        %v2128 = vsel %vm1884, %v2048, 0.0
        %2129 = vadd.xlane.f32.xlu0 %v2128
        %v2130 = vpop.xlane.xlu0 %2129
        %v2131 = vsel %vm1884, %v2050, 0.0
        %2132 = vadd.xlane.f32.xlu0 %v2131
        %v2133 = vpop.xlane.xlu0 %2132
        %v2134 = vsel %vm1884, %v2052, 0.0
        %2135 = vadd.xlane.f32.xlu0 %v2134
        %v2136 = vpop.xlane.xlu0 %2135
        %v2137 = vsel %vm1884, %v2054, 0.0
        %2138 = vadd.xlane.f32.xlu0 %v2137
        %v2139 = vpop.xlane.xlu0 %2138
        %v2140 = vsel %vm1884, %v2056, 0.0
        %2141 = vadd.xlane.f32.xlu0 %v2140
        %v2142 = vpop.xlane.xlu0 %2141
        %v2143 = vsel %vm1884, %v2058, 0.0
        %2144 = vadd.xlane.f32.xlu0 %v2143
        %v2145 = vpop.xlane.xlu0 %2144
        %v2146 = vsel %vm1884, %v2060, 0.0
        %2147 = vadd.xlane.f32.xlu0 %v2146
        %v2148 = vpop.xlane.xlu0 %2147
        %v2149 = vsel %vm1884, %v2062, 0.0
        %2150 = vadd.xlane.f32.xlu0 %v2149
        %v2151 = vpop.xlane.xlu0 %2150
        %v2152 = vsel %vm1884, %v2064, 0.0
        %2153 = vadd.xlane.f32.xlu0 %v2152
        %v2154 = vpop.xlane.xlu0 %2153
        %v2155 = vsel %vm1884, %v2066, 0.0
        %2156 = vadd.xlane.f32.xlu0 %v2155
        %v2157 = vpop.xlane.xlu0 %2156
        %v2158 = vsel %vm1884, %v2068, 0.0
        %2159 = vadd.xlane.f32.xlu0 %v2158
        %v2160 = vpop.xlane.xlu0 %2159
        %v2161 = vsel %vm1884, %v2070, 0.0
        %2162 = vadd.xlane.f32.xlu0 %v2161
        %v2163 = vpop.xlane.xlu0 %2162
        %v2164 = vsel %vm1884, %v2072, 0.0
        %2165 = vadd.xlane.f32.xlu0 %v2164
        %v2166 = vpop.xlane.xlu0 %2165
        %v2167 = vsel %vm1884, %v2074, 0.0
        %2168 = vadd.xlane.f32.xlu0 %v2167
        %v2169 = vpop.xlane.xlu0 %2168
        %v2170 = vsel %vm1884, %v2076, 0.0
        %2171 = vadd.xlane.f32.xlu0 %v2170
        %v2172 = vpop.xlane.xlu0 %2171
        %v2173 = vrcp.pop %v2079
        %v2174 = vrcp.pop %v2082
        %v2175 = vrcp.pop %v2085
        %v2176 = vrcp.pop %v2088
        %v2177 = vrcp.pop %v2091
        %v2178 = vrcp.pop %v2094
        %v2179 = vrcp.pop %v2097
        %v2180 = vrcp.pop %v2100
        %v2181 = vrcp.pop %v2103
        %v2182 = vrcp.pop %v2106
        %v2183 = vrcp.pop %v2109
        %v2184 = vrcp.pop %v2112
        %v2185 = vrcp.pop %v2115
        %v2186 = vrcp.pop %v2118
        %v2187 = vrcp.pop %v2121
        %v2188 = vrcp.pop %v2124
        %v2189 = vrcp.pop %v2127
        %v2190 = vrcp.pop %v2130
        %v2191 = vrcp.pop %v2133
        %v2192 = vrcp.pop %v2136
        %v2193 = vrcp.pop %v2139
        %v2194 = vrcp.pop %v2142
        %v2195 = vrcp.pop %v2145
        %v2196 = vrcp.pop %v2148
        %v2197 = vrcp.pop %v2151
        %v2198 = vrcp.pop %v2154
        %v2199 = vrcp.pop %v2157
        %v2200 = vrcp.pop %v2160
        %v2201 = vrcp.pop %v2163
        %v2202 = vrcp.pop %v2166
        %v2203 = vrcp.pop %v2169
        %v2204 = vrcp.pop %v2172
        %v2205 = vmul.f32 %v2014, %v2173
        %v2206 = vmul.f32 %v2016, %v2174
        %v2207 = vmul.f32 %v2018, %v2175
        %v2208 = vmul.f32 %v2020, %v2176
        %v2209 = vmul.f32 %v2022, %v2177
        %v2210 = vmul.f32 %v2024, %v2178
        %v2211 = vmul.f32 %v2026, %v2179
        %v2212 = vmul.f32 %v2028, %v2180
        %v2213 = vmul.f32 %v2030, %v2181
        %v2214 = vmul.f32 %v2032, %v2182
        %v2215 = vmul.f32 %v2034, %v2183
        %v2216 = vmul.f32 %v2036, %v2184
        %v2217 = vmul.f32 %v2038, %v2185
        %v2218 = vmul.f32 %v2040, %v2186
        %v2219 = vmul.f32 %v2042, %v2187
        %v2220 = vmul.f32 %v2044, %v2188
        %v2221 = vmul.f32 %v2046, %v2189
        %v2222 = vmul.f32 %v2048, %v2190
        %v2223 = vmul.f32 %v2050, %v2191
        %v2224 = vmul.f32 %v2052, %v2192
        %v2225 = vmul.f32 %v2054, %v2193
        %v2226 = vmul.f32 %v2056, %v2194
        %v2227 = vmul.f32 %v2058, %v2195
        %v2228 = vmul.f32 %v2060, %v2196
        %v2229 = vmul.f32 %v2062, %v2197
        %v2230 = vmul.f32 %v2064, %v2198
        %v2231 = vmul.f32 %v2066, %v2199
        %v2232 = vmul.f32 %v2068, %v2200
        %v2233 = vmul.f32 %v2070, %v2201
        %v2234 = vmul.f32 %v2072, %v2202
        %v2235 = vmul.f32 %v2074, %v2203
        %v2236 = vmul.f32 %v2076, %v2204
        %v2237 = vpack.c.bf16 %v2206, %v2205
        %v2238 = vpack.c.bf16 %v2208, %v2207
        %v2239 = vpack.c.bf16 %v2210, %v2209
        %v2240 = vpack.c.bf16 %v2212, %v2211
        %v2241 = vpack.c.bf16 %v2214, %v2213
        %v2242 = vpack.c.bf16 %v2216, %v2215
        %v2243 = vpack.c.bf16 %v2218, %v2217
        %v2244 = vpack.c.bf16 %v2220, %v2219
        %v2245 = vpack.c.bf16 %v2222, %v2221
        %v2246 = vpack.c.bf16 %v2224, %v2223
        %v2247 = vpack.c.bf16 %v2226, %v2225
        %v2248 = vpack.c.bf16 %v2228, %v2227
        %v2249 = vpack.c.bf16 %v2230, %v2229
        %v2250 = vpack.c.bf16 %v2232, %v2231
        %v2251 = vpack.c.bf16 %v2234, %v2233
        %v2252 = vpack.c.bf16 %v2236, %v2235
        %v2254 = vsel %vm1884, %v2237, 0
        %2256 = vmatprep.subr.bf16.mxu0 0
        %2257 = vmatpush1.bf16.msra.mxu0 0
        %2258 = vmatprep.subr.bf16.mxu0 0
        %2259 = vmatpush1.bf16.msra.mxu0 0
        %2260 = vmatprep.subr.bf16.mxu0 0
        %2261 = vmatpush1.bf16.msra.mxu0 0
        %2262 = vmatprep.subr.bf16.mxu0 0
        %2263 = vmatpush1.bf16.msra.mxu0 0
        %2264 = vmatprep.subr.bf16.mxu0 0
        %2265 = vmatpush1.bf16.msra.mxu0 0
        %2266 = vmatprep.subr.bf16.mxu0 0
        %2267 = vmatpush1.bf16.msra.mxu0 0
        %2268 = vmatprep.subr.bf16.mxu0 0
        %2269 = vmatpush1.bf16.msra.mxu0 0
        %2270 = vmatprep.subr.bf16.mxu0 0
        %2271 = vmatpush1.bf16.msra.mxu0 %v1196
        %2272 = vmatprep.subr.bf16.mxu0 0
        %2273 = vmatpush2.bf16.msra.mxu0 0
        %2274 = vmatprep.subr.bf16.mxu0 0
        %2275 = vmatpush2.bf16.msra.mxu0 0
        %2276 = vmatprep.subr.bf16.mxu0 0
        %2277 = vmatpush2.bf16.msra.mxu0 0
        %2278 = vmatprep.subr.bf16.mxu0 0
        %2279 = vmatpush2.bf16.msra.mxu0 0
        %2280 = vmatprep.subr.bf16.mxu0 0
        %2281 = vmatpush2.bf16.msra.mxu0 0
        %2282 = vmatprep.subr.bf16.mxu0 0
        %2283 = vmatpush2.bf16.msra.mxu0 0
        %2284 = vmatprep.subr.bf16.mxu0 0
        %2285 = vmatpush2.bf16.msra.mxu0 0
        %2286 = vmatprep.subr.bf16.mxu0 0
        %2287 = vmatpush2.bf16.msra.mxu0 0
        %2288 = vmatprep.mubr.bf16.mxu0 0
        %2289 = vmatmul.mubr.bf16.gmra.mxu0 %v2254
        %v2290 = vpop.f32.mrf.mxu0
        %v2291 = vadd.f32 0.0, %v2290
        %v2292 = vpop.f32.mrf.mxu0
        %v2293 = vpop.f32.mrf.mxu0
        %v2294 = vadd.f32 0.0, %v2293
        %v2295 = vpop.f32.mrf.mxu0
        %2296 = vdwg.mxu0
        %v2298 = vsel %vm1884, %v2238, 0
        %2300 = vmatprep.subr.bf16.mxu0 0
        %2301 = vmatpush1.bf16.msra.mxu0 0
        %2302 = vmatprep.subr.bf16.mxu0 0
        %2303 = vmatpush1.bf16.msra.mxu0 0
        %2304 = vmatprep.subr.bf16.mxu0 0
        %2305 = vmatpush1.bf16.msra.mxu0 0
        %2306 = vmatprep.subr.bf16.mxu0 0
        %2307 = vmatpush1.bf16.msra.mxu0 0
        %2308 = vmatprep.subr.bf16.mxu0 0
        %2309 = vmatpush1.bf16.msra.mxu0 0
        %2310 = vmatprep.subr.bf16.mxu0 0
        %2311 = vmatpush1.bf16.msra.mxu0 0
        %2312 = vmatprep.subr.bf16.mxu0 0
        %2313 = vmatpush1.bf16.msra.mxu0 0
        %2314 = vmatprep.subr.bf16.mxu0 0
        %2315 = vmatpush1.bf16.msra.mxu0 %v1197
        %2316 = vmatprep.subr.bf16.mxu0 0
        %2317 = vmatpush2.bf16.msra.mxu0 0
        %2318 = vmatprep.subr.bf16.mxu0 0
        %2319 = vmatpush2.bf16.msra.mxu0 0
        %2320 = vmatprep.subr.bf16.mxu0 0
        %2321 = vmatpush2.bf16.msra.mxu0 0
        %2322 = vmatprep.subr.bf16.mxu0 0
        %2323 = vmatpush2.bf16.msra.mxu0 0
        %2324 = vmatprep.subr.bf16.mxu0 0
        %2325 = vmatpush2.bf16.msra.mxu0 0
        %2326 = vmatprep.subr.bf16.mxu0 0
        %2327 = vmatpush2.bf16.msra.mxu0 0
        %2328 = vmatprep.subr.bf16.mxu0 0
        %2329 = vmatpush2.bf16.msra.mxu0 0
        %2330 = vmatprep.subr.bf16.mxu0 0
        %2331 = vmatpush2.bf16.msra.mxu0 0
        %2332 = vmatprep.mubr.bf16.mxu0 0
        %2333 = vmatmul.mubr.bf16.gmra.mxu0 %v2298
        %v2334 = vpop.f32.mrf.mxu0
        %v2335 = vadd.f32 0.0, %v2334
        %v2336 = vpop.f32.mrf.mxu0
        %v2337 = vpop.f32.mrf.mxu0
        %v2338 = vadd.f32 0.0, %v2337
        %v2339 = vpop.f32.mrf.mxu0
        %2340 = vdwg.mxu0
        %v2342 = vsel %vm1884, %v2239, 0
        %2344 = vmatprep.subr.bf16.mxu0 0
        %2345 = vmatpush1.bf16.msra.mxu0 0
        %2346 = vmatprep.subr.bf16.mxu0 0
        %2347 = vmatpush1.bf16.msra.mxu0 0
        %2348 = vmatprep.subr.bf16.mxu0 0
        %2349 = vmatpush1.bf16.msra.mxu0 0
        %2350 = vmatprep.subr.bf16.mxu0 0
        %2351 = vmatpush1.bf16.msra.mxu0 0
        %2352 = vmatprep.subr.bf16.mxu0 0
        %2353 = vmatpush1.bf16.msra.mxu0 0
        %2354 = vmatprep.subr.bf16.mxu0 0
        %2355 = vmatpush1.bf16.msra.mxu0 0
        %2356 = vmatprep.subr.bf16.mxu0 0
        %2357 = vmatpush1.bf16.msra.mxu0 0
        %2358 = vmatprep.subr.bf16.mxu0 0
        %2359 = vmatpush1.bf16.msra.mxu0 %v1198
        %2360 = vmatprep.subr.bf16.mxu0 0
        %2361 = vmatpush2.bf16.msra.mxu0 0
        %2362 = vmatprep.subr.bf16.mxu0 0
        %2363 = vmatpush2.bf16.msra.mxu0 0
        %2364 = vmatprep.subr.bf16.mxu0 0
        %2365 = vmatpush2.bf16.msra.mxu0 0
        %2366 = vmatprep.subr.bf16.mxu0 0
        %2367 = vmatpush2.bf16.msra.mxu0 0
        %2368 = vmatprep.subr.bf16.mxu0 0
        %2369 = vmatpush2.bf16.msra.mxu0 0
        %2370 = vmatprep.subr.bf16.mxu0 0
        %2371 = vmatpush2.bf16.msra.mxu0 0
        %2372 = vmatprep.subr.bf16.mxu0 0
        %2373 = vmatpush2.bf16.msra.mxu0 0
        %2374 = vmatprep.subr.bf16.mxu0 0
        %2375 = vmatpush2.bf16.msra.mxu0 0
        %2376 = vmatprep.mubr.bf16.mxu0 0
        %2377 = vmatmul.mubr.bf16.gmra.mxu0 %v2342
        %v2378 = vpop.f32.mrf.mxu0
        %v2379 = vadd.f32 0.0, %v2378
        %v2380 = vpop.f32.mrf.mxu0
        %v2381 = vpop.f32.mrf.mxu0
        %v2382 = vadd.f32 0.0, %v2381
        %v2383 = vpop.f32.mrf.mxu0
        %2384 = vdwg.mxu0
        %v2386 = vsel %vm1884, %v2240, 0
        %2388 = vmatprep.subr.bf16.mxu0 0
        %2389 = vmatpush1.bf16.msra.mxu0 0
        %2390 = vmatprep.subr.bf16.mxu0 0
        %2391 = vmatpush1.bf16.msra.mxu0 0
        %2392 = vmatprep.subr.bf16.mxu0 0
        %2393 = vmatpush1.bf16.msra.mxu0 0
        %2394 = vmatprep.subr.bf16.mxu0 0
        %2395 = vmatpush1.bf16.msra.mxu0 0
        %2396 = vmatprep.subr.bf16.mxu0 0
        %2397 = vmatpush1.bf16.msra.mxu0 0
        %2398 = vmatprep.subr.bf16.mxu0 0
        %2399 = vmatpush1.bf16.msra.mxu0 0
        %2400 = vmatprep.subr.bf16.mxu0 0
        %2401 = vmatpush1.bf16.msra.mxu0 0
        %2402 = vmatprep.subr.bf16.mxu0 0
        %2403 = vmatpush1.bf16.msra.mxu0 %v1199
        %2404 = vmatprep.subr.bf16.mxu0 0
        %2405 = vmatpush2.bf16.msra.mxu0 0
        %2406 = vmatprep.subr.bf16.mxu0 0
        %2407 = vmatpush2.bf16.msra.mxu0 0
        %2408 = vmatprep.subr.bf16.mxu0 0
        %2409 = vmatpush2.bf16.msra.mxu0 0
        %2410 = vmatprep.subr.bf16.mxu0 0
        %2411 = vmatpush2.bf16.msra.mxu0 0
        %2412 = vmatprep.subr.bf16.mxu0 0
        %2413 = vmatpush2.bf16.msra.mxu0 0
        %2414 = vmatprep.subr.bf16.mxu0 0
        %2415 = vmatpush2.bf16.msra.mxu0 0
        %2416 = vmatprep.subr.bf16.mxu0 0
        %2417 = vmatpush2.bf16.msra.mxu0 0
        %2418 = vmatprep.subr.bf16.mxu0 0
        %2419 = vmatpush2.bf16.msra.mxu0 0
        %2420 = vmatprep.mubr.bf16.mxu0 0
        %2421 = vmatmul.mubr.bf16.gmra.mxu0 %v2386
        %v2422 = vpop.f32.mrf.mxu0
        %v2423 = vadd.f32 0.0, %v2422
        %v2424 = vpop.f32.mrf.mxu0
        %v2425 = vpop.f32.mrf.mxu0
        %v2426 = vadd.f32 0.0, %v2425
        %v2427 = vpop.f32.mrf.mxu0
        %2428 = vdwg.mxu0
        %v2430 = vsel %vm1884, %v2241, 0
        %2432 = vmatprep.subr.bf16.mxu0 0
        %2433 = vmatpush1.bf16.msra.mxu0 0
        %2434 = vmatprep.subr.bf16.mxu0 0
        %2435 = vmatpush1.bf16.msra.mxu0 0
        %2436 = vmatprep.subr.bf16.mxu0 0
        %2437 = vmatpush1.bf16.msra.mxu0 0
        %2438 = vmatprep.subr.bf16.mxu0 0
        %2439 = vmatpush1.bf16.msra.mxu0 0
        %2440 = vmatprep.subr.bf16.mxu0 0
        %2441 = vmatpush1.bf16.msra.mxu0 0
        %2442 = vmatprep.subr.bf16.mxu0 0
        %2443 = vmatpush1.bf16.msra.mxu0 0
        %2444 = vmatprep.subr.bf16.mxu0 0
        %2445 = vmatpush1.bf16.msra.mxu0 0
        %2446 = vmatprep.subr.bf16.mxu0 0
        %2447 = vmatpush1.bf16.msra.mxu0 %v1200
        %2448 = vmatprep.subr.bf16.mxu0 0
        %2449 = vmatpush2.bf16.msra.mxu0 0
        %2450 = vmatprep.subr.bf16.mxu0 0
        %2451 = vmatpush2.bf16.msra.mxu0 0
        %2452 = vmatprep.subr.bf16.mxu0 0
        %2453 = vmatpush2.bf16.msra.mxu0 0
        %2454 = vmatprep.subr.bf16.mxu0 0
        %2455 = vmatpush2.bf16.msra.mxu0 0
        %2456 = vmatprep.subr.bf16.mxu0 0
        %2457 = vmatpush2.bf16.msra.mxu0 0
        %2458 = vmatprep.subr.bf16.mxu0 0
        %2459 = vmatpush2.bf16.msra.mxu0 0
        %2460 = vmatprep.subr.bf16.mxu0 0
        %2461 = vmatpush2.bf16.msra.mxu0 0
        %2462 = vmatprep.subr.bf16.mxu0 0
        %2463 = vmatpush2.bf16.msra.mxu0 0
        %2464 = vmatprep.mubr.bf16.mxu0 0
        %2465 = vmatmul.mubr.bf16.gmra.mxu0 %v2430
        %v2466 = vpop.f32.mrf.mxu0
        %v2467 = vadd.f32 0.0, %v2466
        %v2468 = vpop.f32.mrf.mxu0
        %v2469 = vpop.f32.mrf.mxu0
        %v2470 = vadd.f32 0.0, %v2469
        %v2471 = vpop.f32.mrf.mxu0
        %2472 = vdwg.mxu0
        %v2474 = vsel %vm1884, %v2242, 0
        %2476 = vmatprep.subr.bf16.mxu0 0
        %2477 = vmatpush1.bf16.msra.mxu0 0
        %2478 = vmatprep.subr.bf16.mxu0 0
        %2479 = vmatpush1.bf16.msra.mxu0 0
        %2480 = vmatprep.subr.bf16.mxu0 0
        %2481 = vmatpush1.bf16.msra.mxu0 0
        %2482 = vmatprep.subr.bf16.mxu0 0
        %2483 = vmatpush1.bf16.msra.mxu0 0
        %2484 = vmatprep.subr.bf16.mxu0 0
        %2485 = vmatpush1.bf16.msra.mxu0 0
        %2486 = vmatprep.subr.bf16.mxu0 0
        %2487 = vmatpush1.bf16.msra.mxu0 0
        %2488 = vmatprep.subr.bf16.mxu0 0
        %2489 = vmatpush1.bf16.msra.mxu0 0
        %2490 = vmatprep.subr.bf16.mxu0 0
        %2491 = vmatpush1.bf16.msra.mxu0 %v1201
        %2492 = vmatprep.subr.bf16.mxu0 0
        %2493 = vmatpush2.bf16.msra.mxu0 0
        %2494 = vmatprep.subr.bf16.mxu0 0
        %2495 = vmatpush2.bf16.msra.mxu0 0
        %2496 = vmatprep.subr.bf16.mxu0 0
        %2497 = vmatpush2.bf16.msra.mxu0 0
        %2498 = vmatprep.subr.bf16.mxu0 0
        %2499 = vmatpush2.bf16.msra.mxu0 0
        %2500 = vmatprep.subr.bf16.mxu0 0
        %2501 = vmatpush2.bf16.msra.mxu0 0
        %2502 = vmatprep.subr.bf16.mxu0 0
        %2503 = vmatpush2.bf16.msra.mxu0 0
        %2504 = vmatprep.subr.bf16.mxu0 0
        %2505 = vmatpush2.bf16.msra.mxu0 0
        %2506 = vmatprep.subr.bf16.mxu0 0
        %2507 = vmatpush2.bf16.msra.mxu0 0
        %2508 = vmatprep.mubr.bf16.mxu0 0
        %2509 = vmatmul.mubr.bf16.gmra.mxu0 %v2474
        %v2510 = vpop.f32.mrf.mxu0
        %v2511 = vadd.f32 0.0, %v2510
        %v2512 = vpop.f32.mrf.mxu0
        %v2513 = vpop.f32.mrf.mxu0
        %v2514 = vadd.f32 0.0, %v2513
        %v2515 = vpop.f32.mrf.mxu0
        %2516 = vdwg.mxu0
        %v2518 = vsel %vm1884, %v2243, 0
        %2520 = vmatprep.subr.bf16.mxu0 0
        %2521 = vmatpush1.bf16.msra.mxu0 0
        %2522 = vmatprep.subr.bf16.mxu0 0
        %2523 = vmatpush1.bf16.msra.mxu0 0
        %2524 = vmatprep.subr.bf16.mxu0 0
        %2525 = vmatpush1.bf16.msra.mxu0 0
        %2526 = vmatprep.subr.bf16.mxu0 0
        %2527 = vmatpush1.bf16.msra.mxu0 0
        %2528 = vmatprep.subr.bf16.mxu0 0
        %2529 = vmatpush1.bf16.msra.mxu0 0
        %2530 = vmatprep.subr.bf16.mxu0 0
        %2531 = vmatpush1.bf16.msra.mxu0 0
        %2532 = vmatprep.subr.bf16.mxu0 0
        %2533 = vmatpush1.bf16.msra.mxu0 0
        %2534 = vmatprep.subr.bf16.mxu0 0
        %2535 = vmatpush1.bf16.msra.mxu0 %v1202
        %2536 = vmatprep.subr.bf16.mxu0 0
        %2537 = vmatpush2.bf16.msra.mxu0 0
        %2538 = vmatprep.subr.bf16.mxu0 0
        %2539 = vmatpush2.bf16.msra.mxu0 0
        %2540 = vmatprep.subr.bf16.mxu0 0
        %2541 = vmatpush2.bf16.msra.mxu0 0
        %2542 = vmatprep.subr.bf16.mxu0 0
        %2543 = vmatpush2.bf16.msra.mxu0 0
        %2544 = vmatprep.subr.bf16.mxu0 0
        %2545 = vmatpush2.bf16.msra.mxu0 0
        %2546 = vmatprep.subr.bf16.mxu0 0
        %2547 = vmatpush2.bf16.msra.mxu0 0
        %2548 = vmatprep.subr.bf16.mxu0 0
        %2549 = vmatpush2.bf16.msra.mxu0 0
        %2550 = vmatprep.subr.bf16.mxu0 0
        %2551 = vmatpush2.bf16.msra.mxu0 0
        %2552 = vmatprep.mubr.bf16.mxu0 0
        %2553 = vmatmul.mubr.bf16.gmra.mxu0 %v2518
        %v2554 = vpop.f32.mrf.mxu0
        %v2555 = vadd.f32 0.0, %v2554
        %v2556 = vpop.f32.mrf.mxu0
        %v2557 = vpop.f32.mrf.mxu0
        %v2558 = vadd.f32 0.0, %v2557
        %v2559 = vpop.f32.mrf.mxu0
        %2560 = vdwg.mxu0
        %v2562 = vsel %vm1884, %v2244, 0
        %2564 = vmatprep.subr.bf16.mxu0 0
        %2565 = vmatpush1.bf16.msra.mxu0 0
        %2566 = vmatprep.subr.bf16.mxu0 0
        %2567 = vmatpush1.bf16.msra.mxu0 0
        %2568 = vmatprep.subr.bf16.mxu0 0
        %2569 = vmatpush1.bf16.msra.mxu0 0
        %2570 = vmatprep.subr.bf16.mxu0 0
        %2571 = vmatpush1.bf16.msra.mxu0 0
        %2572 = vmatprep.subr.bf16.mxu0 0
        %2573 = vmatpush1.bf16.msra.mxu0 0
        %2574 = vmatprep.subr.bf16.mxu0 0
        %2575 = vmatpush1.bf16.msra.mxu0 0
        %2576 = vmatprep.subr.bf16.mxu0 0
        %2577 = vmatpush1.bf16.msra.mxu0 0
        %2578 = vmatprep.subr.bf16.mxu0 0
        %2579 = vmatpush1.bf16.msra.mxu0 %v1203
        %2580 = vmatprep.subr.bf16.mxu0 0
        %2581 = vmatpush2.bf16.msra.mxu0 0
        %2582 = vmatprep.subr.bf16.mxu0 0
        %2583 = vmatpush2.bf16.msra.mxu0 0
        %2584 = vmatprep.subr.bf16.mxu0 0
        %2585 = vmatpush2.bf16.msra.mxu0 0
        %2586 = vmatprep.subr.bf16.mxu0 0
        %2587 = vmatpush2.bf16.msra.mxu0 0
        %2588 = vmatprep.subr.bf16.mxu0 0
        %2589 = vmatpush2.bf16.msra.mxu0 0
        %2590 = vmatprep.subr.bf16.mxu0 0
        %2591 = vmatpush2.bf16.msra.mxu0 0
        %2592 = vmatprep.subr.bf16.mxu0 0
        %2593 = vmatpush2.bf16.msra.mxu0 0
        %2594 = vmatprep.subr.bf16.mxu0 0
        %2595 = vmatpush2.bf16.msra.mxu0 0
        %2596 = vmatprep.mubr.bf16.mxu0 0
        %2597 = vmatmul.mubr.bf16.gmra.mxu0 %v2562
        %v2598 = vpop.f32.mrf.mxu0
        %v2599 = vadd.f32 0.0, %v2598
        %v2600 = vpop.f32.mrf.mxu0
        %v2601 = vpop.f32.mrf.mxu0
        %v2602 = vadd.f32 0.0, %v2601
        %v2603 = vpop.f32.mrf.mxu0
        %2604 = vdwg.mxu0
        %v2606 = vsel %vm1884, %v2245, 0
        %2608 = vmatprep.subr.bf16.mxu0 0
        %2609 = vmatpush1.bf16.msra.mxu0 0
        %2610 = vmatprep.subr.bf16.mxu0 0
        %2611 = vmatpush1.bf16.msra.mxu0 0
        %2612 = vmatprep.subr.bf16.mxu0 0
        %2613 = vmatpush1.bf16.msra.mxu0 0
        %2614 = vmatprep.subr.bf16.mxu0 0
        %2615 = vmatpush1.bf16.msra.mxu0 0
        %2616 = vmatprep.subr.bf16.mxu0 0
        %2617 = vmatpush1.bf16.msra.mxu0 0
        %2618 = vmatprep.subr.bf16.mxu0 0
        %2619 = vmatpush1.bf16.msra.mxu0 0
        %2620 = vmatprep.subr.bf16.mxu0 0
        %2621 = vmatpush1.bf16.msra.mxu0 0
        %2622 = vmatprep.subr.bf16.mxu0 0
        %2623 = vmatpush1.bf16.msra.mxu0 %v1204
        %2624 = vmatprep.subr.bf16.mxu0 0
        %2625 = vmatpush2.bf16.msra.mxu0 0
        %2626 = vmatprep.subr.bf16.mxu0 0
        %2627 = vmatpush2.bf16.msra.mxu0 0
        %2628 = vmatprep.subr.bf16.mxu0 0
        %2629 = vmatpush2.bf16.msra.mxu0 0
        %2630 = vmatprep.subr.bf16.mxu0 0
        %2631 = vmatpush2.bf16.msra.mxu0 0
        %2632 = vmatprep.subr.bf16.mxu0 0
        %2633 = vmatpush2.bf16.msra.mxu0 0
        %2634 = vmatprep.subr.bf16.mxu0 0
        %2635 = vmatpush2.bf16.msra.mxu0 0
        %2636 = vmatprep.subr.bf16.mxu0 0
        %2637 = vmatpush2.bf16.msra.mxu0 0
        %2638 = vmatprep.subr.bf16.mxu0 0
        %2639 = vmatpush2.bf16.msra.mxu0 0
        %2640 = vmatprep.mubr.bf16.mxu0 0
        %2641 = vmatmul.mubr.bf16.gmra.mxu0 %v2606
        %v2642 = vpop.f32.mrf.mxu0
        %v2643 = vadd.f32 0.0, %v2642
        %v2644 = vpop.f32.mrf.mxu0
        %v2645 = vpop.f32.mrf.mxu0
        %v2646 = vadd.f32 0.0, %v2645
        %v2647 = vpop.f32.mrf.mxu0
        %2648 = vdwg.mxu0
        %v2650 = vsel %vm1884, %v2246, 0
        %2652 = vmatprep.subr.bf16.mxu0 0
        %2653 = vmatpush1.bf16.msra.mxu0 0
        %2654 = vmatprep.subr.bf16.mxu0 0
        %2655 = vmatpush1.bf16.msra.mxu0 0
        %2656 = vmatprep.subr.bf16.mxu0 0
        %2657 = vmatpush1.bf16.msra.mxu0 0
        %2658 = vmatprep.subr.bf16.mxu0 0
        %2659 = vmatpush1.bf16.msra.mxu0 0
        %2660 = vmatprep.subr.bf16.mxu0 0
        %2661 = vmatpush1.bf16.msra.mxu0 0
        %2662 = vmatprep.subr.bf16.mxu0 0
        %2663 = vmatpush1.bf16.msra.mxu0 0
        %2664 = vmatprep.subr.bf16.mxu0 0
        %2665 = vmatpush1.bf16.msra.mxu0 0
        %2666 = vmatprep.subr.bf16.mxu0 0
        %2667 = vmatpush1.bf16.msra.mxu0 %v1205
        %2668 = vmatprep.subr.bf16.mxu0 0
        %2669 = vmatpush2.bf16.msra.mxu0 0
        %2670 = vmatprep.subr.bf16.mxu0 0
        %2671 = vmatpush2.bf16.msra.mxu0 0
        %2672 = vmatprep.subr.bf16.mxu0 0
        %2673 = vmatpush2.bf16.msra.mxu0 0
        %2674 = vmatprep.subr.bf16.mxu0 0
        %2675 = vmatpush2.bf16.msra.mxu0 0
        %2676 = vmatprep.subr.bf16.mxu0 0
        %2677 = vmatpush2.bf16.msra.mxu0 0
        %2678 = vmatprep.subr.bf16.mxu0 0
        %2679 = vmatpush2.bf16.msra.mxu0 0
        %2680 = vmatprep.subr.bf16.mxu0 0
        %2681 = vmatpush2.bf16.msra.mxu0 0
        %2682 = vmatprep.subr.bf16.mxu0 0
        %2683 = vmatpush2.bf16.msra.mxu0 0
        %2684 = vmatprep.mubr.bf16.mxu0 0
        %2685 = vmatmul.mubr.bf16.gmra.mxu0 %v2650
        %v2686 = vpop.f32.mrf.mxu0
        %v2687 = vadd.f32 0.0, %v2686
        %v2688 = vpop.f32.mrf.mxu0
        %v2689 = vpop.f32.mrf.mxu0
        %v2690 = vadd.f32 0.0, %v2689
        %v2691 = vpop.f32.mrf.mxu0
        %2692 = vdwg.mxu0
        %v2694 = vsel %vm1884, %v2247, 0
        %2696 = vmatprep.subr.bf16.mxu0 0
        %2697 = vmatpush1.bf16.msra.mxu0 0
        %2698 = vmatprep.subr.bf16.mxu0 0
        %2699 = vmatpush1.bf16.msra.mxu0 0
        %2700 = vmatprep.subr.bf16.mxu0 0
        %2701 = vmatpush1.bf16.msra.mxu0 0
        %2702 = vmatprep.subr.bf16.mxu0 0
        %2703 = vmatpush1.bf16.msra.mxu0 0
        %2704 = vmatprep.subr.bf16.mxu0 0
        %2705 = vmatpush1.bf16.msra.mxu0 0
        %2706 = vmatprep.subr.bf16.mxu0 0
        %2707 = vmatpush1.bf16.msra.mxu0 0
        %2708 = vmatprep.subr.bf16.mxu0 0
        %2709 = vmatpush1.bf16.msra.mxu0 0
        %2710 = vmatprep.subr.bf16.mxu0 0
        %2711 = vmatpush1.bf16.msra.mxu0 %v1206
        %2712 = vmatprep.subr.bf16.mxu0 0
        %2713 = vmatpush2.bf16.msra.mxu0 0
        %2714 = vmatprep.subr.bf16.mxu0 0
        %2715 = vmatpush2.bf16.msra.mxu0 0
        %2716 = vmatprep.subr.bf16.mxu0 0
        %2717 = vmatpush2.bf16.msra.mxu0 0
        %2718 = vmatprep.subr.bf16.mxu0 0
        %2719 = vmatpush2.bf16.msra.mxu0 0
        %2720 = vmatprep.subr.bf16.mxu0 0
        %2721 = vmatpush2.bf16.msra.mxu0 0
        %2722 = vmatprep.subr.bf16.mxu0 0
        %2723 = vmatpush2.bf16.msra.mxu0 0
        %2724 = vmatprep.subr.bf16.mxu0 0
        %2725 = vmatpush2.bf16.msra.mxu0 0
        %2726 = vmatprep.subr.bf16.mxu0 0
        %2727 = vmatpush2.bf16.msra.mxu0 0
        %2728 = vmatprep.mubr.bf16.mxu0 0
        %2729 = vmatmul.mubr.bf16.gmra.mxu0 %v2694
        %v2730 = vpop.f32.mrf.mxu0
        %v2731 = vadd.f32 0.0, %v2730
        %v2732 = vpop.f32.mrf.mxu0
        %v2733 = vpop.f32.mrf.mxu0
        %v2734 = vadd.f32 0.0, %v2733
        %v2735 = vpop.f32.mrf.mxu0
        %2736 = vdwg.mxu0
        %v2738 = vsel %vm1884, %v2248, 0
        %2740 = vmatprep.subr.bf16.mxu0 0
        %2741 = vmatpush1.bf16.msra.mxu0 0
        %2742 = vmatprep.subr.bf16.mxu0 0
        %2743 = vmatpush1.bf16.msra.mxu0 0
        %2744 = vmatprep.subr.bf16.mxu0 0
        %2745 = vmatpush1.bf16.msra.mxu0 0
        %2746 = vmatprep.subr.bf16.mxu0 0
        %2747 = vmatpush1.bf16.msra.mxu0 0
        %2748 = vmatprep.subr.bf16.mxu0 0
        %2749 = vmatpush1.bf16.msra.mxu0 0
        %2750 = vmatprep.subr.bf16.mxu0 0
        %2751 = vmatpush1.bf16.msra.mxu0 0
        %2752 = vmatprep.subr.bf16.mxu0 0
        %2753 = vmatpush1.bf16.msra.mxu0 0
        %2754 = vmatprep.subr.bf16.mxu0 0
        %2755 = vmatpush1.bf16.msra.mxu0 %v1207
        %2756 = vmatprep.subr.bf16.mxu0 0
        %2757 = vmatpush2.bf16.msra.mxu0 0
        %2758 = vmatprep.subr.bf16.mxu0 0
        %2759 = vmatpush2.bf16.msra.mxu0 0
        %2760 = vmatprep.subr.bf16.mxu0 0
        %2761 = vmatpush2.bf16.msra.mxu0 0
        %2762 = vmatprep.subr.bf16.mxu0 0
        %2763 = vmatpush2.bf16.msra.mxu0 0
        %2764 = vmatprep.subr.bf16.mxu0 0
        %2765 = vmatpush2.bf16.msra.mxu0 0
        %2766 = vmatprep.subr.bf16.mxu0 0
        %2767 = vmatpush2.bf16.msra.mxu0 0
        %2768 = vmatprep.subr.bf16.mxu0 0
        %2769 = vmatpush2.bf16.msra.mxu0 0
        %2770 = vmatprep.subr.bf16.mxu0 0
        %2771 = vmatpush2.bf16.msra.mxu0 0
        %2772 = vmatprep.mubr.bf16.mxu0 0
        %2773 = vmatmul.mubr.bf16.gmra.mxu0 %v2738
        %v2774 = vpop.f32.mrf.mxu0
        %v2775 = vadd.f32 0.0, %v2774
        %v2776 = vpop.f32.mrf.mxu0
        %v2777 = vpop.f32.mrf.mxu0
        %v2778 = vadd.f32 0.0, %v2777
        %v2779 = vpop.f32.mrf.mxu0
        %2780 = vdwg.mxu0
        %v2782 = vsel %vm1884, %v2249, 0
        %2784 = vmatprep.subr.bf16.mxu0 0
        %2785 = vmatpush1.bf16.msra.mxu0 0
        %2786 = vmatprep.subr.bf16.mxu0 0
        %2787 = vmatpush1.bf16.msra.mxu0 0
        %2788 = vmatprep.subr.bf16.mxu0 0
        %2789 = vmatpush1.bf16.msra.mxu0 0
        %2790 = vmatprep.subr.bf16.mxu0 0
        %2791 = vmatpush1.bf16.msra.mxu0 0
        %2792 = vmatprep.subr.bf16.mxu0 0
        %2793 = vmatpush1.bf16.msra.mxu0 0
        %2794 = vmatprep.subr.bf16.mxu0 0
        %2795 = vmatpush1.bf16.msra.mxu0 0
        %2796 = vmatprep.subr.bf16.mxu0 0
        %2797 = vmatpush1.bf16.msra.mxu0 0
        %2798 = vmatprep.subr.bf16.mxu0 0
        %2799 = vmatpush1.bf16.msra.mxu0 %v1208
        %2800 = vmatprep.subr.bf16.mxu0 0
        %2801 = vmatpush2.bf16.msra.mxu0 0
        %2802 = vmatprep.subr.bf16.mxu0 0
        %2803 = vmatpush2.bf16.msra.mxu0 0
        %2804 = vmatprep.subr.bf16.mxu0 0
        %2805 = vmatpush2.bf16.msra.mxu0 0
        %2806 = vmatprep.subr.bf16.mxu0 0
        %2807 = vmatpush2.bf16.msra.mxu0 0
        %2808 = vmatprep.subr.bf16.mxu0 0
        %2809 = vmatpush2.bf16.msra.mxu0 0
        %2810 = vmatprep.subr.bf16.mxu0 0
        %2811 = vmatpush2.bf16.msra.mxu0 0
        %2812 = vmatprep.subr.bf16.mxu0 0
        %2813 = vmatpush2.bf16.msra.mxu0 0
        %2814 = vmatprep.subr.bf16.mxu0 0
        %2815 = vmatpush2.bf16.msra.mxu0 0
        %2816 = vmatprep.mubr.bf16.mxu0 0
        %2817 = vmatmul.mubr.bf16.gmra.mxu0 %v2782
        %v2818 = vpop.f32.mrf.mxu0
        %v2819 = vadd.f32 0.0, %v2818
        %v2820 = vpop.f32.mrf.mxu0
        %v2821 = vpop.f32.mrf.mxu0
        %v2822 = vadd.f32 0.0, %v2821
        %v2823 = vpop.f32.mrf.mxu0
        %2824 = vdwg.mxu0
        %v2826 = vsel %vm1884, %v2250, 0
        %2828 = vmatprep.subr.bf16.mxu0 0
        %2829 = vmatpush1.bf16.msra.mxu0 0
        %2830 = vmatprep.subr.bf16.mxu0 0
        %2831 = vmatpush1.bf16.msra.mxu0 0
        %2832 = vmatprep.subr.bf16.mxu0 0
        %2833 = vmatpush1.bf16.msra.mxu0 0
        %2834 = vmatprep.subr.bf16.mxu0 0
        %2835 = vmatpush1.bf16.msra.mxu0 0
        %2836 = vmatprep.subr.bf16.mxu0 0
        %2837 = vmatpush1.bf16.msra.mxu0 0
        %2838 = vmatprep.subr.bf16.mxu0 0
        %2839 = vmatpush1.bf16.msra.mxu0 0
        %2840 = vmatprep.subr.bf16.mxu0 0
        %2841 = vmatpush1.bf16.msra.mxu0 0
        %2842 = vmatprep.subr.bf16.mxu0 0
        %2843 = vmatpush1.bf16.msra.mxu0 %v1209
        %2844 = vmatprep.subr.bf16.mxu0 0
        %2845 = vmatpush2.bf16.msra.mxu0 0
        %2846 = vmatprep.subr.bf16.mxu0 0
        %2847 = vmatpush2.bf16.msra.mxu0 0
        %2848 = vmatprep.subr.bf16.mxu0 0
        %2849 = vmatpush2.bf16.msra.mxu0 0
        %2850 = vmatprep.subr.bf16.mxu0 0
        %2851 = vmatpush2.bf16.msra.mxu0 0
        %2852 = vmatprep.subr.bf16.mxu0 0
        %2853 = vmatpush2.bf16.msra.mxu0 0
        %2854 = vmatprep.subr.bf16.mxu0 0
        %2855 = vmatpush2.bf16.msra.mxu0 0
        %2856 = vmatprep.subr.bf16.mxu0 0
        %2857 = vmatpush2.bf16.msra.mxu0 0
        %2858 = vmatprep.subr.bf16.mxu0 0
        %2859 = vmatpush2.bf16.msra.mxu0 0
        %2860 = vmatprep.mubr.bf16.mxu0 0
        %2861 = vmatmul.mubr.bf16.gmra.mxu0 %v2826
        %v2862 = vpop.f32.mrf.mxu0
        %v2863 = vadd.f32 0.0, %v2862
        %v2864 = vpop.f32.mrf.mxu0
        %v2865 = vpop.f32.mrf.mxu0
        %v2866 = vadd.f32 0.0, %v2865
        %v2867 = vpop.f32.mrf.mxu0
        %2868 = vdwg.mxu0
        %v2870 = vsel %vm1884, %v2251, 0
        %2872 = vmatprep.subr.bf16.mxu0 0
        %2873 = vmatpush1.bf16.msra.mxu0 0
        %2874 = vmatprep.subr.bf16.mxu0 0
        %2875 = vmatpush1.bf16.msra.mxu0 0
        %2876 = vmatprep.subr.bf16.mxu0 0
        %2877 = vmatpush1.bf16.msra.mxu0 0
        %2878 = vmatprep.subr.bf16.mxu0 0
        %2879 = vmatpush1.bf16.msra.mxu0 0
        %2880 = vmatprep.subr.bf16.mxu0 0
        %2881 = vmatpush1.bf16.msra.mxu0 0
        %2882 = vmatprep.subr.bf16.mxu0 0
        %2883 = vmatpush1.bf16.msra.mxu0 0
        %2884 = vmatprep.subr.bf16.mxu0 0
        %2885 = vmatpush1.bf16.msra.mxu0 0
        %2886 = vmatprep.subr.bf16.mxu0 0
        %2887 = vmatpush1.bf16.msra.mxu0 %v1210
        %2888 = vmatprep.subr.bf16.mxu0 0
        %2889 = vmatpush2.bf16.msra.mxu0 0
        %2890 = vmatprep.subr.bf16.mxu0 0
        %2891 = vmatpush2.bf16.msra.mxu0 0
        %2892 = vmatprep.subr.bf16.mxu0 0
        %2893 = vmatpush2.bf16.msra.mxu0 0
        %2894 = vmatprep.subr.bf16.mxu0 0
        %2895 = vmatpush2.bf16.msra.mxu0 0
        %2896 = vmatprep.subr.bf16.mxu0 0
        %2897 = vmatpush2.bf16.msra.mxu0 0
        %2898 = vmatprep.subr.bf16.mxu0 0
        %2899 = vmatpush2.bf16.msra.mxu0 0
        %2900 = vmatprep.subr.bf16.mxu0 0
        %2901 = vmatpush2.bf16.msra.mxu0 0
        %2902 = vmatprep.subr.bf16.mxu0 0
        %2903 = vmatpush2.bf16.msra.mxu0 0
        %2904 = vmatprep.mubr.bf16.mxu0 0
        %2905 = vmatmul.mubr.bf16.gmra.mxu0 %v2870
        %v2906 = vpop.f32.mrf.mxu0
        %v2907 = vadd.f32 0.0, %v2906
        %v2908 = vpop.f32.mrf.mxu0
        %v2909 = vpop.f32.mrf.mxu0
        %v2910 = vadd.f32 0.0, %v2909
        %v2911 = vpop.f32.mrf.mxu0
        %2912 = vdwg.mxu0
        %v2914 = vsel %vm1884, %v2252, 0
        %2916 = vmatprep.subr.bf16.mxu0 0
        %2917 = vmatpush1.bf16.msra.mxu0 0
        %2918 = vmatprep.subr.bf16.mxu0 0
        %2919 = vmatpush1.bf16.msra.mxu0 0
        %2920 = vmatprep.subr.bf16.mxu0 0
        %2921 = vmatpush1.bf16.msra.mxu0 0
        %2922 = vmatprep.subr.bf16.mxu0 0
        %2923 = vmatpush1.bf16.msra.mxu0 0
        %2924 = vmatprep.subr.bf16.mxu0 0
        %2925 = vmatpush1.bf16.msra.mxu0 0
        %2926 = vmatprep.subr.bf16.mxu0 0
        %2927 = vmatpush1.bf16.msra.mxu0 0
        %2928 = vmatprep.subr.bf16.mxu0 0
        %2929 = vmatpush1.bf16.msra.mxu0 0
        %2930 = vmatprep.subr.bf16.mxu0 0
        %2931 = vmatpush1.bf16.msra.mxu0 %v1211
        %2932 = vmatprep.subr.bf16.mxu0 0
        %2933 = vmatpush2.bf16.msra.mxu0 0
        %2934 = vmatprep.subr.bf16.mxu0 0
        %2935 = vmatpush2.bf16.msra.mxu0 0
        %2936 = vmatprep.subr.bf16.mxu0 0
        %2937 = vmatpush2.bf16.msra.mxu0 0
        %2938 = vmatprep.subr.bf16.mxu0 0
        %2939 = vmatpush2.bf16.msra.mxu0 0
        %2940 = vmatprep.subr.bf16.mxu0 0
        %2941 = vmatpush2.bf16.msra.mxu0 0
        %2942 = vmatprep.subr.bf16.mxu0 0
        %2943 = vmatpush2.bf16.msra.mxu0 0
        %2944 = vmatprep.subr.bf16.mxu0 0
        %2945 = vmatpush2.bf16.msra.mxu0 0
        %2946 = vmatprep.subr.bf16.mxu0 0
        %2947 = vmatpush2.bf16.msra.mxu0 0
        %2948 = vmatprep.mubr.bf16.mxu0 0
        %2949 = vmatmul.mubr.bf16.gmra.mxu0 %v2914
        %v2950 = vpop.f32.mrf.mxu0
        %v2951 = vadd.f32 0.0, %v2950
        %v2952 = vpop.f32.mrf.mxu0
        %v2953 = vpop.f32.mrf.mxu0
        %v2954 = vadd.f32 0.0, %v2953
        %v2955 = vpop.f32.mrf.mxu0
        %2956 = vdwg.mxu0
        %v2957 = vpack.c.bf16 %v2294, %v2291
        %v2958 = vpack.c.bf16 %v2338, %v2335
        %v2959 = vpack.c.bf16 %v2382, %v2379
        %v2960 = vpack.c.bf16 %v2426, %v2423
        %v2961 = vpack.c.bf16 %v2470, %v2467
        %v2962 = vpack.c.bf16 %v2514, %v2511
        %v2963 = vpack.c.bf16 %v2558, %v2555
        %v2964 = vpack.c.bf16 %v2602, %v2599
        %v2965 = vpack.c.bf16 %v2646, %v2643
        %v2966 = vpack.c.bf16 %v2690, %v2687
        %v2967 = vpack.c.bf16 %v2734, %v2731
        %v2968 = vpack.c.bf16 %v2778, %v2775
        %v2969 = vpack.c.bf16 %v2822, %v2819
        %v2970 = vpack.c.bf16 %v2866, %v2863
        %v2971 = vpack.c.bf16 %v2910, %v2907
        %v2972 = vpack.c.bf16 %v2954, %v2951
        %v2973 = vld [vmem:[#allocation7] sm:$0xf]
        %v2974 = vld [vmem:[#allocation7 + $0x4] sm:$0xf]
        %v2975 = vld [vmem:[#allocation7 + $0x8] sm:$0xf]
        %v2976 = vld [vmem:[#allocation7 + $0xc] sm:$0xf]
        %v2977 = vld [vmem:[#allocation7 + $0x10] sm:$0xf]
        %v2978 = vld [vmem:[#allocation7 + $0x14] sm:$0xf]
        %v2979 = vld [vmem:[#allocation7 + $0x18] sm:$0xf]
        %v2980 = vld [vmem:[#allocation7 + $0x1c] sm:$0xf]
        %v2981 = vld [vmem:[#allocation7 + $0x20] sm:$0xf]
        %v2982 = vld [vmem:[#allocation7 + $0x24] sm:$0xf]
        %v2983 = vld [vmem:[#allocation7 + $0x28] sm:$0xf]
        %v2984 = vld [vmem:[#allocation7 + $0x2c] sm:$0xf]
        %v2985 = vld [vmem:[#allocation7 + $0x30] sm:$0xf]
        %v2986 = vld [vmem:[#allocation7 + $0x34] sm:$0xf]
        %v2987 = vld [vmem:[#allocation7 + $0x38] sm:$0xf]
        %v2988 = vld [vmem:[#allocation7 + $0x3c] sm:$0xf]
        %v2989 = vld [vmem:[%s4] sm:$0x1]
        %v2991 = vlaneseq
        %v2992 = vshrl.u32 %v2991, 7
        %v2993 = vsub.s32 0, %v2992
        %v2994 = vrot.slane %v2989, %v2993
        %v3012 = vunpack.c.l.b16 %v2973
        %v3013 = vunpack.c.l.b16 %v2974
        %v3014 = vunpack.c.l.b16 %v2975
        %v3015 = vunpack.c.l.b16 %v2976
        %v3016 = vunpack.c.l.b16 %v2977
        %v3017 = vunpack.c.l.b16 %v2978
        %v3018 = vunpack.c.l.b16 %v2979
        %v3019 = vunpack.c.l.b16 %v2980
        %v3020 = vunpack.c.l.b16 %v2981
        %v3021 = vunpack.c.l.b16 %v2982
        %v3022 = vunpack.c.l.b16 %v2983
        %v3023 = vunpack.c.l.b16 %v2984
        %v3024 = vunpack.c.l.b16 %v2985
        %v3025 = vunpack.c.l.b16 %v2986
        %v3026 = vunpack.c.l.b16 %v2987
        %v3027 = vunpack.c.l.b16 %v2988
        %v3028 = vpack.c.b16 %v3013, %v3012
        %v3029 = vpack.c.b16 %v3015, %v3014
        %v3030 = vpack.c.b16 %v3017, %v3016
        %v3031 = vpack.c.b16 %v3019, %v3018
        %v3032 = vpack.c.b16 %v3021, %v3020
        %v3033 = vpack.c.b16 %v3023, %v3022
        %v3034 = vpack.c.b16 %v3025, %v3024
        %v3035 = vpack.c.b16 %v3027, %v3026
        %3044 = vmatprep.subr.bf16.mxu0 0
        %3045 = vmatpush1.bf16.msra.mxu0 %v3035
        %3046 = vmatprep.subr.bf16.mxu0 0
        %3047 = vmatpush1.bf16.msra.mxu0 %v3034
        %3048 = vmatprep.subr.bf16.mxu0 0
        %3049 = vmatpush1.bf16.msra.mxu0 %v3033
        %3050 = vmatprep.subr.bf16.mxu0 0
        %3051 = vmatpush1.bf16.msra.mxu0 %v3032
        %3052 = vmatprep.subr.bf16.mxu0 0
        %3053 = vmatpush1.bf16.msra.mxu0 %v3031
        %3054 = vmatprep.subr.bf16.mxu0 0
        %3055 = vmatpush1.bf16.msra.mxu0 %v3030
        %3056 = vmatprep.subr.bf16.mxu0 0
        %3057 = vmatpush1.bf16.msra.mxu0 %v3029
        %3058 = vmatprep.subr.bf16.mxu0 0
        %3059 = vmatpush1.bf16.msra.mxu0 %v3028
        %3060 = vmatprep.subr.bf16.mxu0 0
        %3061 = vmatpush2.bf16.msra.mxu0 0
        %3062 = vmatprep.subr.bf16.mxu0 0
        %3063 = vmatpush2.bf16.msra.mxu0 0
        %3064 = vmatprep.subr.bf16.mxu0 0
        %3065 = vmatpush2.bf16.msra.mxu0 0
        %3066 = vmatprep.subr.bf16.mxu0 0
        %3067 = vmatpush2.bf16.msra.mxu0 0
        %3068 = vmatprep.subr.bf16.mxu0 0
        %3069 = vmatpush2.bf16.msra.mxu0 0
        %3070 = vmatprep.subr.bf16.mxu0 0
        %3071 = vmatpush2.bf16.msra.mxu0 0
        %3072 = vmatprep.subr.bf16.mxu0 0
        %3073 = vmatpush2.bf16.msra.mxu0 0
        %3074 = vmatprep.subr.bf16.mxu0 0
        %3075 = vmatpush2.bf16.msra.mxu0 0
        %3076 = vmatprep.mubr.bf16.mxu0 0
        %3077 = vmatmul.mubr.bf16.gmra.mxu0 %v2957
        %v3078 = vpop.f32.mrf.mxu0
        %v3079 = vadd.f32 %v2994, %v3078
        %v3080 = vpop.f32.mrf.mxu0
        %v3081 = vpop.f32.mrf.mxu0
        %v3082 = vadd.f32 %v2994, %v3081
        %v3083 = vpop.f32.mrf.mxu0
        %3084 = vmatprep.mubr.bf16.mxu0 0
        %3085 = vmatmul.mubr.bf16.gmra.mxu0 %v2958
        %v3086 = vpop.f32.mrf.mxu0
        %v3087 = vadd.f32 %v2994, %v3086
        %v3088 = vpop.f32.mrf.mxu0
        %v3089 = vpop.f32.mrf.mxu0
        %v3090 = vadd.f32 %v2994, %v3089
        %v3091 = vpop.f32.mrf.mxu0
        %3092 = vmatprep.mubr.bf16.mxu0 0
        %3093 = vmatmul.mubr.bf16.gmra.mxu0 %v2959
        %v3094 = vpop.f32.mrf.mxu0
        %v3095 = vadd.f32 %v2994, %v3094
        %v3096 = vpop.f32.mrf.mxu0
        %v3097 = vpop.f32.mrf.mxu0
        %v3098 = vadd.f32 %v2994, %v3097
        %v3099 = vpop.f32.mrf.mxu0
        %3100 = vmatprep.mubr.bf16.mxu0 0
        %3101 = vmatmul.mubr.bf16.gmra.mxu0 %v2960
        %v3102 = vpop.f32.mrf.mxu0
        %v3103 = vadd.f32 %v2994, %v3102
        %v3104 = vpop.f32.mrf.mxu0
        %v3105 = vpop.f32.mrf.mxu0
        %v3106 = vadd.f32 %v2994, %v3105
        %v3107 = vpop.f32.mrf.mxu0
        %3108 = vmatprep.mubr.bf16.mxu0 0
        %3109 = vmatmul.mubr.bf16.gmra.mxu0 %v2961
        %v3110 = vpop.f32.mrf.mxu0
        %v3111 = vadd.f32 %v2994, %v3110
        %v3112 = vpop.f32.mrf.mxu0
        %v3113 = vpop.f32.mrf.mxu0
        %v3114 = vadd.f32 %v2994, %v3113
        %v3115 = vpop.f32.mrf.mxu0
        %3116 = vmatprep.mubr.bf16.mxu0 0
        %3117 = vmatmul.mubr.bf16.gmra.mxu0 %v2962
        %v3118 = vpop.f32.mrf.mxu0
        %v3119 = vadd.f32 %v2994, %v3118
        %v3120 = vpop.f32.mrf.mxu0
        %v3121 = vpop.f32.mrf.mxu0
        %v3122 = vadd.f32 %v2994, %v3121
        %v3123 = vpop.f32.mrf.mxu0
        %3124 = vmatprep.mubr.bf16.mxu0 0
        %3125 = vmatmul.mubr.bf16.gmra.mxu0 %v2963
        %v3126 = vpop.f32.mrf.mxu0
        %v3127 = vadd.f32 %v2994, %v3126
        %v3128 = vpop.f32.mrf.mxu0
        %v3129 = vpop.f32.mrf.mxu0
        %v3130 = vadd.f32 %v2994, %v3129
        %v3131 = vpop.f32.mrf.mxu0
        %3132 = vmatprep.mubr.bf16.mxu0 0
        %3133 = vmatmul.mubr.bf16.gmra.mxu0 %v2964
        %v3134 = vpop.f32.mrf.mxu0
        %v3135 = vadd.f32 %v2994, %v3134
        %v3136 = vpop.f32.mrf.mxu0
        %v3137 = vpop.f32.mrf.mxu0
        %v3138 = vadd.f32 %v2994, %v3137
        %v3139 = vpop.f32.mrf.mxu0
        %3140 = vmatprep.mubr.bf16.mxu0 0
        %3141 = vmatmul.mubr.bf16.gmra.mxu0 %v2965
        %v3142 = vpop.f32.mrf.mxu0
        %v3143 = vadd.f32 %v2994, %v3142
        %v3144 = vpop.f32.mrf.mxu0
        %v3145 = vpop.f32.mrf.mxu0
        %v3146 = vadd.f32 %v2994, %v3145
        %v3147 = vpop.f32.mrf.mxu0
        %3148 = vmatprep.mubr.bf16.mxu0 0
        %3149 = vmatmul.mubr.bf16.gmra.mxu0 %v2966
        %v3150 = vpop.f32.mrf.mxu0
        %v3151 = vadd.f32 %v2994, %v3150
        %v3152 = vpop.f32.mrf.mxu0
        %v3153 = vpop.f32.mrf.mxu0
        %v3154 = vadd.f32 %v2994, %v3153
        %v3155 = vpop.f32.mrf.mxu0
        %3156 = vmatprep.mubr.bf16.mxu0 0
        %3157 = vmatmul.mubr.bf16.gmra.mxu0 %v2967
        %v3158 = vpop.f32.mrf.mxu0
        %v3159 = vadd.f32 %v2994, %v3158
        %v3160 = vpop.f32.mrf.mxu0
        %v3161 = vpop.f32.mrf.mxu0
        %v3162 = vadd.f32 %v2994, %v3161
        %v3163 = vpop.f32.mrf.mxu0
        %3164 = vmatprep.mubr.bf16.mxu0 0
        %3165 = vmatmul.mubr.bf16.gmra.mxu0 %v2968
        %v3166 = vpop.f32.mrf.mxu0
        %v3167 = vadd.f32 %v2994, %v3166
        %v3168 = vpop.f32.mrf.mxu0
        %v3169 = vpop.f32.mrf.mxu0
        %v3170 = vadd.f32 %v2994, %v3169
        %v3171 = vpop.f32.mrf.mxu0
        %3172 = vmatprep.mubr.bf16.mxu0 0
        %3173 = vmatmul.mubr.bf16.gmra.mxu0 %v2969
        %v3174 = vpop.f32.mrf.mxu0
        %v3175 = vadd.f32 %v2994, %v3174
        %v3176 = vpop.f32.mrf.mxu0
        %v3177 = vpop.f32.mrf.mxu0
        %v3178 = vadd.f32 %v2994, %v3177
        %v3179 = vpop.f32.mrf.mxu0
        %3180 = vmatprep.mubr.bf16.mxu0 0
        %3181 = vmatmul.mubr.bf16.gmra.mxu0 %v2970
        %v3182 = vpop.f32.mrf.mxu0
        %v3183 = vadd.f32 %v2994, %v3182
        %v3184 = vpop.f32.mrf.mxu0
        %v3185 = vpop.f32.mrf.mxu0
        %v3186 = vadd.f32 %v2994, %v3185
        %v3187 = vpop.f32.mrf.mxu0
        %3188 = vmatprep.mubr.bf16.mxu0 0
        %3189 = vmatmul.mubr.bf16.gmra.mxu0 %v2971
        %v3190 = vpop.f32.mrf.mxu0
        %v3191 = vadd.f32 %v2994, %v3190
        %v3192 = vpop.f32.mrf.mxu0
        %v3193 = vpop.f32.mrf.mxu0
        %v3194 = vadd.f32 %v2994, %v3193
        %v3195 = vpop.f32.mrf.mxu0
        %3196 = vmatprep.mubr.bf16.mxu0 0
        %3197 = vmatmul.mubr.bf16.gmra.mxu0 %v2972
        %v3198 = vpop.f32.mrf.mxu0
        %v3199 = vadd.f32 %v2994, %v3198
        %v3200 = vpop.f32.mrf.mxu0
        %v3201 = vpop.f32.mrf.mxu0
        %v3202 = vadd.f32 %v2994, %v3201
        %v3203 = vpop.f32.mrf.mxu0
        %3204 = vdwg.mxu0
        %3205 = vst [vmem:[%s272] sm:$0xff] %v3079
        %3206 = vst [vmem:[%s272 + $0x8] sm:$0xff] %v3082
        %3207 = vst [vmem:[%s272 + $0x10] sm:$0xff] %v3087
        %3208 = vst [vmem:[%s272 + $0x18] sm:$0xff] %v3090
        %3209 = vst [vmem:[%s272 + $0x20] sm:$0xff] %v3095
        %3210 = vst [vmem:[%s272 + $0x28] sm:$0xff] %v3098
        %3211 = vst [vmem:[%s272 + $0x30] sm:$0xff] %v3103
        %3212 = vst [vmem:[%s272 + $0x38] sm:$0xff] %v3106
        %3213 = vst [vmem:[%s272 + $0x40] sm:$0xff] %v3111
        %3214 = vst [vmem:[%s272 + $0x48] sm:$0xff] %v3114
        %3215 = vst [vmem:[%s272 + $0x50] sm:$0xff] %v3119
        %3216 = vst [vmem:[%s272 + $0x58] sm:$0xff] %v3122
        %3217 = vst [vmem:[%s272 + $0x60] sm:$0xff] %v3127
        %3218 = vst [vmem:[%s272 + $0x68] sm:$0xff] %v3130
        %3219 = vst [vmem:[%s272 + $0x70] sm:$0xff] %v3135
        %3220 = vst [vmem:[%s272 + $0x78] sm:$0xff] %v3138
        %3221 = vst [vmem:[%s272 + $0x80] sm:$0xff] %v3143
        %3222 = vst [vmem:[%s272 + $0x88] sm:$0xff] %v3146
        %3223 = vst [vmem:[%s272 + $0x90] sm:$0xff] %v3151
        %3224 = vst [vmem:[%s272 + $0x98] sm:$0xff] %v3154
        %3225 = vst [vmem:[%s272 + $0xa0] sm:$0xff] %v3159
        %3226 = vst [vmem:[%s272 + $0xa8] sm:$0xff] %v3162
        %3227 = vst [vmem:[%s272 + $0xb0] sm:$0xff] %v3167
        %3228 = vst [vmem:[%s272 + $0xb8] sm:$0xff] %v3170
        %3229 = vst [vmem:[%s272 + $0xc0] sm:$0xff] %v3175
        %3230 = vst [vmem:[%s272 + $0xc8] sm:$0xff] %v3178
        %3231 = vst [vmem:[%s272 + $0xd0] sm:$0xff] %v3183
        %3232 = vst [vmem:[%s272 + $0xd8] sm:$0xff] %v3186
        %3233 = vst [vmem:[%s272 + $0xe0] sm:$0xff] %v3191
        %3234 = vst [vmem:[%s272 + $0xe8] sm:$0xff] %v3194
        %3235 = vst [vmem:[%s272 + $0xf0] sm:$0xff] %v3199
        %3236 = vst [vmem:[%s272 + $0xf8] sm:$0xff] %v3202
        %s3237 = sand.u32 %s141, 1
        %s3238 = scalar_lea.sflag [#allocation4], %s3237
        %s3239 = sand.u32 %s141, 1
        %s3240 = smul.addr %s3239, 256
        %s3241 = scalar_lea.vmem [#allocation8], %s3240
        // Predicated region
        $region53: #{tpu_custom_call.1} parent=39 // pred_check
          %p3242 = pneg %p151
        $region54: #{tpu_custom_call.1} parent=39 // pred_check_branch
          %3244 = sbr.rel (%p3242) target = $region56
        $region55: #{tpu_custom_call.1} parent=39 // pred_region
          %s3245 = smul.u32 16, %s23
          %s3247 = ssub.s32 4096, 4096
          %3248 = vsyncadd %s3238, %s3247
          %s3249 = smul.addr %s3245, 2
          %s3250 = smul.addr %s3249, 128
          %s3251 = scalar_lea.hbm %s5, %s3250
          %s3252 = sshll.u32 %s3241, 4
          %s3253 = int_to_ptr.vmem [resolvable:$true] %s3252
          %3258 = dma.vmem_to_hbm [thread:$0]  %s3253, 4096, %s3251, %s3238, 128, 128, 8
        $region56: #{tpu_custom_call.1} parent=39 // pred_fallthru
          _
      $region40: #{tpu_custom_call.1} parent=5 // pred_fallthru
        _
      %p3259 = scmp.le.s32.totalorder 2, %s18
      // Predicated region
      $region57: #{tpu_custom_call.1} parent=5 // pred_check
        %p3260 = pneg %p3259
      $region58: #{tpu_custom_call.1} parent=5 // pred_check_branch
        %3262 = sbr.rel (%p3260) target = $region60
      $region59: #{tpu_custom_call.1} parent=5 // pred_region
        %s3263 = ssub.s32 %s18, 2
        // Predicated region
        $region61: #{tpu_custom_call.1} parent=59 // pred_check
          %p3264 = pneg %p157
        $region62: #{tpu_custom_call.1} parent=59 // pred_check_branch
          %3266 = sbr.rel (%p3264) target = $region64
        $region63: #{tpu_custom_call.1} parent=59 // pred_region
          %s3267 = sand.u32 %s142, 1
          %s3268 = scalar_lea.sflag [#allocation4], %s3267
          %s3269 = sand.u32 %s142, 1
          %s3270 = smul.addr %s3269, 256
          %s3271 = scalar_lea.vmem [#allocation8], %s3270
          %3272 = dma.done %s3268, 4096
        $region64: #{tpu_custom_call.1} parent=59 // pred_fallthru
          _
      $region60: #{tpu_custom_call.1} parent=5 // pred_fallthru
        _
    $region6: #{tpu_custom_call.1} parent=1 // loop_footer
      %s22 = sadd.s32 1, %s18
    $region7: #{tpu_custom_call.1} parent=1 // loop_footer_branch
      %17 = sbr.rel target = $region3
    $region8: #{tpu_custom_call.1} parent=1 // loop_exit
      _
    %3273 = vsyncpa [#allocation3], 1
    %s3274 = scalar_lea.sflag [#allocation3], 1
    %3275 = vsyncpa %s3274, 1
    %3276 = vsyncpa [#allocation6], 1
    %3277 = vsyncpa [#allocation4], 1
    %s3278 = scalar_lea.sflag [#allocation4], 1
    %3279 = vsyncpa %s3278, 1

</llo_original>
